<compile_context>
chip_gen: v6e
topology: v6e:2x2x1
jax: 0.10.0
libtpu: 0.0.40
codegen_flags: <defaults>
</compile_context>

<pallas_src>
import functools

import jax
import jax.numpy as jnp
from jax.experimental import pallas as pl
from jax.experimental.pallas import tpu as pltpu


def _round_up(x, m):
    return (x + m - 1) // m * m


def _char_decoder_kernel(x_ref, h0_ref, c0_ref, wih_ref, whh_ref, b_ref,
                         wproj_ref, bproj_ref,
                         scores_ref, hout_ref, cout_ref,
                         xg_s, hall_s, *, unroll):
    """Full L-step LSTM + vocab projection for one batch tile.

    x_ref      : (L*TILE_B, E)   bf16  char embeddings for this batch tile
    h0/c0_ref  : (TILE_B, Hp)    f32   initial hidden / cell state (padded)
    wih_ref    : (E, 4*Hp)       bf16  W_ih^T, gate order (i, f, o, g)
    whh_ref    : (Hp, 4*Hp)      bf16  W_hh^T, same layout
    b_ref      : (1, 4*Hp)       f32   b_ih + b_hh (padded per gate)
    wproj_ref  : (Hp, Vp)        bf16  output projection^T (padded)
    bproj_ref  : (1, Vp)         f32   output projection bias (padded)
    scores_ref : (L*TILE_B, Vp)  f32   all-step logits for this tile
    hout/cout  : (TILE_B, Hp)    f32   final hidden / cell state
    xg_s       : (L*TILE_B, 4Hp) bf16  scratch: hoisted input projection
    hall_s     : (L*TILE_B, Hp)  bf16  scratch: per-step hidden states
    """
    tile_b, hp = h0_ref.shape
    n_steps = x_ref.shape[0] // tile_b

    # Hoisted non-recurrent input projection for all time steps: one MXU call,
    # bf16 operands, f32 accumulation; stored bf16 to halve the largest scratch.
    xg = jnp.dot(x_ref[...], wih_ref[...], preferred_element_type=jnp.float32)
    xg_s[...] = (xg + b_ref[...]).astype(jnp.bfloat16)

    def step(t, carry):
        h, c = carry                                         # f32 (tile_b, hp)
        row = pl.multiple_of(t * tile_b, 8)                  # sublane-aligned
        gates = (xg_s[pl.ds(row, tile_b), :].astype(jnp.float32)
                 + jnp.dot(h.astype(jnp.bfloat16), whh_ref[...],
                           preferred_element_type=jnp.float32))  # (tile_b, 4hp)
        # Gate layout (i, f, o, g): one wide sigmoid over the first 3*hp lanes,
        # each slice a whole 128-lane multiple because hp % 128 == 0.
        sig = jax.nn.sigmoid(gates[:, 0:3 * hp])
        i_g = sig[:, 0 * hp:1 * hp]
        f_g = sig[:, 1 * hp:2 * hp]
        o_g = sig[:, 2 * hp:3 * hp]
        g_g = jnp.tanh(gates[:, 3 * hp:4 * hp])
        c_new = f_g * c + i_g * g_g
        h_new = o_g * jnp.tanh(c_new)
        hall_s[pl.ds(row, tile_b), :] = h_new.astype(jnp.bfloat16)
        return (h_new, c_new)

    h_fin, c_fin = jax.lax.fori_loop(0, n_steps, step,
                                     (h0_ref[...], c0_ref[...]),
                                     unroll=unroll)

    # One batched vocab projection + one lane-dense scores store per tile.
    scores_ref[...] = (jnp.dot(hall_s[...], wproj_ref[...],
                               preferred_element_type=jnp.float32)
                       + bproj_ref[...])
    hout_ref[...] = h_fin
    cout_ref[...] = c_fin


@functools.partial(jax.jit, static_argnames=("tile_b", "unroll"))
def char_decoder_forward(input_ids, params, dec_hidden=None, *,
                         tile_b=None, unroll=None):
    """Pallas equivalent of CharDecoder.forward.

    input_ids : (L, B) int32
    returns   : scores (L, B, V), (h_n, c_n) each (1, B, H)
    """
    L, B = input_ids.shape
    emb_tbl = params["emb"]                 # (V, E)
    V, E = emb_tbl.shape
    H = params["whh"].shape[1]

    if tile_b is None:
        tile_b = min(256, _round_up(B, 8))      # sublane-aligned batch tile
    Bp = _round_up(max(B, 1), tile_b)
    n_tiles = Bp // tile_b
    Hp = _round_up(H, 128)                      # lane-aligned hidden
    Vp = _round_up(V, 128)                      # lane-dense scores store
    if unroll is None:
        unroll = True if L <= 8 else 4          # tunable; sweep at realistic L

    # --- glue: embedding gather, transposes, zero-padding, bias folding.
    embeds = jnp.take(emb_tbl, input_ids, axis=0)             # (L, B, E) f32
    x = jnp.pad(embeds, ((0, 0), (0, Bp - B), (0, 0)))        # (L, Bp, E)
    # Batch-tile-major layout so every grid point reads one contiguous
    # (L*tile_b, E) slab and writes one contiguous (L*tile_b, Vp) slab.
    x = (x.reshape(L, n_tiles, tile_b, E)
          .transpose(1, 0, 2, 3)
          .reshape(n_tiles, L * tile_b, E)
          .astype(jnp.bfloat16))

    gate_perm = jnp.array([0, 1, 3, 2])         # PyTorch (i,f,g,o) -> (i,f,o,g)

    def pack_gates(w_t, pad_rows):
        # w_t: (X, 4H) gate-major -> (X+pad_rows, 4*Hp), reordered & lane-padded.
        X = w_t.shape[0]
        w4 = w_t.reshape(X, 4, H)[:, gate_perm, :]
        w4 = jnp.pad(w4, ((0, pad_rows), (0, 0), (0, Hp - H)))
        return w4.reshape(X + pad_rows, 4 * Hp)

    wih_t = pack_gates(params["wih"].T, 0).astype(jnp.bfloat16)          # (E, 4Hp)
    whh_t = pack_gates(params["whh"].T, Hp - H).astype(jnp.bfloat16)     # (Hp, 4Hp)
    bias = jnp.pad((params["bih"] + params["bhh"]).reshape(4, H)[gate_perm],
                   ((0, 0), (0, Hp - H))).reshape(1, 4 * Hp)             # f32
    wproj_t = jnp.pad(params["wproj"].T,
                      ((0, Hp - H), (0, Vp - V))).astype(jnp.bfloat16)   # (Hp, Vp)
    bproj = jnp.pad(params["bproj"], (0, Vp - V)).reshape(1, Vp)         # f32

    if dec_hidden is None:
        h0 = jnp.zeros((Bp, Hp), jnp.float32)
        c0 = jnp.zeros((Bp, Hp), jnp.float32)
    else:
        h0 = jnp.pad(dec_hidden[0].reshape(B, H), ((0, Bp - B), (0, Hp - H)))
        c0 = jnp.pad(dec_hidden[1].reshape(B, H), ((0, Bp - B), (0, Hp - H)))

    # Cost hint for XLA scheduling of the surrounding gather/pad glue.
    flops = 2 * L * Bp * (E * 4 * Hp + Hp * 4 * Hp + Hp * Vp)
    transcendentals = 5 * L * Bp * Hp
    bytes_accessed = (L * Bp * E * 2 + (E + Hp) * 4 * Hp * 2 + Hp * Vp * 2
                      + (4 * Hp + Vp) * 4 + L * Bp * Vp * 4 + 4 * Bp * Hp * 4)
    cost = pl.CostEstimate(flops=flops, transcendentals=transcendentals,
                           bytes_accessed=bytes_accessed)

    # Explicit VMEM budget (double-buffered pipelined operands + scratch).
    vmem_bytes = (
        2 * L * tile_b * E * 2                               # x tile (bf16)
        + 2 * L * tile_b * Vp * 4                            # scores tile (f32)
        + 4 * 2 * tile_b * Hp * 4                            # h0/c0 + hout/cout
        + 2 * (E * 4 * Hp + Hp * 4 * Hp + Hp * Vp) * 2       # weights (bf16)
        + 2 * (4 * Hp + Vp) * 4                              # biases (f32)
        + L * tile_b * 4 * Hp * 2                            # xg_s scratch
        + L * tile_b * Hp * 2                                # hall_s scratch
    )
    vmem_limit = int(min(48 * 1024 * 1024,
                         max(2 * vmem_bytes, 32 * 1024 * 1024)))

    tile3 = lambda i: (i, 0, 0)
    tile2 = lambda i: (i, 0)
    full2 = lambda i: (0, 0)

    scores_t, h_n, c_n = pl.pallas_call(
        functools.partial(_char_decoder_kernel, unroll=unroll),
        out_shape=(
            jax.ShapeDtypeStruct((n_tiles, L * tile_b, Vp), jnp.float32),
            jax.ShapeDtypeStruct((Bp, Hp), jnp.float32),
            jax.ShapeDtypeStruct((Bp, Hp), jnp.float32),
        ),
        grid=(n_tiles,),
        in_specs=[
            pl.BlockSpec((None, L * tile_b, E), tile3),    # x (per batch tile)
            pl.BlockSpec((tile_b, Hp), tile2),             # h0
            pl.BlockSpec((tile_b, Hp), tile2),             # c0
            pl.BlockSpec((E, 4 * Hp), full2),              # W_ih^T
            pl.BlockSpec((Hp, 4 * Hp), full2),             # W_hh^T
            pl.BlockSpec((1, 4 * Hp), full2),              # bias
            pl.BlockSpec((Hp, Vp), full2),                 # W_proj^T
            pl.BlockSpec((1, Vp), full2),                  # b_proj
        ],
        out_specs=(
            pl.BlockSpec((None, L * tile_b, Vp), tile3),   # scores (per tile)
            pl.BlockSpec((tile_b, Hp), tile2),             # h_n
            pl.BlockSpec((tile_b, Hp), tile2),             # c_n
        ),
        scratch_shapes=[
            pltpu.VMEM((L * tile_b, 4 * Hp), jnp.bfloat16),   # hoisted input proj
            pltpu.VMEM((L * tile_b, Hp), jnp.bfloat16),       # per-step hidden
        ],
        compiler_params=pltpu.CompilerParams(
            dimension_semantics=("parallel",),
            vmem_limit_bytes=vmem_limit,
        ),
        cost_estimate=cost,
    )(x, h0, c0, wih_t, whh_t, bias, wproj_t, bproj)

    scores = (scores_t.reshape(n_tiles, L, tile_b, Vp)
                      .transpose(1, 0, 2, 3)
                      .reshape(L, Bp, Vp)[:, :B, :V])
    h_n = h_n[:B, :H][None]
    c_n = c_n[:B, :H][None]
    return scores, (h_n, c_n)


def _reference_forward(input_ids, params, dec_hidden):
    """Pure-JAX f32 reference (mirrors PyTorch nn.LSTM gate order i,f,g,o)."""
    emb_tbl = params["emb"]
    H = params["whh"].shape[1]
    embeds = jnp.take(emb_tbl, input_ids, axis=0)
    wih_t = params["wih"].T
    whh_t = params["whh"].T
    bias = params["bih"] + params["bhh"]
    h0 = dec_hidden[0][0]
    c0 = dec_hidden[1][0]

    def step(carry, x):
        h, c = carry
        gates = x @ wih_t + h @ whh_t + bias
        i = jax.nn.sigmoid(gates[:, 0 * H:1 * H])
        f = jax.nn.sigmoid(gates[:, 1 * H:2 * H])
        g = jnp.tanh(gates[:, 2 * H:3 * H])
        o = jax.nn.sigmoid(gates[:, 3 * H:4 * H])
        c_new = f * c + i * g
        h_new = o * jnp.tanh(c_new)
        return (h_new, c_new), h_new

    (h_n, c_n), hs = jax.lax.scan(step, (h0, c0), embeds)
    scores = hs @ params["wproj"].T + params["bproj"]
    return scores, (h_n[None], c_n[None])


if __name__ == "__main__":
    # Small shapes consistent with the module: seq length L, batch B,
    # char embedding E, LSTM hidden H, character vocab V.
    L, B, E, H, V = 8, 4, 32, 32, 30

    key = jax.random.PRNGKey(0)
    ks = jax.random.split(key, 10)
    params = {
        "emb":   jax.random.normal(ks[0], (V, E), jnp.float32) * 0.1,
        "wih":   jax.random.normal(ks[1], (4 * H, E), jnp.float32) * 0.1,
        "whh":   jax.random.normal(ks[2], (4 * H, H), jnp.float32) * 0.1,
        "bih":   jax.random.normal(ks[3], (4 * H,), jnp.float32) * 0.1,
        "bhh":   jax.random.normal(ks[4], (4 * H,), jnp.float32) * 0.1,
        "wproj": jax.random.normal(ks[5], (V, H), jnp.float32) * 0.1,
        "bproj": jax.random.normal(ks[6], (V,), jnp.float32) * 0.1,
    }
    input_ids = jax.random.randint(ks[7], (L, B), 0, V, jnp.int32)
    dec_hidden = (
        jax.random.normal(ks[8], (1, B, H), jnp.float32) * 0.1,
        jax.random.normal(ks[9], (1, B, H), jnp.float32) * 0.1,
    )

    scores, (h_n, c_n) = char_decoder_forward(input_ids, params, dec_hidden)
    jax.block_until_ready((scores, h_n, c_n))

    ref_scores, (ref_h, ref_c) = _reference_forward(input_ids, params, dec_hidden)
    assert scores.shape == (L, B, V) and h_n.shape == (1, B, H) and c_n.shape == (1, B, H)
    # bf16 matmul operands (f32 accumulation) -> slightly looser tolerance.
    assert jnp.allclose(scores, ref_scores, atol=2e-2, rtol=2e-2), "scores mismatch"
    assert jnp.allclose(h_n, ref_h, atol=2e-2, rtol=2e-2), "h_n mismatch"
    assert jnp.allclose(c_n, ref_c, atol=2e-2, rtol=2e-2), "c_n mismatch"

    print("KERNEL_OK")
</pallas_src>

<mosaic_0001>
module attributes {stable_mosaic.version = 11 : i64} {
  func.func @_char_decoder_kernel(%arg0: i32, %arg1: memref<1x64x32xbf16, #tpu.memory_space<vmem>>, %arg2: memref<8x128xf32, #tpu.memory_space<vmem>>, %arg3: memref<8x128xf32, #tpu.memory_space<vmem>>, %arg4: memref<32x512xbf16, #tpu.memory_space<vmem>>, %arg5: memref<128x512xbf16, #tpu.memory_space<vmem>>, %arg6: memref<1x512xf32, #tpu.memory_space<vmem>>, %arg7: memref<128x128xbf16, #tpu.memory_space<vmem>>, %arg8: memref<1x128xf32, #tpu.memory_space<vmem>>, %arg9: memref<1x64x128xf32, #tpu.memory_space<vmem>>, %arg10: memref<8x128xf32, #tpu.memory_space<vmem>>, %arg11: memref<8x128xf32, #tpu.memory_space<vmem>>, %arg12: memref<64x512xbf16, #tpu.memory_space<vmem>>, %arg13: memref<64x128xbf16, #tpu.memory_space<vmem>>) attributes {dimension_semantics = [#tpu.dimension_semantics<parallel>], iteration_bounds = array<i64: 1>, scalar_prefetch = 0 : i64, scratch_operands = 2 : i64, tpu.core_type = #tpu.core_type<tc>, window_params = [{transform_indices = @transform_0, window_bounds = array<i64: 1, 64, 32>}, {transform_indices = @transform_1, window_bounds = array<i64: 8, 128>}, {transform_indices = @transform_2, window_bounds = array<i64: 8, 128>}, {pipeline_mode = #tpu.pipeline_mode<synchronous>, transform_indices = @transform_3, window_bounds = array<i64: 32, 512>}, {pipeline_mode = #tpu.pipeline_mode<synchronous>, transform_indices = @transform_4, window_bounds = array<i64: 128, 512>}, {pipeline_mode = #tpu.pipeline_mode<synchronous>, transform_indices = @transform_5, window_bounds = array<i64: 1, 512>}, {pipeline_mode = #tpu.pipeline_mode<synchronous>, transform_indices = @transform_6, window_bounds = array<i64: 128, 128>}, {pipeline_mode = #tpu.pipeline_mode<synchronous>, transform_indices = @transform_7, window_bounds = array<i64: 1, 128>}, {transform_indices = @transform_8, window_bounds = array<i64: 1, 64, 128>}, {transform_indices = @transform_9, window_bounds = array<i64: 8, 128>}, {transform_indices = @transform_10, window_bounds = array<i64: 8, 128>}]} {
    %c0 = arith.constant 0 : index
    %c0_0 = arith.constant 0 : index
    %c0_1 = arith.constant 0 : index
    %0 = vector.load %arg1[%c0, %c0_0, %c0_1] : memref<1x64x32xbf16, #tpu.memory_space<vmem>>, vector<1x64x32xbf16>
    %1 = vector.shape_cast %0 : vector<1x64x32xbf16> to vector<64x32xbf16>
    %c0_2 = arith.constant 0 : index
    %c0_3 = arith.constant 0 : index
    %2 = vector.load %arg4[%c0_2, %c0_3] : memref<32x512xbf16, #tpu.memory_space<vmem>>, vector<32x512xbf16>
    %cst = arith.constant dense<0.000000e+00> : vector<64x512xf32>
    %3 = tpu.matmul %1, %2, %cst {dimension_numbers = #tpu.dot_dimension_numbers<[1], [0], [0], [1], [0, 0, 1, 1], [], []>} : vector<64x32xbf16>, vector<32x512xbf16>, vector<64x512xf32> -> vector<64x512xf32>
    %c0_4 = arith.constant 0 : index
    %c0_5 = arith.constant 0 : index
    %4 = vector.load %arg6[%c0_4, %c0_5] : memref<1x512xf32, #tpu.memory_space<vmem>>, vector<1x512xf32>
    %5 = vector.broadcast %4 : vector<1x512xf32> to vector<64x512xf32>
    %6 = arith.addf %3, %5 : vector<64x512xf32>
    %7 = arith.truncf %6 : vector<64x512xf32> to vector<64x512xbf16>
    %c0_6 = arith.constant 0 : index
    %c0_7 = arith.constant 0 : index
    %8 = vector.load %arg12[%c0_6, %c0_7] : memref<64x512xbf16, #tpu.memory_space<vmem>>, vector<64x512xbf16>
    tpu.vector_store %arg12[%c0_6, %c0_7], %7 {strides = array<i32>} : memref<64x512xbf16, #tpu.memory_space<vmem>>, vector<64x512xbf16>,
    %c0_8 = arith.constant 0 : index
    %c0_9 = arith.constant 0 : index
    %9 = vector.load %arg2[%c0_8, %c0_9] : memref<8x128xf32, #tpu.memory_space<vmem>>, vector<8x128xf32>
    %c0_10 = arith.constant 0 : index
    %c0_11 = arith.constant 0 : index
    %10 = vector.load %arg3[%c0_10, %c0_11] : memref<8x128xf32, #tpu.memory_space<vmem>>, vector<8x128xf32>
    %c0_i32 = arith.constant 0 : i32
    %c8_i32 = arith.constant 8 : i32
    %11 = arith.muli %c0_i32, %c8_i32 : i32
    %12 = tpu.assume_multiple %11, 8 : i32
    %13 = arith.index_cast %12 : i32 to index
    %c0_12 = arith.constant 0 : index
    %14 = vector.load %arg12[%13, %c0_12] : memref<64x512xbf16, #tpu.memory_space<vmem>>, vector<8x512xbf16>
    %15 = arith.extf %14 : vector<8x512xbf16> to vector<8x512xf32>
    %16 = arith.truncf %9 : vector<8x128xf32> to vector<8x128xbf16>
    %c0_13 = arith.constant 0 : index
    %c0_14 = arith.constant 0 : index
    %17 = vector.load %arg5[%c0_13, %c0_14] : memref<128x512xbf16, #tpu.memory_space<vmem>>, vector<128x512xbf16>
    %cst_15 = arith.constant dense<0.000000e+00> : vector<8x512xf32>
    %18 = tpu.matmul %16, %17, %cst_15 {dimension_numbers = #tpu.dot_dimension_numbers<[1], [0], [0], [1], [0, 0, 1, 1], [], []>} : vector<8x128xbf16>, vector<128x512xbf16>, vector<8x512xf32> -> vector<8x512xf32>
    %19 = arith.addf %15, %18 : vector<8x512xf32>
    %20 = vector.extract_strided_slice %19 {offsets = [0, 0], sizes = [8, 384], strides = [1, 1]} : vector<8x512xf32> to vector<8x384xf32>
    %21 = arith.negf %20 : vector<8x384xf32>
    %22 = math.exp %21 : vector<8x384xf32>
    %cst_16 = arith.constant 1.000000e+00 : f32
    %23 = vector.broadcast %cst_16 : f32 to vector<8x384xf32>
    %24 = arith.addf %23, %22 : vector<8x384xf32>
    %25 = arith.divf %23, %24 : vector<8x384xf32>
    %26 = vector.extract_strided_slice %25 {offsets = [0, 0], sizes = [8, 128], strides = [1, 1]} : vector<8x384xf32> to vector<8x128xf32>
    %27 = vector.extract_strided_slice %25 {offsets = [0, 128], sizes = [8, 128], strides = [1, 1]} : vector<8x384xf32> to vector<8x128xf32>
    %28 = vector.extract_strided_slice %25 {offsets = [0, 256], sizes = [8, 128], strides = [1, 1]} : vector<8x384xf32> to vector<8x128xf32>
    %29 = vector.extract_strided_slice %19 {offsets = [0, 384], sizes = [8, 128], strides = [1, 1]} : vector<8x512xf32> to vector<8x128xf32>
    %30 = math.tanh %29 : vector<8x128xf32>
    %31 = arith.mulf %27, %10 : vector<8x128xf32>
    %32 = arith.mulf %26, %30 : vector<8x128xf32>
    %33 = arith.addf %31, %32 : vector<8x128xf32>
    %34 = math.tanh %33 : vector<8x128xf32>
    %35 = arith.mulf %28, %34 : vector<8x128xf32>
    %36 = arith.truncf %35 : vector<8x128xf32> to vector<8x128xbf16>
    %37 = arith.index_cast %12 : i32 to index
    %c0_17 = arith.constant 0 : index
    %38 = vector.load %arg13[%37, %c0_17] : memref<64x128xbf16, #tpu.memory_space<vmem>>, vector<8x128xbf16>
    tpu.vector_store %arg13[%37, %c0_17], %36 {strides = array<i32>} : memref<64x128xbf16, #tpu.memory_space<vmem>>, vector<8x128xbf16>,
    %c1_i32 = arith.constant 1 : i32
    %c8_i32_18 = arith.constant 8 : i32
    %39 = arith.muli %c1_i32, %c8_i32_18 : i32
    %40 = tpu.assume_multiple %39, 8 : i32
    %41 = arith.index_cast %40 : i32 to index
    %c0_19 = arith.constant 0 : index
    %42 = vector.load %arg12[%41, %c0_19] : memref<64x512xbf16, #tpu.memory_space<vmem>>, vector<8x512xbf16>
    %43 = arith.extf %42 : vector<8x512xbf16> to vector<8x512xf32>
    %44 = arith.truncf %35 : vector<8x128xf32> to vector<8x128xbf16>
    %c0_20 = arith.constant 0 : index
    %c0_21 = arith.constant 0 : index
    %45 = vector.load %arg5[%c0_20, %c0_21] : memref<128x512xbf16, #tpu.memory_space<vmem>>, vector<128x512xbf16>
    %cst_22 = arith.constant dense<0.000000e+00> : vector<8x512xf32>
    %46 = tpu.matmul %44, %45, %cst_22 {dimension_numbers = #tpu.dot_dimension_numbers<[1], [0], [0], [1], [0, 0, 1, 1], [], []>} : vector<8x128xbf16>, vector<128x512xbf16>, vector<8x512xf32> -> vector<8x512xf32>
    %47 = arith.addf %43, %46 : vector<8x512xf32>
    %48 = vector.extract_strided_slice %47 {offsets = [0, 0], sizes = [8, 384], strides = [1, 1]} : vector<8x512xf32> to vector<8x384xf32>
    %49 = arith.negf %48 : vector<8x384xf32>
    %50 = math.exp %49 : vector<8x384xf32>
    %cst_23 = arith.constant 1.000000e+00 : f32
    %51 = vector.broadcast %cst_23 : f32 to vector<8x384xf32>
    %52 = arith.addf %51, %50 : vector<8x384xf32>
    %53 = arith.divf %51, %52 : vector<8x384xf32>
    %54 = vector.extract_strided_slice %53 {offsets = [0, 0], sizes = [8, 128], strides = [1, 1]} : vector<8x384xf32> to vector<8x128xf32>
    %55 = vector.extract_strided_slice %53 {offsets = [0, 128], sizes = [8, 128], strides = [1, 1]} : vector<8x384xf32> to vector<8x128xf32>
    %56 = vector.extract_strided_slice %53 {offsets = [0, 256], sizes = [8, 128], strides = [1, 1]} : vector<8x384xf32> to vector<8x128xf32>
    %57 = vector.extract_strided_slice %47 {offsets = [0, 384], sizes = [8, 128], strides = [1, 1]} : vector<8x512xf32> to vector<8x128xf32>
    %58 = math.tanh %57 : vector<8x128xf32>
    %59 = arith.mulf %55, %33 : vector<8x128xf32>
    %60 = arith.mulf %54, %58 : vector<8x128xf32>
    %61 = arith.addf %59, %60 : vector<8x128xf32>
    %62 = math.tanh %61 : vector<8x128xf32>
    %63 = arith.mulf %56, %62 : vector<8x128xf32>
    %64 = arith.truncf %63 : vector<8x128xf32> to vector<8x128xbf16>
    %65 = arith.index_cast %40 : i32 to index
    %c0_24 = arith.constant 0 : index
    %66 = vector.load %arg13[%65, %c0_24] : memref<64x128xbf16, #tpu.memory_space<vmem>>, vector<8x128xbf16>
    tpu.vector_store %arg13[%65, %c0_24], %64 {strides = array<i32>} : memref<64x128xbf16, #tpu.memory_space<vmem>>, vector<8x128xbf16>,
    %c2_i32 = arith.constant 2 : i32
    %c8_i32_25 = arith.constant 8 : i32
    %67 = arith.muli %c2_i32, %c8_i32_25 : i32
    %68 = tpu.assume_multiple %67, 8 : i32
    %69 = arith.index_cast %68 : i32 to index
    %c0_26 = arith.constant 0 : index
    %70 = vector.load %arg12[%69, %c0_26] : memref<64x512xbf16, #tpu.memory_space<vmem>>, vector<8x512xbf16>
    %71 = arith.extf %70 : vector<8x512xbf16> to vector<8x512xf32>
    %72 = arith.truncf %63 : vector<8x128xf32> to vector<8x128xbf16>
    %c0_27 = arith.constant 0 : index
    %c0_28 = arith.constant 0 : index
    %73 = vector.load %arg5[%c0_27, %c0_28] : memref<128x512xbf16, #tpu.memory_space<vmem>>, vector<128x512xbf16>
    %cst_29 = arith.constant dense<0.000000e+00> : vector<8x512xf32>
    %74 = tpu.matmul %72, %73, %cst_29 {dimension_numbers = #tpu.dot_dimension_numbers<[1], [0], [0], [1], [0, 0, 1, 1], [], []>} : vector<8x128xbf16>, vector<128x512xbf16>, vector<8x512xf32> -> vector<8x512xf32>
    %75 = arith.addf %71, %74 : vector<8x512xf32>
    %76 = vector.extract_strided_slice %75 {offsets = [0, 0], sizes = [8, 384], strides = [1, 1]} : vector<8x512xf32> to vector<8x384xf32>
    %77 = arith.negf %76 : vector<8x384xf32>
    %78 = math.exp %77 : vector<8x384xf32>
    %cst_30 = arith.constant 1.000000e+00 : f32
    %79 = vector.broadcast %cst_30 : f32 to vector<8x384xf32>
    %80 = arith.addf %79, %78 : vector<8x384xf32>
    %81 = arith.divf %79, %80 : vector<8x384xf32>
    %82 = vector.extract_strided_slice %81 {offsets = [0, 0], sizes = [8, 128], strides = [1, 1]} : vector<8x384xf32> to vector<8x128xf32>
    %83 = vector.extract_strided_slice %81 {offsets = [0, 128], sizes = [8, 128], strides = [1, 1]} : vector<8x384xf32> to vector<8x128xf32>
    %84 = vector.extract_strided_slice %81 {offsets = [0, 256], sizes = [8, 128], strides = [1, 1]} : vector<8x384xf32> to vector<8x128xf32>
    %85 = vector.extract_strided_slice %75 {offsets = [0, 384], sizes = [8, 128], strides = [1, 1]} : vector<8x512xf32> to vector<8x128xf32>
    %86 = math.tanh %85 : vector<8x128xf32>
    %87 = arith.mulf %83, %61 : vector<8x128xf32>
    %88 = arith.mulf %82, %86 : vector<8x128xf32>
    %89 = arith.addf %87, %88 : vector<8x128xf32>
    %90 = math.tanh %89 : vector<8x128xf32>
    %91 = arith.mulf %84, %90 : vector<8x128xf32>
    %92 = arith.truncf %91 : vector<8x128xf32> to vector<8x128xbf16>
    %93 = arith.index_cast %68 : i32 to index
    %c0_31 = arith.constant 0 : index
    %94 = vector.load %arg13[%93, %c0_31] : memref<64x128xbf16, #tpu.memory_space<vmem>>, vector<8x128xbf16>
    tpu.vector_store %arg13[%93, %c0_31], %92 {strides = array<i32>} : memref<64x128xbf16, #tpu.memory_space<vmem>>, vector<8x128xbf16>,
    %c3_i32 = arith.constant 3 : i32
    %c8_i32_32 = arith.constant 8 : i32
    %95 = arith.muli %c3_i32, %c8_i32_32 : i32
    %96 = tpu.assume_multiple %95, 8 : i32
    %97 = arith.index_cast %96 : i32 to index
    %c0_33 = arith.constant 0 : index
    %98 = vector.load %arg12[%97, %c0_33] : memref<64x512xbf16, #tpu.memory_space<vmem>>, vector<8x512xbf16>
    %99 = arith.extf %98 : vector<8x512xbf16> to vector<8x512xf32>
    %100 = arith.truncf %91 : vector<8x128xf32> to vector<8x128xbf16>
    %c0_34 = arith.constant 0 : index
    %c0_35 = arith.constant 0 : index
    %101 = vector.load %arg5[%c0_34, %c0_35] : memref<128x512xbf16, #tpu.memory_space<vmem>>, vector<128x512xbf16>
    %cst_36 = arith.constant dense<0.000000e+00> : vector<8x512xf32>
    %102 = tpu.matmul %100, %101, %cst_36 {dimension_numbers = #tpu.dot_dimension_numbers<[1], [0], [0], [1], [0, 0, 1, 1], [], []>} : vector<8x128xbf16>, vector<128x512xbf16>, vector<8x512xf32> -> vector<8x512xf32>
    %103 = arith.addf %99, %102 : vector<8x512xf32>
    %104 = vector.extract_strided_slice %103 {offsets = [0, 0], sizes = [8, 384], strides = [1, 1]} : vector<8x512xf32> to vector<8x384xf32>
    %105 = arith.negf %104 : vector<8x384xf32>
    %106 = math.exp %105 : vector<8x384xf32>
    %cst_37 = arith.constant 1.000000e+00 : f32
    %107 = vector.broadcast %cst_37 : f32 to vector<8x384xf32>
    %108 = arith.addf %107, %106 : vector<8x384xf32>
    %109 = arith.divf %107, %108 : vector<8x384xf32>
    %110 = vector.extract_strided_slice %109 {offsets = [0, 0], sizes = [8, 128], strides = [1, 1]} : vector<8x384xf32> to vector<8x128xf32>
    %111 = vector.extract_strided_slice %109 {offsets = [0, 128], sizes = [8, 128], strides = [1, 1]} : vector<8x384xf32> to vector<8x128xf32>
    %112 = vector.extract_strided_slice %109 {offsets = [0, 256], sizes = [8, 128], strides = [1, 1]} : vector<8x384xf32> to vector<8x128xf32>
    %113 = vector.extract_strided_slice %103 {offsets = [0, 384], sizes = [8, 128], strides = [1, 1]} : vector<8x512xf32> to vector<8x128xf32>
    %114 = math.tanh %113 : vector<8x128xf32>
    %115 = arith.mulf %111, %89 : vector<8x128xf32>
    %116 = arith.mulf %110, %114 : vector<8x128xf32>
    %117 = arith.addf %115, %116 : vector<8x128xf32>
    %118 = math.tanh %117 : vector<8x128xf32>
    %119 = arith.mulf %112, %118 : vector<8x128xf32>
    %120 = arith.truncf %119 : vector<8x128xf32> to vector<8x128xbf16>
    %121 = arith.index_cast %96 : i32 to index
    %c0_38 = arith.constant 0 : index
    %122 = vector.load %arg13[%121, %c0_38] : memref<64x128xbf16, #tpu.memory_space<vmem>>, vector<8x128xbf16>
    tpu.vector_store %arg13[%121, %c0_38], %120 {strides = array<i32>} : memref<64x128xbf16, #tpu.memory_space<vmem>>, vector<8x128xbf16>,
    %c4_i32 = arith.constant 4 : i32
    %c8_i32_39 = arith.constant 8 : i32
    %123 = arith.muli %c4_i32, %c8_i32_39 : i32
    %124 = tpu.assume_multiple %123, 8 : i32
    %125 = arith.index_cast %124 : i32 to index
    %c0_40 = arith.constant 0 : index
    %126 = vector.load %arg12[%125, %c0_40] : memref<64x512xbf16, #tpu.memory_space<vmem>>, vector<8x512xbf16>
    %127 = arith.extf %126 : vector<8x512xbf16> to vector<8x512xf32>
    %128 = arith.truncf %119 : vector<8x128xf32> to vector<8x128xbf16>
    %c0_41 = arith.constant 0 : index
    %c0_42 = arith.constant 0 : index
    %129 = vector.load %arg5[%c0_41, %c0_42] : memref<128x512xbf16, #tpu.memory_space<vmem>>, vector<128x512xbf16>
    %cst_43 = arith.constant dense<0.000000e+00> : vector<8x512xf32>
    %130 = tpu.matmul %128, %129, %cst_43 {dimension_numbers = #tpu.dot_dimension_numbers<[1], [0], [0], [1], [0, 0, 1, 1], [], []>} : vector<8x128xbf16>, vector<128x512xbf16>, vector<8x512xf32> -> vector<8x512xf32>
    %131 = arith.addf %127, %130 : vector<8x512xf32>
    %132 = vector.extract_strided_slice %131 {offsets = [0, 0], sizes = [8, 384], strides = [1, 1]} : vector<8x512xf32> to vector<8x384xf32>
    %133 = arith.negf %132 : vector<8x384xf32>
    %134 = math.exp %133 : vector<8x384xf32>
    %cst_44 = arith.constant 1.000000e+00 : f32
    %135 = vector.broadcast %cst_44 : f32 to vector<8x384xf32>
    %136 = arith.addf %135, %134 : vector<8x384xf32>
    %137 = arith.divf %135, %136 : vector<8x384xf32>
    %138 = vector.extract_strided_slice %137 {offsets = [0, 0], sizes = [8, 128], strides = [1, 1]} : vector<8x384xf32> to vector<8x128xf32>
    %139 = vector.extract_strided_slice %137 {offsets = [0, 128], sizes = [8, 128], strides = [1, 1]} : vector<8x384xf32> to vector<8x128xf32>
    %140 = vector.extract_strided_slice %137 {offsets = [0, 256], sizes = [8, 128], strides = [1, 1]} : vector<8x384xf32> to vector<8x128xf32>
    %141 = vector.extract_strided_slice %131 {offsets = [0, 384], sizes = [8, 128], strides = [1, 1]} : vector<8x512xf32> to vector<8x128xf32>
    %142 = math.tanh %141 : vector<8x128xf32>
    %143 = arith.mulf %139, %117 : vector<8x128xf32>
    %144 = arith.mulf %138, %142 : vector<8x128xf32>
    %145 = arith.addf %143, %144 : vector<8x128xf32>
    %146 = math.tanh %145 : vector<8x128xf32>
    %147 = arith.mulf %140, %146 : vector<8x128xf32>
    %148 = arith.truncf %147 : vector<8x128xf32> to vector<8x128xbf16>
    %149 = arith.index_cast %124 : i32 to index
    %c0_45 = arith.constant 0 : index
    %150 = vector.load %arg13[%149, %c0_45] : memref<64x128xbf16, #tpu.memory_space<vmem>>, vector<8x128xbf16>
    tpu.vector_store %arg13[%149, %c0_45], %148 {strides = array<i32>} : memref<64x128xbf16, #tpu.memory_space<vmem>>, vector<8x128xbf16>,
    %c5_i32 = arith.constant 5 : i32
    %c8_i32_46 = arith.constant 8 : i32
    %151 = arith.muli %c5_i32, %c8_i32_46 : i32
    %152 = tpu.assume_multiple %151, 8 : i32
    %153 = arith.index_cast %152 : i32 to index
    %c0_47 = arith.constant 0 : index
    %154 = vector.load %arg12[%153, %c0_47] : memref<64x512xbf16, #tpu.memory_space<vmem>>, vector<8x512xbf16>
    %155 = arith.extf %154 : vector<8x512xbf16> to vector<8x512xf32>
    %156 = arith.truncf %147 : vector<8x128xf32> to vector<8x128xbf16>
    %c0_48 = arith.constant 0 : index
    %c0_49 = arith.constant 0 : index
    %157 = vector.load %arg5[%c0_48, %c0_49] : memref<128x512xbf16, #tpu.memory_space<vmem>>, vector<128x512xbf16>
    %cst_50 = arith.constant dense<0.000000e+00> : vector<8x512xf32>
    %158 = tpu.matmul %156, %157, %cst_50 {dimension_numbers = #tpu.dot_dimension_numbers<[1], [0], [0], [1], [0, 0, 1, 1], [], []>} : vector<8x128xbf16>, vector<128x512xbf16>, vector<8x512xf32> -> vector<8x512xf32>
    %159 = arith.addf %155, %158 : vector<8x512xf32>
    %160 = vector.extract_strided_slice %159 {offsets = [0, 0], sizes = [8, 384], strides = [1, 1]} : vector<8x512xf32> to vector<8x384xf32>
    %161 = arith.negf %160 : vector<8x384xf32>
    %162 = math.exp %161 : vector<8x384xf32>
    %cst_51 = arith.constant 1.000000e+00 : f32
    %163 = vector.broadcast %cst_51 : f32 to vector<8x384xf32>
    %164 = arith.addf %163, %162 : vector<8x384xf32>
    %165 = arith.divf %163, %164 : vector<8x384xf32>
    %166 = vector.extract_strided_slice %165 {offsets = [0, 0], sizes = [8, 128], strides = [1, 1]} : vector<8x384xf32> to vector<8x128xf32>
    %167 = vector.extract_strided_slice %165 {offsets = [0, 128], sizes = [8, 128], strides = [1, 1]} : vector<8x384xf32> to vector<8x128xf32>
    %168 = vector.extract_strided_slice %165 {offsets = [0, 256], sizes = [8, 128], strides = [1, 1]} : vector<8x384xf32> to vector<8x128xf32>
    %169 = vector.extract_strided_slice %159 {offsets = [0, 384], sizes = [8, 128], strides = [1, 1]} : vector<8x512xf32> to vector<8x128xf32>
    %170 = math.tanh %169 : vector<8x128xf32>
    %171 = arith.mulf %167, %145 : vector<8x128xf32>
    %172 = arith.mulf %166, %170 : vector<8x128xf32>
    %173 = arith.addf %171, %172 : vector<8x128xf32>
    %174 = math.tanh %173 : vector<8x128xf32>
    %175 = arith.mulf %168, %174 : vector<8x128xf32>
    %176 = arith.truncf %175 : vector<8x128xf32> to vector<8x128xbf16>
    %177 = arith.index_cast %152 : i32 to index
    %c0_52 = arith.constant 0 : index
    %178 = vector.load %arg13[%177, %c0_52] : memref<64x128xbf16, #tpu.memory_space<vmem>>, vector<8x128xbf16>
    tpu.vector_store %arg13[%177, %c0_52], %176 {strides = array<i32>} : memref<64x128xbf16, #tpu.memory_space<vmem>>, vector<8x128xbf16>,
    %c6_i32 = arith.constant 6 : i32
    %c8_i32_53 = arith.constant 8 : i32
    %179 = arith.muli %c6_i32, %c8_i32_53 : i32
    %180 = tpu.assume_multiple %179, 8 : i32
    %181 = arith.index_cast %180 : i32 to index
    %c0_54 = arith.constant 0 : index
    %182 = vector.load %arg12[%181, %c0_54] : memref<64x512xbf16, #tpu.memory_space<vmem>>, vector<8x512xbf16>
    %183 = arith.extf %182 : vector<8x512xbf16> to vector<8x512xf32>
    %184 = arith.truncf %175 : vector<8x128xf32> to vector<8x128xbf16>
    %c0_55 = arith.constant 0 : index
    %c0_56 = arith.constant 0 : index
    %185 = vector.load %arg5[%c0_55, %c0_56] : memref<128x512xbf16, #tpu.memory_space<vmem>>, vector<128x512xbf16>
    %cst_57 = arith.constant dense<0.000000e+00> : vector<8x512xf32>
    %186 = tpu.matmul %184, %185, %cst_57 {dimension_numbers = #tpu.dot_dimension_numbers<[1], [0], [0], [1], [0, 0, 1, 1], [], []>} : vector<8x128xbf16>, vector<128x512xbf16>, vector<8x512xf32> -> vector<8x512xf32>
    %187 = arith.addf %183, %186 : vector<8x512xf32>
    %188 = vector.extract_strided_slice %187 {offsets = [0, 0], sizes = [8, 384], strides = [1, 1]} : vector<8x512xf32> to vector<8x384xf32>
    %189 = arith.negf %188 : vector<8x384xf32>
    %190 = math.exp %189 : vector<8x384xf32>
    %cst_58 = arith.constant 1.000000e+00 : f32
    %191 = vector.broadcast %cst_58 : f32 to vector<8x384xf32>
    %192 = arith.addf %191, %190 : vector<8x384xf32>
    %193 = arith.divf %191, %192 : vector<8x384xf32>
    %194 = vector.extract_strided_slice %193 {offsets = [0, 0], sizes = [8, 128], strides = [1, 1]} : vector<8x384xf32> to vector<8x128xf32>
    %195 = vector.extract_strided_slice %193 {offsets = [0, 128], sizes = [8, 128], strides = [1, 1]} : vector<8x384xf32> to vector<8x128xf32>
    %196 = vector.extract_strided_slice %193 {offsets = [0, 256], sizes = [8, 128], strides = [1, 1]} : vector<8x384xf32> to vector<8x128xf32>
    %197 = vector.extract_strided_slice %187 {offsets = [0, 384], sizes = [8, 128], strides = [1, 1]} : vector<8x512xf32> to vector<8x128xf32>
    %198 = math.tanh %197 : vector<8x128xf32>
    %199 = arith.mulf %195, %173 : vector<8x128xf32>
    %200 = arith.mulf %194, %198 : vector<8x128xf32>
    %201 = arith.addf %199, %200 : vector<8x128xf32>
    %202 = math.tanh %201 : vector<8x128xf32>
    %203 = arith.mulf %196, %202 : vector<8x128xf32>
    %204 = arith.truncf %203 : vector<8x128xf32> to vector<8x128xbf16>
    %205 = arith.index_cast %180 : i32 to index
    %c0_59 = arith.constant 0 : index
    %206 = vector.load %arg13[%205, %c0_59] : memref<64x128xbf16, #tpu.memory_space<vmem>>, vector<8x128xbf16>
    tpu.vector_store %arg13[%205, %c0_59], %204 {strides = array<i32>} : memref<64x128xbf16, #tpu.memory_space<vmem>>, vector<8x128xbf16>,
    %c7_i32 = arith.constant 7 : i32
    %c8_i32_60 = arith.constant 8 : i32
    %207 = arith.muli %c7_i32, %c8_i32_60 : i32
    %208 = tpu.assume_multiple %207, 8 : i32
    %209 = arith.index_cast %208 : i32 to index
    %c0_61 = arith.constant 0 : index
    %210 = vector.load %arg12[%209, %c0_61] : memref<64x512xbf16, #tpu.memory_space<vmem>>, vector<8x512xbf16>
    %211 = arith.extf %210 : vector<8x512xbf16> to vector<8x512xf32>
    %212 = arith.truncf %203 : vector<8x128xf32> to vector<8x128xbf16>
    %c0_62 = arith.constant 0 : index
    %c0_63 = arith.constant 0 : index
    %213 = vector.load %arg5[%c0_62, %c0_63] : memref<128x512xbf16, #tpu.memory_space<vmem>>, vector<128x512xbf16>
    %cst_64 = arith.constant dense<0.000000e+00> : vector<8x512xf32>
    %214 = tpu.matmul %212, %213, %cst_64 {dimension_numbers = #tpu.dot_dimension_numbers<[1], [0], [0], [1], [0, 0, 1, 1], [], []>} : vector<8x128xbf16>, vector<128x512xbf16>, vector<8x512xf32> -> vector<8x512xf32>
    %215 = arith.addf %211, %214 : vector<8x512xf32>
    %216 = vector.extract_strided_slice %215 {offsets = [0, 0], sizes = [8, 384], strides = [1, 1]} : vector<8x512xf32> to vector<8x384xf32>
    %217 = arith.negf %216 : vector<8x384xf32>
    %218 = math.exp %217 : vector<8x384xf32>
    %cst_65 = arith.constant 1.000000e+00 : f32
    %219 = vector.broadcast %cst_65 : f32 to vector<8x384xf32>
    %220 = arith.addf %219, %218 : vector<8x384xf32>
    %221 = arith.divf %219, %220 : vector<8x384xf32>
    %222 = vector.extract_strided_slice %221 {offsets = [0, 0], sizes = [8, 128], strides = [1, 1]} : vector<8x384xf32> to vector<8x128xf32>
    %223 = vector.extract_strided_slice %221 {offsets = [0, 128], sizes = [8, 128], strides = [1, 1]} : vector<8x384xf32> to vector<8x128xf32>
    %224 = vector.extract_strided_slice %221 {offsets = [0, 256], sizes = [8, 128], strides = [1, 1]} : vector<8x384xf32> to vector<8x128xf32>
    %225 = vector.extract_strided_slice %215 {offsets = [0, 384], sizes = [8, 128], strides = [1, 1]} : vector<8x512xf32> to vector<8x128xf32>
    %226 = math.tanh %225 : vector<8x128xf32>
    %227 = arith.mulf %223, %201 : vector<8x128xf32>
    %228 = arith.mulf %222, %226 : vector<8x128xf32>
    %229 = arith.addf %227, %228 : vector<8x128xf32>
    %230 = math.tanh %229 : vector<8x128xf32>
    %231 = arith.mulf %224, %230 : vector<8x128xf32>
    %232 = arith.truncf %231 : vector<8x128xf32> to vector<8x128xbf16>
    %233 = arith.index_cast %208 : i32 to index
    %c0_66 = arith.constant 0 : index
    %234 = vector.load %arg13[%233, %c0_66] : memref<64x128xbf16, #tpu.memory_space<vmem>>, vector<8x128xbf16>
    tpu.vector_store %arg13[%233, %c0_66], %232 {strides = array<i32>} : memref<64x128xbf16, #tpu.memory_space<vmem>>, vector<8x128xbf16>,
    %c8_i32_67 = arith.constant 8 : i32
    %c0_68 = arith.constant 0 : index
    %c0_69 = arith.constant 0 : index
    %235 = vector.load %arg13[%c0_68, %c0_69] : memref<64x128xbf16, #tpu.memory_space<vmem>>, vector<64x128xbf16>
    %c0_70 = arith.constant 0 : index
    %c0_71 = arith.constant 0 : index
    %236 = vector.load %arg7[%c0_70, %c0_71] : memref<128x128xbf16, #tpu.memory_space<vmem>>, vector<128x128xbf16>
    %cst_72 = arith.constant dense<0.000000e+00> : vector<64x128xf32>
    %237 = tpu.matmul %235, %236, %cst_72 {dimension_numbers = #tpu.dot_dimension_numbers<[1], [0], [0], [1], [0, 0, 1, 1], [], []>} : vector<64x128xbf16>, vector<128x128xbf16>, vector<64x128xf32> -> vector<64x128xf32>
    %c0_73 = arith.constant 0 : index
    %c0_74 = arith.constant 0 : index
    %238 = vector.load %arg8[%c0_73, %c0_74] : memref<1x128xf32, #tpu.memory_space<vmem>>, vector<1x128xf32>
    %239 = vector.broadcast %238 : vector<1x128xf32> to vector<64x128xf32>
    %240 = arith.addf %237, %239 : vector<64x128xf32>
    %c0_75 = arith.constant 0 : index
    %c0_76 = arith.constant 0 : index
    %c0_77 = arith.constant 0 : index
    %241 = vector.load %arg9[%c0_75, %c0_76, %c0_77] : memref<1x64x128xf32, #tpu.memory_space<vmem>>, vector<1x64x128xf32>
    %242 = vector.shape_cast %241 : vector<1x64x128xf32> to vector<64x128xf32>
    %243 = vector.shape_cast %240 : vector<64x128xf32> to vector<1x64x128xf32>
    tpu.vector_store %arg9[%c0_75, %c0_76, %c0_77], %243 {strides = array<i32>} : memref<1x64x128xf32, #tpu.memory_space<vmem>>, vector<1x64x128xf32>,
    %c0_78 = arith.constant 0 : index
    %c0_79 = arith.constant 0 : index
    %244 = vector.load %arg10[%c0_78, %c0_79] : memref<8x128xf32, #tpu.memory_space<vmem>>, vector<8x128xf32>
    tpu.vector_store %arg10[%c0_78, %c0_79], %231 {strides = array<i32>} : memref<8x128xf32, #tpu.memory_space<vmem>>, vector<8x128xf32>,
    %c0_80 = arith.constant 0 : index
    %c0_81 = arith.constant 0 : index
    %245 = vector.load %arg11[%c0_80, %c0_81] : memref<8x128xf32, #tpu.memory_space<vmem>>, vector<8x128xf32>
    tpu.vector_store %arg11[%c0_80, %c0_81], %229 {strides = array<i32>} : memref<8x128xf32, #tpu.memory_space<vmem>>, vector<8x128xf32>,
    return
  }
  func.func @transform_0(%arg0: i32) -> (i32, i32, i32) {
    %c0_i32 = arith.constant 0 : i32
    %c0_i32_0 = arith.constant 0 : i32
    %c0_i32_1 = arith.constant 0 : i32
    return %arg0, %c0_i32, %c0_i32_0 : i32, i32, i32
  }
  func.func @transform_1(%arg0: i32) -> (i32, i32) {
    %c0_i32 = arith.constant 0 : i32
    %c0_i32_0 = arith.constant 0 : i32
    return %arg0, %c0_i32 : i32, i32
  }
  func.func @transform_2(%arg0: i32) -> (i32, i32) {
    %c0_i32 = arith.constant 0 : i32
    %c0_i32_0 = arith.constant 0 : i32
    return %arg0, %c0_i32 : i32, i32
  }
  func.func @transform_3(%arg0: i32) -> (i32, i32) {
    %c0_i32 = arith.constant 0 : i32
    %c0_i32_0 = arith.constant 0 : i32
    %c0_i32_1 = arith.constant 0 : i32
    return %c0_i32, %c0_i32_0 : i32, i32
  }
  func.func @transform_4(%arg0: i32) -> (i32, i32) {
    %c0_i32 = arith.constant 0 : i32
    %c0_i32_0 = arith.constant 0 : i32
    %c0_i32_1 = arith.constant 0 : i32
    return %c0_i32, %c0_i32_0 : i32, i32
  }
  func.func @transform_5(%arg0: i32) -> (i32, i32) {
    %c0_i32 = arith.constant 0 : i32
    %c0_i32_0 = arith.constant 0 : i32
    %c0_i32_1 = arith.constant 0 : i32
    return %c0_i32, %c0_i32_0 : i32, i32
  }
  func.func @transform_6(%arg0: i32) -> (i32, i32) {
    %c0_i32 = arith.constant 0 : i32
    %c0_i32_0 = arith.constant 0 : i32
    %c0_i32_1 = arith.constant 0 : i32
    return %c0_i32, %c0_i32_0 : i32, i32
  }
  func.func @transform_7(%arg0: i32) -> (i32, i32) {
    %c0_i32 = arith.constant 0 : i32
    %c0_i32_0 = arith.constant 0 : i32
    %c0_i32_1 = arith.constant 0 : i32
    return %c0_i32, %c0_i32_0 : i32, i32
  }
  func.func @transform_8(%arg0: i32) -> (i32, i32, i32) {
    %c0_i32 = arith.constant 0 : i32
    %c0_i32_0 = arith.constant 0 : i32
    %c0_i32_1 = arith.constant 0 : i32
    return %arg0, %c0_i32, %c0_i32_0 : i32, i32, i32
  }
  func.func @transform_9(%arg0: i32) -> (i32, i32) {
    %c0_i32 = arith.constant 0 : i32
    %c0_i32_0 = arith.constant 0 : i32
    return %arg0, %c0_i32 : i32, i32
  }
  func.func @transform_10(%arg0: i32) -> (i32, i32) {
    %c0_i32 = arith.constant 0 : i32
    %c0_i32_0 = arith.constant 0 : i32
    return %arg0, %c0_i32 : i32, i32
  }
}

</mosaic_0001>

<llo_original>
// kernel: char_decoder_forward.1
$region0: #{char_decoder_forward.1}
  #allocation0 [shape = 'u32[]', space=smem, size = 0x4, offset = 0x4, fixed_abs, tag = 'smem constant byte address 0x4 - core index']
  #allocation1 [shape = 'u32[144,128]{1,0:T(1,128)}', space=vmem, size = 0x12000, scoped, tag = 'internal scratch']
  #allocation2 [shape = 'bf16[64,512]{1,0:T(8,128)(2,1)}', space=vmem, size = 0x10000, scoped, tag = 'scratch operand']
  #allocation3 [shape = 'bf16[64,128]{1,0:T(8,128)(2,1)}', space=vmem, size = 0x4000, scoped, tag = 'scratch operand']
  %s0 = inlined_call_operand.vmem [shape: bf16[1,64,32], index: 0, kind: input, shape index: {}]
  %s1 = inlined_call_operand.vmem [shape: f32[8,128], index: 1, kind: input, shape index: {}]
  %s2 = inlined_call_operand.vmem [shape: f32[8,128], index: 2, kind: input, shape index: {}]
  %s3 = inlined_call_operand.vmem [shape: bf16[32,512], index: 3, kind: input, shape index: {}]
  %s4 = inlined_call_operand.vmem [shape: bf16[128,512], index: 4, kind: input, shape index: {}]
  %s5 = inlined_call_operand.vmem [shape: f32[1,512], index: 5, kind: input, shape index: {}]
  %s6 = inlined_call_operand.vmem [shape: bf16[128,128], index: 6, kind: input, shape index: {}]
  %s7 = inlined_call_operand.vmem [shape: f32[1,128], index: 7, kind: input, shape index: {}]
  %s8 = inlined_call_operand.vmem [shape: f32[1,64,128], index: 8, kind: output, shape index: {0}]
  %s9 = inlined_call_operand.vmem [shape: f32[8,128], index: 9, kind: output, shape index: {1}]
  %s10 = inlined_call_operand.vmem [shape: f32[8,128], index: 10, kind: output, shape index: {2}]
  %11 = xla_tuple %s8, %s9, %s10
  %s12 = sld [smem:[#allocation0]]
  $region58: #{char_decoder_forward.1} parent=0
    _
  %s14 = ssub.s32 1, %s12
  %s15 = scalar_select 0, %s14, %s12
  // Predicated region
  $region2: #{char_decoder_forward.1} parent=0 // pred_check
    _
  $region3: #{char_decoder_forward.1} parent=0 // pred_check_branch
    %17 = sbr.rel (0) target = $region5
  $region4: #{char_decoder_forward.1} parent=0 // pred_region
    _
  $region5: #{char_decoder_forward.1} parent=0 // pred_fallthru
    _
  // Predicated region
  $region6: #{char_decoder_forward.1} parent=0 // pred_check
    _
  $region7: #{char_decoder_forward.1} parent=0 // pred_check_branch
    %19 = sbr.rel (0) target = $region9
  $region8: #{char_decoder_forward.1} parent=0 // pred_region
    _
  $region9: #{char_decoder_forward.1} parent=0 // pred_fallthru
    _
  // Predicated region
  $region10: #{char_decoder_forward.1} parent=0 // pred_check
    _
  $region11: #{char_decoder_forward.1} parent=0 // pred_check_branch
    %21 = sbr.rel (0) target = $region13
  $region12: #{char_decoder_forward.1} parent=0 // pred_region
    _
  $region13: #{char_decoder_forward.1} parent=0 // pred_fallthru
    _
  // Predicated region
  $region14: #{char_decoder_forward.1} parent=0 // pred_check
    _
  $region15: #{char_decoder_forward.1} parent=0 // pred_check_branch
    %23 = sbr.rel (0) target = $region17
  $region16: #{char_decoder_forward.1} parent=0 // pred_region
    _
  $region17: #{char_decoder_forward.1} parent=0 // pred_fallthru
    _
  // Predicated region
  $region18: #{char_decoder_forward.1} parent=0 // pred_check
    _
  $region19: #{char_decoder_forward.1} parent=0 // pred_check_branch
    %25 = sbr.rel (0) target = $region21
  $region20: #{char_decoder_forward.1} parent=0 // pred_region
    _
  $region21: #{char_decoder_forward.1} parent=0 // pred_fallthru
    _
  // Predicated region
  $region22: #{char_decoder_forward.1} parent=0 // pred_check
    _
  $region23: #{char_decoder_forward.1} parent=0 // pred_check_branch
    %27 = sbr.rel (0) target = $region25
  $region24: #{char_decoder_forward.1} parent=0 // pred_region
    _
  $region25: #{char_decoder_forward.1} parent=0 // pred_fallthru
    _
  // Predicated region
  $region26: #{char_decoder_forward.1} parent=0 // pred_check
    _
  $region27: #{char_decoder_forward.1} parent=0 // pred_check_branch
    %29 = sbr.rel (0) target = $region29
  $region28: #{char_decoder_forward.1} parent=0 // pred_region
    _
  $region29: #{char_decoder_forward.1} parent=0 // pred_fallthru
    _
  // Predicated region
  $region30: #{char_decoder_forward.1} parent=0 // pred_check
    _
  $region31: #{char_decoder_forward.1} parent=0 // pred_check_branch
    %31 = sbr.rel (0) target = $region33
  $region32: #{char_decoder_forward.1} parent=0 // pred_region
    _
  $region33: #{char_decoder_forward.1} parent=0 // pred_fallthru
    _
  %v33 = vld [vmem:[%s0] sm:$0xf]
  %v34 = vld [vmem:[%s0 + $0x4] sm:$0xf]
  %v35 = vld [vmem:[%s0 + $0x8] sm:$0xf]
  %v36 = vld [vmem:[%s0 + $0xc] sm:$0xf]
  %v37 = vld [vmem:[%s0 + $0x10] sm:$0xf]
  %v38 = vld [vmem:[%s0 + $0x14] sm:$0xf]
  %v39 = vld [vmem:[%s0 + $0x18] sm:$0xf]
  %v40 = vld [vmem:[%s0 + $0x1c] sm:$0xf]
  %v41 = vld [vmem:[%s3] sm:$0xff]
  %v42 = vld [vmem:[%s3 + $0x8] sm:$0xff]
  %v43 = vld [vmem:[%s3 + $0x10] sm:$0xff]
  %v44 = vld [vmem:[%s3 + $0x18] sm:$0xff]
  %v45 = vld [vmem:[%s3 + $0x20] sm:$0xff]
  %v46 = vld [vmem:[%s3 + $0x28] sm:$0xff]
  %v47 = vld [vmem:[%s3 + $0x30] sm:$0xff]
  %v48 = vld [vmem:[%s3 + $0x38] sm:$0xff]
  %v49 = vld [vmem:[%s5] sm:$0xf]
  %v51 = vlaneseq
  %v52 = vshrl.u32 %v51, 7
  %v53 = vsub.s32 0, %v52
  %v54 = vrot.slane %v49, %v53
  %v55 = vlaneseq
  %v56 = vshrl.u32 %v55, 7
  %v57 = vsub.s32 1, %v56
  %v58 = vrot.slane %v49, %v57
  %v59 = vlaneseq
  %v60 = vshrl.u32 %v59, 7
  %v61 = vsub.s32 2, %v60
  %v62 = vrot.slane %v49, %v61
  %v63 = vlaneseq
  %v64 = vshrl.u32 %v63, 7
  %v65 = vsub.s32 3, %v64
  %v66 = vrot.slane %v49, %v65
  %v79 = vunpack.c.l.b16 %v33
  %v80 = vunpack.c.l.b16 %v34
  %v81 = vunpack.c.l.b16 %v35
  %v82 = vunpack.c.l.b16 %v36
  %v83 = vunpack.c.l.b16 %v37
  %v84 = vunpack.c.l.b16 %v38
  %v85 = vunpack.c.l.b16 %v39
  %v86 = vunpack.c.l.b16 %v40
  %v87 = vpack.c.b16 %v80, %v79
  %v88 = vpack.c.b16 %v82, %v81
  %v89 = vpack.c.b16 %v84, %v83
  %v90 = vpack.c.b16 %v86, %v85
  %v99 = vunpack.c.l.b16 %v41
  %v100 = vunpack.c.h.b16 %v41
  %v101 = vunpack.c.l.b16 %v42
  %v102 = vunpack.c.h.b16 %v42
  %v103 = vunpack.c.l.b16 %v43
  %v104 = vunpack.c.h.b16 %v43
  %v105 = vunpack.c.l.b16 %v44
  %v106 = vunpack.c.h.b16 %v44
  %v107 = vunpack.c.l.b16 %v45
  %v108 = vunpack.c.h.b16 %v45
  %v109 = vunpack.c.l.b16 %v46
  %v110 = vunpack.c.h.b16 %v46
  %v111 = vunpack.c.l.b16 %v47
  %v112 = vunpack.c.h.b16 %v47
  %v113 = vunpack.c.l.b16 %v48
  %v114 = vunpack.c.h.b16 %v48
  %v115 = vpack.c.b16 %v103, %v99
  %v116 = vpack.c.b16 %v104, %v100
  %v117 = vpack.c.b16 %v105, %v101
  %v118 = vpack.c.b16 %v106, %v102
  %v119 = vpack.c.b16 %v111, %v107
  %v120 = vpack.c.b16 %v112, %v108
  %v121 = vpack.c.b16 %v113, %v109
  %v122 = vpack.c.b16 %v114, %v110
  %vm131 = vcmask 261120
  %v133 = vsel %vm131, %v87, 0
  %v136 = vsel %vm131, %v88, 0
  %v139 = vsel %vm131, %v89, 0
  %v142 = vsel %vm131, %v90, 0
  %144 = vmatprep.subr.bf16.mxu0 0
  %145 = vmatpush1.bf16.msra.mxu0 0
  %146 = vmatprep.subr.bf16.mxu0 0
  %147 = vmatpush1.bf16.msra.mxu0 0
  %148 = vmatprep.subr.bf16.mxu0 0
  %149 = vmatpush1.bf16.msra.mxu0 0
  %150 = vmatprep.subr.bf16.mxu0 0
  %151 = vmatpush1.bf16.msra.mxu0 0
  %152 = vmatprep.subr.bf16.mxu0 0
  %153 = vmatpush1.bf16.msra.mxu0 0
  %154 = vmatprep.subr.bf16.mxu0 0
  %155 = vmatpush1.bf16.msra.mxu0 0
  %156 = vmatprep.subr.bf16.mxu0 %v120
  %157 = vmatpush1.bf16.msra.mxu0 %v119
  %158 = vmatprep.subr.bf16.mxu0 %v116
  %159 = vmatpush1.bf16.msra.mxu0 %v115
  %160 = vmatprep.subr.bf16.mxu0 0
  %161 = vmatpush2.bf16.msra.mxu0 0
  %162 = vmatprep.subr.bf16.mxu0 0
  %163 = vmatpush2.bf16.msra.mxu0 0
  %164 = vmatprep.subr.bf16.mxu0 0
  %165 = vmatpush2.bf16.msra.mxu0 0
  %166 = vmatprep.subr.bf16.mxu0 0
  %167 = vmatpush2.bf16.msra.mxu0 0
  %168 = vmatprep.subr.bf16.mxu0 0
  %169 = vmatpush2.bf16.msra.mxu0 0
  %170 = vmatprep.subr.bf16.mxu0 0
  %171 = vmatpush2.bf16.msra.mxu0 0
  %172 = vmatprep.subr.bf16.mxu0 0
  %173 = vmatpush2.bf16.msra.mxu0 0
  %174 = vmatprep.subr.bf16.mxu0 0
  %175 = vmatpush2.bf16.msra.mxu0 0
  %176 = vmatprep.mubr.bf16.mxu0 0
  %177 = vmatmul.mubr.bf16.gmra.mxu0 %v133
  %v178 = vpop.f32.mrf.mxu0
  %v179 = vadd.f32 %v54, %v178
  %v180 = vpop.f32.mrf.mxu0
  %v181 = vadd.f32 %v58, %v180
  %v182 = vpop.f32.mrf.mxu0
  %v183 = vadd.f32 %v54, %v182
  %v184 = vpop.f32.mrf.mxu0
  %v185 = vadd.f32 %v58, %v184
  %186 = vmatprep.mubr.bf16.mxu0 0
  %187 = vmatmul.mubr.bf16.gmra.mxu0 %v136
  %v188 = vpop.f32.mrf.mxu0
  %v189 = vadd.f32 %v54, %v188
  %v190 = vpop.f32.mrf.mxu0
  %v191 = vadd.f32 %v58, %v190
  %v192 = vpop.f32.mrf.mxu0
  %v193 = vadd.f32 %v54, %v192
  %v194 = vpop.f32.mrf.mxu0
  %v195 = vadd.f32 %v58, %v194
  %196 = vmatprep.mubr.bf16.mxu0 0
  %197 = vmatmul.mubr.bf16.gmra.mxu0 %v139
  %v198 = vpop.f32.mrf.mxu0
  %v199 = vadd.f32 %v54, %v198
  %v200 = vpop.f32.mrf.mxu0
  %v201 = vadd.f32 %v58, %v200
  %v202 = vpop.f32.mrf.mxu0
  %v203 = vadd.f32 %v54, %v202
  %v204 = vpop.f32.mrf.mxu0
  %v205 = vadd.f32 %v58, %v204
  %206 = vmatprep.mubr.bf16.mxu0 0
  %207 = vmatmul.mubr.bf16.gmra.mxu0 %v142
  %v208 = vpop.f32.mrf.mxu0
  %v209 = vadd.f32 %v54, %v208
  %v210 = vpop.f32.mrf.mxu0
  %v211 = vadd.f32 %v58, %v210
  %v212 = vpop.f32.mrf.mxu0
  %v213 = vadd.f32 %v54, %v212
  %v214 = vpop.f32.mrf.mxu0
  %v215 = vadd.f32 %v58, %v214
  %216 = vdwg.mxu0
  %217 = vmatprep.subr.bf16.mxu0 0
  %218 = vmatpush1.bf16.msra.mxu0 0
  %219 = vmatprep.subr.bf16.mxu0 0
  %220 = vmatpush1.bf16.msra.mxu0 0
  %221 = vmatprep.subr.bf16.mxu0 0
  %222 = vmatpush1.bf16.msra.mxu0 0
  %223 = vmatprep.subr.bf16.mxu0 0
  %224 = vmatpush1.bf16.msra.mxu0 0
  %225 = vmatprep.subr.bf16.mxu0 0
  %226 = vmatpush1.bf16.msra.mxu0 0
  %227 = vmatprep.subr.bf16.mxu0 0
  %228 = vmatpush1.bf16.msra.mxu0 0
  %229 = vmatprep.subr.bf16.mxu0 %v122
  %230 = vmatpush1.bf16.msra.mxu0 %v121
  %231 = vmatprep.subr.bf16.mxu0 %v118
  %232 = vmatpush1.bf16.msra.mxu0 %v117
  %233 = vmatprep.subr.bf16.mxu0 0
  %234 = vmatpush2.bf16.msra.mxu0 0
  %235 = vmatprep.subr.bf16.mxu0 0
  %236 = vmatpush2.bf16.msra.mxu0 0
  %237 = vmatprep.subr.bf16.mxu0 0
  %238 = vmatpush2.bf16.msra.mxu0 0
  %239 = vmatprep.subr.bf16.mxu0 0
  %240 = vmatpush2.bf16.msra.mxu0 0
  %241 = vmatprep.subr.bf16.mxu0 0
  %242 = vmatpush2.bf16.msra.mxu0 0
  %243 = vmatprep.subr.bf16.mxu0 0
  %244 = vmatpush2.bf16.msra.mxu0 0
  %245 = vmatprep.subr.bf16.mxu0 0
  %246 = vmatpush2.bf16.msra.mxu0 0
  %247 = vmatprep.subr.bf16.mxu0 0
  %248 = vmatpush2.bf16.msra.mxu0 0
  %249 = vmatprep.mubr.bf16.mxu0 0
  %250 = vmatmul.mubr.bf16.gmra.mxu0 %v133
  %v251 = vpop.f32.mrf.mxu0
  %v252 = vadd.f32 %v62, %v251
  %v253 = vpop.f32.mrf.mxu0
  %v254 = vadd.f32 %v66, %v253
  %v255 = vpop.f32.mrf.mxu0
  %v256 = vadd.f32 %v62, %v255
  %v257 = vpop.f32.mrf.mxu0
  %v258 = vadd.f32 %v66, %v257
  %259 = vmatprep.mubr.bf16.mxu0 0
  %260 = vmatmul.mubr.bf16.gmra.mxu0 %v136
  %v261 = vpop.f32.mrf.mxu0
  %v262 = vadd.f32 %v62, %v261
  %v263 = vpop.f32.mrf.mxu0
  %v264 = vadd.f32 %v66, %v263
  %v265 = vpop.f32.mrf.mxu0
  %v266 = vadd.f32 %v62, %v265
  %v267 = vpop.f32.mrf.mxu0
  %v268 = vadd.f32 %v66, %v267
  %269 = vmatprep.mubr.bf16.mxu0 0
  %270 = vmatmul.mubr.bf16.gmra.mxu0 %v139
  %v271 = vpop.f32.mrf.mxu0
  %v272 = vadd.f32 %v62, %v271
  %v273 = vpop.f32.mrf.mxu0
  %v274 = vadd.f32 %v66, %v273
  %v275 = vpop.f32.mrf.mxu0
  %v276 = vadd.f32 %v62, %v275
  %v277 = vpop.f32.mrf.mxu0
  %v278 = vadd.f32 %v66, %v277
  %279 = vmatprep.mubr.bf16.mxu0 0
  %280 = vmatmul.mubr.bf16.gmra.mxu0 %v142
  %v281 = vpop.f32.mrf.mxu0
  %v282 = vadd.f32 %v62, %v281
  %v283 = vpop.f32.mrf.mxu0
  %v284 = vadd.f32 %v66, %v283
  %v285 = vpop.f32.mrf.mxu0
  %v286 = vadd.f32 %v62, %v285
  %v287 = vpop.f32.mrf.mxu0
  %v288 = vadd.f32 %v66, %v287
  %289 = vdwg.mxu0
  %v290 = vpack.c.bf16 %v183, %v179
  %v291 = vpack.c.bf16 %v185, %v181
  %v292 = vpack.c.bf16 %v256, %v252
  %v293 = vpack.c.bf16 %v258, %v254
  %v294 = vpack.c.bf16 %v193, %v189
  %v295 = vpack.c.bf16 %v195, %v191
  %v296 = vpack.c.bf16 %v266, %v262
  %v297 = vpack.c.bf16 %v268, %v264
  %v298 = vpack.c.bf16 %v203, %v199
  %v299 = vpack.c.bf16 %v205, %v201
  %v300 = vpack.c.bf16 %v276, %v272
  %v301 = vpack.c.bf16 %v278, %v274
  %v302 = vpack.c.bf16 %v213, %v209
  %v303 = vpack.c.bf16 %v215, %v211
  %v304 = vpack.c.bf16 %v286, %v282
  %v305 = vpack.c.bf16 %v288, %v284
  %v322 = vunpack.c.l.b16 %v290
  %v323 = vunpack.c.l.b16 %v291
  %v324 = vunpack.c.l.b16 %v292
  %v325 = vunpack.c.l.b16 %v293
  %v326 = vunpack.c.h.b16 %v290
  %v327 = vunpack.c.h.b16 %v291
  %v328 = vunpack.c.h.b16 %v292
  %v329 = vunpack.c.h.b16 %v293
  %v330 = vunpack.c.l.b16 %v294
  %v331 = vunpack.c.l.b16 %v295
  %v332 = vunpack.c.l.b16 %v296
  %v333 = vunpack.c.l.b16 %v297
  %v334 = vunpack.c.h.b16 %v294
  %v335 = vunpack.c.h.b16 %v295
  %v336 = vunpack.c.h.b16 %v296
  %v337 = vunpack.c.h.b16 %v297
  %v338 = vunpack.c.l.b16 %v298
  %v339 = vunpack.c.l.b16 %v299
  %v340 = vunpack.c.l.b16 %v300
  %v341 = vunpack.c.l.b16 %v301
  %v342 = vunpack.c.h.b16 %v298
  %v343 = vunpack.c.h.b16 %v299
  %v344 = vunpack.c.h.b16 %v300
  %v345 = vunpack.c.h.b16 %v301
  %v346 = vunpack.c.l.b16 %v302
  %v347 = vunpack.c.l.b16 %v303
  %v348 = vunpack.c.l.b16 %v304
  %v349 = vunpack.c.l.b16 %v305
  %v350 = vunpack.c.h.b16 %v302
  %v351 = vunpack.c.h.b16 %v303
  %v352 = vunpack.c.h.b16 %v304
  %v353 = vunpack.c.h.b16 %v305
  %v354 = vpack.c.b16 %v323, %v322
  %v355 = vpack.c.b16 %v325, %v324
  %v356 = vpack.c.b16 %v327, %v326
  %v357 = vpack.c.b16 %v329, %v328
  %v358 = vpack.c.b16 %v331, %v330
  %v359 = vpack.c.b16 %v333, %v332
  %v360 = vpack.c.b16 %v335, %v334
  %v361 = vpack.c.b16 %v337, %v336
  %v362 = vpack.c.b16 %v339, %v338
  %v363 = vpack.c.b16 %v341, %v340
  %v364 = vpack.c.b16 %v343, %v342
  %v365 = vpack.c.b16 %v345, %v344
  %v366 = vpack.c.b16 %v347, %v346
  %v367 = vpack.c.b16 %v349, %v348
  %v368 = vpack.c.b16 %v351, %v350
  %v369 = vpack.c.b16 %v353, %v352
  %386 = vst [vmem:[#allocation2] sm:$0xff] %v354
  %387 = vst [vmem:[#allocation2 + $0x8] sm:$0xff] %v355
  %388 = vst [vmem:[#allocation2 + $0x10] sm:$0xff] %v356
  %389 = vst [vmem:[#allocation2 + $0x18] sm:$0xff] %v357
  %390 = vst [vmem:[#allocation2 + $0x20] sm:$0xff] %v358
  %391 = vst [vmem:[#allocation2 + $0x28] sm:$0xff] %v359
  %392 = vst [vmem:[#allocation2 + $0x30] sm:$0xff] %v360
  %393 = vst [vmem:[#allocation2 + $0x38] sm:$0xff] %v361
  %394 = vst [vmem:[#allocation2 + $0x40] sm:$0xff] %v362
  %395 = vst [vmem:[#allocation2 + $0x48] sm:$0xff] %v363
  %396 = vst [vmem:[#allocation2 + $0x50] sm:$0xff] %v364
  %397 = vst [vmem:[#allocation2 + $0x58] sm:$0xff] %v365
  %398 = vst [vmem:[#allocation2 + $0x60] sm:$0xff] %v366
  %399 = vst [vmem:[#allocation2 + $0x68] sm:$0xff] %v367
  %400 = vst [vmem:[#allocation2 + $0x70] sm:$0xff] %v368
  %401 = vst [vmem:[#allocation2 + $0x78] sm:$0xff] %v369
  %v402 = vld [vmem:[%s1] sm:$0xff]
  %v403 = vld [vmem:[%s2] sm:$0xff]
  %s404 = smul.u32 0, 4
  %s405 = smul.addr %s404, 4
  %s406 = scalar_lea.vmem [#allocation2], %s405
  %v407 = vld [vmem:[%s406] sm:$0xff]
  %v408 = vld [vmem:[%s406 + $0x8] sm:$0xff]
  %v409 = vunpack.c.l.bf16 %v407
  %v410 = vunpack.c.h.bf16 %v407
  %v411 = vunpack.c.l.bf16 %v408
  %v412 = vunpack.c.h.bf16 %v408
  %v413 = vpack.c.bf16 %v402, %v402
  %v414 = vld [vmem:[%s4] sm:$0xff]
  %v415 = vld [vmem:[%s4 + $0x8] sm:$0xff]
  %v416 = vld [vmem:[%s4 + $0x10] sm:$0xff]
  %v417 = vld [vmem:[%s4 + $0x18] sm:$0xff]
  %v418 = vld [vmem:[%s4 + $0x20] sm:$0xff]
  %v419 = vld [vmem:[%s4 + $0x28] sm:$0xff]
  %v420 = vld [vmem:[%s4 + $0x30] sm:$0xff]
  %v421 = vld [vmem:[%s4 + $0x38] sm:$0xff]
  %v422 = vld [vmem:[%s4 + $0x40] sm:$0xff]
  %v423 = vld [vmem:[%s4 + $0x48] sm:$0xff]
  %v424 = vld [vmem:[%s4 + $0x50] sm:$0xff]
  %v425 = vld [vmem:[%s4 + $0x58] sm:$0xff]
  %v426 = vld [vmem:[%s4 + $0x60] sm:$0xff]
  %v427 = vld [vmem:[%s4 + $0x68] sm:$0xff]
  %v428 = vld [vmem:[%s4 + $0x70] sm:$0xff]
  %v429 = vld [vmem:[%s4 + $0x78] sm:$0xff]
  %v430 = vld [vmem:[%s4 + $0x80] sm:$0xff]
  %v431 = vld [vmem:[%s4 + $0x88] sm:$0xff]
  %v432 = vld [vmem:[%s4 + $0x90] sm:$0xff]
  %v433 = vld [vmem:[%s4 + $0x98] sm:$0xff]
  %v434 = vld [vmem:[%s4 + $0xa0] sm:$0xff]
  %v435 = vld [vmem:[%s4 + $0xa8] sm:$0xff]
  %v436 = vld [vmem:[%s4 + $0xb0] sm:$0xff]
  %v437 = vld [vmem:[%s4 + $0xb8] sm:$0xff]
  %v438 = vld [vmem:[%s4 + $0xc0] sm:$0xff]
  %v439 = vld [vmem:[%s4 + $0xc8] sm:$0xff]
  %v440 = vld [vmem:[%s4 + $0xd0] sm:$0xff]
  %v441 = vld [vmem:[%s4 + $0xd8] sm:$0xff]
  %v442 = vld [vmem:[%s4 + $0xe0] sm:$0xff]
  %v443 = vld [vmem:[%s4 + $0xe8] sm:$0xff]
  %v444 = vld [vmem:[%s4 + $0xf0] sm:$0xff]
  %v445 = vld [vmem:[%s4 + $0xf8] sm:$0xff]
  %v478 = vunpack.c.l.b16 %v414
  %v479 = vunpack.c.h.b16 %v414
  %v480 = vunpack.c.l.b16 %v415
  %v481 = vunpack.c.h.b16 %v415
  %v482 = vunpack.c.l.b16 %v416
  %v483 = vunpack.c.h.b16 %v416
  %v484 = vunpack.c.l.b16 %v417
  %v485 = vunpack.c.h.b16 %v417
  %v486 = vunpack.c.l.b16 %v418
  %v487 = vunpack.c.h.b16 %v418
  %v488 = vunpack.c.l.b16 %v419
  %v489 = vunpack.c.h.b16 %v419
  %v490 = vunpack.c.l.b16 %v420
  %v491 = vunpack.c.h.b16 %v420
  %v492 = vunpack.c.l.b16 %v421
  %v493 = vunpack.c.h.b16 %v421
  %v494 = vunpack.c.l.b16 %v422
  %v495 = vunpack.c.h.b16 %v422
  %v496 = vunpack.c.l.b16 %v423
  %v497 = vunpack.c.h.b16 %v423
  %v498 = vunpack.c.l.b16 %v424
  %v499 = vunpack.c.h.b16 %v424
  %v500 = vunpack.c.l.b16 %v425
  %v501 = vunpack.c.h.b16 %v425
  %v502 = vunpack.c.l.b16 %v426
  %v503 = vunpack.c.h.b16 %v426
  %v504 = vunpack.c.l.b16 %v427
  %v505 = vunpack.c.h.b16 %v427
  %v506 = vunpack.c.l.b16 %v428
  %v507 = vunpack.c.h.b16 %v428
  %v508 = vunpack.c.l.b16 %v429
  %v509 = vunpack.c.h.b16 %v429
  %v510 = vunpack.c.l.b16 %v430
  %v511 = vunpack.c.h.b16 %v430
  %v512 = vunpack.c.l.b16 %v431
  %v513 = vunpack.c.h.b16 %v431
  %v514 = vunpack.c.l.b16 %v432
  %v515 = vunpack.c.h.b16 %v432
  %v516 = vunpack.c.l.b16 %v433
  %v517 = vunpack.c.h.b16 %v433
  %v518 = vunpack.c.l.b16 %v434
  %v519 = vunpack.c.h.b16 %v434
  %v520 = vunpack.c.l.b16 %v435
  %v521 = vunpack.c.h.b16 %v435
  %v522 = vunpack.c.l.b16 %v436
  %v523 = vunpack.c.h.b16 %v436
  %v524 = vunpack.c.l.b16 %v437
  %v525 = vunpack.c.h.b16 %v437
  %v526 = vunpack.c.l.b16 %v438
  %v527 = vunpack.c.h.b16 %v438
  %v528 = vunpack.c.l.b16 %v439
  %v529 = vunpack.c.h.b16 %v439
  %v530 = vunpack.c.l.b16 %v440
  %v531 = vunpack.c.h.b16 %v440
  %v532 = vunpack.c.l.b16 %v441
  %v533 = vunpack.c.h.b16 %v441
  %v534 = vunpack.c.l.b16 %v442
  %v535 = vunpack.c.h.b16 %v442
  %v536 = vunpack.c.l.b16 %v443
  %v537 = vunpack.c.h.b16 %v443
  %v538 = vunpack.c.l.b16 %v444
  %v539 = vunpack.c.h.b16 %v444
  %v540 = vunpack.c.l.b16 %v445
  %v541 = vunpack.c.h.b16 %v445
  %v542 = vpack.c.b16 %v482, %v478
  %v543 = vpack.c.b16 %v483, %v479
  %v544 = vpack.c.b16 %v484, %v480
  %v545 = vpack.c.b16 %v485, %v481
  %v546 = vpack.c.b16 %v490, %v486
  %v547 = vpack.c.b16 %v491, %v487
  %v548 = vpack.c.b16 %v492, %v488
  %v549 = vpack.c.b16 %v493, %v489
  %v550 = vpack.c.b16 %v498, %v494
  %v551 = vpack.c.b16 %v499, %v495
  %v552 = vpack.c.b16 %v500, %v496
  %v553 = vpack.c.b16 %v501, %v497
  %v554 = vpack.c.b16 %v506, %v502
  %v555 = vpack.c.b16 %v507, %v503
  %v556 = vpack.c.b16 %v508, %v504
  %v557 = vpack.c.b16 %v509, %v505
  %v558 = vpack.c.b16 %v514, %v510
  %v559 = vpack.c.b16 %v515, %v511
  %v560 = vpack.c.b16 %v516, %v512
  %v561 = vpack.c.b16 %v517, %v513
  %v562 = vpack.c.b16 %v522, %v518
  %v563 = vpack.c.b16 %v523, %v519
  %v564 = vpack.c.b16 %v524, %v520
  %v565 = vpack.c.b16 %v525, %v521
  %v566 = vpack.c.b16 %v530, %v526
  %v567 = vpack.c.b16 %v531, %v527
  %v568 = vpack.c.b16 %v532, %v528
  %v569 = vpack.c.b16 %v533, %v529
  %v570 = vpack.c.b16 %v538, %v534
  %v571 = vpack.c.b16 %v539, %v535
  %v572 = vpack.c.b16 %v540, %v536
  %v573 = vpack.c.b16 %v541, %v537
  %606 = vmatprep.subr.bf16.mxu0 %v571
  %607 = vmatpush1.bf16.msra.mxu0 %v570
  %608 = vmatprep.subr.bf16.mxu0 %v567
  %609 = vmatpush1.bf16.msra.mxu0 %v566
  %610 = vmatprep.subr.bf16.mxu0 %v563
  %611 = vmatpush1.bf16.msra.mxu0 %v562
  %612 = vmatprep.subr.bf16.mxu0 %v559
  %613 = vmatpush1.bf16.msra.mxu0 %v558
  %614 = vmatprep.subr.bf16.mxu0 %v555
  %615 = vmatpush1.bf16.msra.mxu0 %v554
  %616 = vmatprep.subr.bf16.mxu0 %v551
  %617 = vmatpush1.bf16.msra.mxu0 %v550
  %618 = vmatprep.subr.bf16.mxu0 %v547
  %619 = vmatpush1.bf16.msra.mxu0 %v546
  %620 = vmatprep.subr.bf16.mxu0 %v543
  %621 = vmatpush1.bf16.msra.mxu0 %v542
  %622 = vmatprep.subr.bf16.mxu0 0
  %623 = vmatpush2.bf16.msra.mxu0 0
  %624 = vmatprep.subr.bf16.mxu0 0
  %625 = vmatpush2.bf16.msra.mxu0 0
  %626 = vmatprep.subr.bf16.mxu0 0
  %627 = vmatpush2.bf16.msra.mxu0 0
  %628 = vmatprep.subr.bf16.mxu0 0
  %629 = vmatpush2.bf16.msra.mxu0 0
  %630 = vmatprep.subr.bf16.mxu0 0
  %631 = vmatpush2.bf16.msra.mxu0 0
  %632 = vmatprep.subr.bf16.mxu0 0
  %633 = vmatpush2.bf16.msra.mxu0 0
  %634 = vmatprep.subr.bf16.mxu0 0
  %635 = vmatpush2.bf16.msra.mxu0 0
  %636 = vmatprep.subr.bf16.mxu0 0
  %637 = vmatpush2.bf16.msra.mxu0 0
  %638 = vmatprep.mubr.bf16.mxu0 0
  %639 = vmatmul.mubr.bf16.gmra.mxu0 %v413
  %v640 = vpop.f32.mrf.mxu0
  %v641 = vadd.f32 0.0, %v640
  %v642 = vpop.f32.mrf.mxu0
  %v643 = vadd.f32 0.0, %v642
  %v644 = vpop.f32.mrf.mxu0
  %v645 = vpop.f32.mrf.mxu0
  %646 = vdwg.mxu0
  %647 = vmatprep.subr.bf16.mxu0 %v573
  %648 = vmatpush1.bf16.msra.mxu0 %v572
  %649 = vmatprep.subr.bf16.mxu0 %v569
  %650 = vmatpush1.bf16.msra.mxu0 %v568
  %651 = vmatprep.subr.bf16.mxu0 %v565
  %652 = vmatpush1.bf16.msra.mxu0 %v564
  %653 = vmatprep.subr.bf16.mxu0 %v561
  %654 = vmatpush1.bf16.msra.mxu0 %v560
  %655 = vmatprep.subr.bf16.mxu0 %v557
  %656 = vmatpush1.bf16.msra.mxu0 %v556
  %657 = vmatprep.subr.bf16.mxu0 %v553
  %658 = vmatpush1.bf16.msra.mxu0 %v552
  %659 = vmatprep.subr.bf16.mxu0 %v549
  %660 = vmatpush1.bf16.msra.mxu0 %v548
  %661 = vmatprep.subr.bf16.mxu0 %v545
  %662 = vmatpush1.bf16.msra.mxu0 %v544
  %663 = vmatprep.subr.bf16.mxu0 0
  %664 = vmatpush2.bf16.msra.mxu0 0
  %665 = vmatprep.subr.bf16.mxu0 0
  %666 = vmatpush2.bf16.msra.mxu0 0
  %667 = vmatprep.subr.bf16.mxu0 0
  %668 = vmatpush2.bf16.msra.mxu0 0
  %669 = vmatprep.subr.bf16.mxu0 0
  %670 = vmatpush2.bf16.msra.mxu0 0
  %671 = vmatprep.subr.bf16.mxu0 0
  %672 = vmatpush2.bf16.msra.mxu0 0
  %673 = vmatprep.subr.bf16.mxu0 0
  %674 = vmatpush2.bf16.msra.mxu0 0
  %675 = vmatprep.subr.bf16.mxu0 0
  %676 = vmatpush2.bf16.msra.mxu0 0
  %677 = vmatprep.subr.bf16.mxu0 0
  %678 = vmatpush2.bf16.msra.mxu0 0
  %679 = vmatprep.mubr.bf16.mxu0 0
  %680 = vmatmul.mubr.bf16.gmra.mxu0 %v413
  %v681 = vpop.f32.mrf.mxu0
  %v682 = vadd.f32 0.0, %v681
  %v683 = vpop.f32.mrf.mxu0
  %v684 = vadd.f32 0.0, %v683
  %v685 = vpop.f32.mrf.mxu0
  %v686 = vpop.f32.mrf.mxu0
  %687 = vdwg.mxu0
  %v688 = vadd.f32 %v409, %v641
  %v689 = vadd.f32 %v410, %v643
  %v690 = vadd.f32 %v411, %v682
  %v691 = vadd.f32 %v412, %v684
  %v692 = vxor.u32 %v688, 2147483648
  %v693 = vxor.u32 %v689, 2147483648
  %v694 = vxor.u32 %v690, 2147483648
  %v695 = vmul.f32 %v692, 1.442695
  %v696 = vpow.pop %v695
  %v697 = vmul.f32 %v693, 1.442695
  %v698 = vpow.pop %v697
  %v699 = vmul.f32 %v694, 1.442695
  %v700 = vpow.pop %v699
  %v701 = vadd.f32 %v696, 1.0
  %v702 = vadd.f32 %v698, 1.0
  %v703 = vadd.f32 %v700, 1.0
  %v704 = vrcp.pop %v701
  %v705 = vmul.f32 1.0, %v704
  %v706 = vrcp.pop %v702
  %v707 = vmul.f32 1.0, %v706
  %v708 = vrcp.pop %v703
  %v709 = vmul.f32 1.0, %v708
  %v710 = vtanh.pop %v691
  %v711 = vmul.f32 %v707, %v403
  %v712 = vmul.f32 %v705, %v710
  %v713 = vadd.f32 %v711, %v712
  %v714 = vtanh.pop %v713
  %v715 = vmul.f32 %v709, %v714
  %v716 = vpack.c.bf16 %v715, %v715
  %717 = vst [vmem:[#allocation3] sm:$0xf] %v716
  %s718 = smul.u32 1, 4
  %s719 = smul.addr %s718, 4
  %s720 = scalar_lea.vmem [#allocation2], %s719
  %v721 = vld [vmem:[%s720] sm:$0xff]
  %v722 = vld [vmem:[%s720 + $0x8] sm:$0xff]
  %v723 = vunpack.c.l.bf16 %v721
  %v724 = vunpack.c.h.bf16 %v721
  %v725 = vunpack.c.l.bf16 %v722
  %v726 = vunpack.c.h.bf16 %v722
  %v727 = vld [vmem:[%s4] sm:$0xff]
  %v728 = vld [vmem:[%s4 + $0x8] sm:$0xff]
  %v729 = vld [vmem:[%s4 + $0x10] sm:$0xff]
  %v730 = vld [vmem:[%s4 + $0x18] sm:$0xff]
  %v731 = vld [vmem:[%s4 + $0x20] sm:$0xff]
  %v732 = vld [vmem:[%s4 + $0x28] sm:$0xff]
  %v733 = vld [vmem:[%s4 + $0x30] sm:$0xff]
  %v734 = vld [vmem:[%s4 + $0x38] sm:$0xff]
  %v735 = vld [vmem:[%s4 + $0x40] sm:$0xff]
  %v736 = vld [vmem:[%s4 + $0x48] sm:$0xff]
  %v737 = vld [vmem:[%s4 + $0x50] sm:$0xff]
  %v738 = vld [vmem:[%s4 + $0x58] sm:$0xff]
  %v739 = vld [vmem:[%s4 + $0x60] sm:$0xff]
  %v740 = vld [vmem:[%s4 + $0x68] sm:$0xff]
  %v741 = vld [vmem:[%s4 + $0x70] sm:$0xff]
  %v742 = vld [vmem:[%s4 + $0x78] sm:$0xff]
  %v743 = vld [vmem:[%s4 + $0x80] sm:$0xff]
  %v744 = vld [vmem:[%s4 + $0x88] sm:$0xff]
  %v745 = vld [vmem:[%s4 + $0x90] sm:$0xff]
  %v746 = vld [vmem:[%s4 + $0x98] sm:$0xff]
  %v747 = vld [vmem:[%s4 + $0xa0] sm:$0xff]
  %v748 = vld [vmem:[%s4 + $0xa8] sm:$0xff]
  %v749 = vld [vmem:[%s4 + $0xb0] sm:$0xff]
  %v750 = vld [vmem:[%s4 + $0xb8] sm:$0xff]
  %v751 = vld [vmem:[%s4 + $0xc0] sm:$0xff]
  %v752 = vld [vmem:[%s4 + $0xc8] sm:$0xff]
  %v753 = vld [vmem:[%s4 + $0xd0] sm:$0xff]
  %v754 = vld [vmem:[%s4 + $0xd8] sm:$0xff]
  %v755 = vld [vmem:[%s4 + $0xe0] sm:$0xff]
  %v756 = vld [vmem:[%s4 + $0xe8] sm:$0xff]
  %v757 = vld [vmem:[%s4 + $0xf0] sm:$0xff]
  %v758 = vld [vmem:[%s4 + $0xf8] sm:$0xff]
  %v791 = vunpack.c.l.b16 %v727
  %v792 = vunpack.c.h.b16 %v727
  %v793 = vunpack.c.l.b16 %v728
  %v794 = vunpack.c.h.b16 %v728
  %v795 = vunpack.c.l.b16 %v729
  %v796 = vunpack.c.h.b16 %v729
  %v797 = vunpack.c.l.b16 %v730
  %v798 = vunpack.c.h.b16 %v730
  %v799 = vunpack.c.l.b16 %v731
  %v800 = vunpack.c.h.b16 %v731
  %v801 = vunpack.c.l.b16 %v732
  %v802 = vunpack.c.h.b16 %v732
  %v803 = vunpack.c.l.b16 %v733
  %v804 = vunpack.c.h.b16 %v733
  %v805 = vunpack.c.l.b16 %v734
  %v806 = vunpack.c.h.b16 %v734
  %v807 = vunpack.c.l.b16 %v735
  %v808 = vunpack.c.h.b16 %v735
  %v809 = vunpack.c.l.b16 %v736
  %v810 = vunpack.c.h.b16 %v736
  %v811 = vunpack.c.l.b16 %v737
  %v812 = vunpack.c.h.b16 %v737
  %v813 = vunpack.c.l.b16 %v738
  %v814 = vunpack.c.h.b16 %v738
  %v815 = vunpack.c.l.b16 %v739
  %v816 = vunpack.c.h.b16 %v739
  %v817 = vunpack.c.l.b16 %v740
  %v818 = vunpack.c.h.b16 %v740
  %v819 = vunpack.c.l.b16 %v741
  %v820 = vunpack.c.h.b16 %v741
  %v821 = vunpack.c.l.b16 %v742
  %v822 = vunpack.c.h.b16 %v742
  %v823 = vunpack.c.l.b16 %v743
  %v824 = vunpack.c.h.b16 %v743
  %v825 = vunpack.c.l.b16 %v744
  %v826 = vunpack.c.h.b16 %v744
  %v827 = vunpack.c.l.b16 %v745
  %v828 = vunpack.c.h.b16 %v745
  %v829 = vunpack.c.l.b16 %v746
  %v830 = vunpack.c.h.b16 %v746
  %v831 = vunpack.c.l.b16 %v747
  %v832 = vunpack.c.h.b16 %v747
  %v833 = vunpack.c.l.b16 %v748
  %v834 = vunpack.c.h.b16 %v748
  %v835 = vunpack.c.l.b16 %v749
  %v836 = vunpack.c.h.b16 %v749
  %v837 = vunpack.c.l.b16 %v750
  %v838 = vunpack.c.h.b16 %v750
  %v839 = vunpack.c.l.b16 %v751
  %v840 = vunpack.c.h.b16 %v751
  %v841 = vunpack.c.l.b16 %v752
  %v842 = vunpack.c.h.b16 %v752
  %v843 = vunpack.c.l.b16 %v753
  %v844 = vunpack.c.h.b16 %v753
  %v845 = vunpack.c.l.b16 %v754
  %v846 = vunpack.c.h.b16 %v754
  %v847 = vunpack.c.l.b16 %v755
  %v848 = vunpack.c.h.b16 %v755
  %v849 = vunpack.c.l.b16 %v756
  %v850 = vunpack.c.h.b16 %v756
  %v851 = vunpack.c.l.b16 %v757
  %v852 = vunpack.c.h.b16 %v757
  %v853 = vunpack.c.l.b16 %v758
  %v854 = vunpack.c.h.b16 %v758
  %v855 = vpack.c.b16 %v795, %v791
  %v856 = vpack.c.b16 %v796, %v792
  %v857 = vpack.c.b16 %v797, %v793
  %v858 = vpack.c.b16 %v798, %v794
  %v859 = vpack.c.b16 %v803, %v799
  %v860 = vpack.c.b16 %v804, %v800
  %v861 = vpack.c.b16 %v805, %v801
  %v862 = vpack.c.b16 %v806, %v802
  %v863 = vpack.c.b16 %v811, %v807
  %v864 = vpack.c.b16 %v812, %v808
  %v865 = vpack.c.b16 %v813, %v809
  %v866 = vpack.c.b16 %v814, %v810
  %v867 = vpack.c.b16 %v819, %v815
  %v868 = vpack.c.b16 %v820, %v816
  %v869 = vpack.c.b16 %v821, %v817
  %v870 = vpack.c.b16 %v822, %v818
  %v871 = vpack.c.b16 %v827, %v823
  %v872 = vpack.c.b16 %v828, %v824
  %v873 = vpack.c.b16 %v829, %v825
  %v874 = vpack.c.b16 %v830, %v826
  %v875 = vpack.c.b16 %v835, %v831
  %v876 = vpack.c.b16 %v836, %v832
  %v877 = vpack.c.b16 %v837, %v833
  %v878 = vpack.c.b16 %v838, %v834
  %v879 = vpack.c.b16 %v843, %v839
  %v880 = vpack.c.b16 %v844, %v840
  %v881 = vpack.c.b16 %v845, %v841
  %v882 = vpack.c.b16 %v846, %v842
  %v883 = vpack.c.b16 %v851, %v847
  %v884 = vpack.c.b16 %v852, %v848
  %v885 = vpack.c.b16 %v853, %v849
  %v886 = vpack.c.b16 %v854, %v850
  %919 = vmatprep.subr.bf16.mxu0 %v884
  %920 = vmatpush1.bf16.msra.mxu0 %v883
  %921 = vmatprep.subr.bf16.mxu0 %v880
  %922 = vmatpush1.bf16.msra.mxu0 %v879
  %923 = vmatprep.subr.bf16.mxu0 %v876
  %924 = vmatpush1.bf16.msra.mxu0 %v875
  %925 = vmatprep.subr.bf16.mxu0 %v872
  %926 = vmatpush1.bf16.msra.mxu0 %v871
  %927 = vmatprep.subr.bf16.mxu0 %v868
  %928 = vmatpush1.bf16.msra.mxu0 %v867
  %929 = vmatprep.subr.bf16.mxu0 %v864
  %930 = vmatpush1.bf16.msra.mxu0 %v863
  %931 = vmatprep.subr.bf16.mxu0 %v860
  %932 = vmatpush1.bf16.msra.mxu0 %v859
  %933 = vmatprep.subr.bf16.mxu0 %v856
  %934 = vmatpush1.bf16.msra.mxu0 %v855
  %935 = vmatprep.subr.bf16.mxu0 0
  %936 = vmatpush2.bf16.msra.mxu0 0
  %937 = vmatprep.subr.bf16.mxu0 0
  %938 = vmatpush2.bf16.msra.mxu0 0
  %939 = vmatprep.subr.bf16.mxu0 0
  %940 = vmatpush2.bf16.msra.mxu0 0
  %941 = vmatprep.subr.bf16.mxu0 0
  %942 = vmatpush2.bf16.msra.mxu0 0
  %943 = vmatprep.subr.bf16.mxu0 0
  %944 = vmatpush2.bf16.msra.mxu0 0
  %945 = vmatprep.subr.bf16.mxu0 0
  %946 = vmatpush2.bf16.msra.mxu0 0
  %947 = vmatprep.subr.bf16.mxu0 0
  %948 = vmatpush2.bf16.msra.mxu0 0
  %949 = vmatprep.subr.bf16.mxu0 0
  %950 = vmatpush2.bf16.msra.mxu0 0
  %951 = vmatprep.mubr.bf16.mxu0 0
  %952 = vmatmul.mubr.bf16.gmra.mxu0 %v716
  %v953 = vpop.f32.mrf.mxu0
  %v954 = vadd.f32 0.0, %v953
  %v955 = vpop.f32.mrf.mxu0
  %v956 = vadd.f32 0.0, %v955
  %v957 = vpop.f32.mrf.mxu0
  %v958 = vpop.f32.mrf.mxu0
  %959 = vdwg.mxu0
  %960 = vmatprep.subr.bf16.mxu0 %v886
  %961 = vmatpush1.bf16.msra.mxu0 %v885
  %962 = vmatprep.subr.bf16.mxu0 %v882
  %963 = vmatpush1.bf16.msra.mxu0 %v881
  %964 = vmatprep.subr.bf16.mxu0 %v878
  %965 = vmatpush1.bf16.msra.mxu0 %v877
  %966 = vmatprep.subr.bf16.mxu0 %v874
  %967 = vmatpush1.bf16.msra.mxu0 %v873
  %968 = vmatprep.subr.bf16.mxu0 %v870
  %969 = vmatpush1.bf16.msra.mxu0 %v869
  %970 = vmatprep.subr.bf16.mxu0 %v866
  %971 = vmatpush1.bf16.msra.mxu0 %v865
  %972 = vmatprep.subr.bf16.mxu0 %v862
  %973 = vmatpush1.bf16.msra.mxu0 %v861
  %974 = vmatprep.subr.bf16.mxu0 %v858
  %975 = vmatpush1.bf16.msra.mxu0 %v857
  %976 = vmatprep.subr.bf16.mxu0 0
  %977 = vmatpush2.bf16.msra.mxu0 0
  %978 = vmatprep.subr.bf16.mxu0 0
  %979 = vmatpush2.bf16.msra.mxu0 0
  %980 = vmatprep.subr.bf16.mxu0 0
  %981 = vmatpush2.bf16.msra.mxu0 0
  %982 = vmatprep.subr.bf16.mxu0 0
  %983 = vmatpush2.bf16.msra.mxu0 0
  %984 = vmatprep.subr.bf16.mxu0 0
  %985 = vmatpush2.bf16.msra.mxu0 0
  %986 = vmatprep.subr.bf16.mxu0 0
  %987 = vmatpush2.bf16.msra.mxu0 0
  %988 = vmatprep.subr.bf16.mxu0 0
  %989 = vmatpush2.bf16.msra.mxu0 0
  %990 = vmatprep.subr.bf16.mxu0 0
  %991 = vmatpush2.bf16.msra.mxu0 0
  %992 = vmatprep.mubr.bf16.mxu0 0
  %993 = vmatmul.mubr.bf16.gmra.mxu0 %v716
  %v994 = vpop.f32.mrf.mxu0
  %v995 = vadd.f32 0.0, %v994
  %v996 = vpop.f32.mrf.mxu0
  %v997 = vadd.f32 0.0, %v996
  %v998 = vpop.f32.mrf.mxu0
  %v999 = vpop.f32.mrf.mxu0
  %1000 = vdwg.mxu0
  %v1001 = vadd.f32 %v723, %v954
  %v1002 = vadd.f32 %v724, %v956
  %v1003 = vadd.f32 %v725, %v995
  %v1004 = vadd.f32 %v726, %v997
  %v1005 = vxor.u32 %v1001, 2147483648
  %v1006 = vxor.u32 %v1002, 2147483648
  %v1007 = vxor.u32 %v1003, 2147483648
  %v1008 = vmul.f32 %v1005, 1.442695
  %v1009 = vpow.pop %v1008
  %v1010 = vmul.f32 %v1006, 1.442695
  %v1011 = vpow.pop %v1010
  %v1012 = vmul.f32 %v1007, 1.442695
  %v1013 = vpow.pop %v1012
  %v1014 = vadd.f32 %v1009, 1.0
  %v1015 = vadd.f32 %v1011, 1.0
  %v1016 = vadd.f32 %v1013, 1.0
  %v1017 = vrcp.pop %v1014
  %v1018 = vmul.f32 1.0, %v1017
  %v1019 = vrcp.pop %v1015
  %v1020 = vmul.f32 1.0, %v1019
  %v1021 = vrcp.pop %v1016
  %v1022 = vmul.f32 1.0, %v1021
  %v1023 = vtanh.pop %v1004
  %v1024 = vmul.f32 %v1020, %v713
  %v1025 = vmul.f32 %v1018, %v1023
  %v1026 = vadd.f32 %v1024, %v1025
  %v1027 = vtanh.pop %v1026
  %v1028 = vmul.f32 %v1022, %v1027
  %v1029 = vpack.c.bf16 %v1028, %v1028
  %s1030 = scalar_lea.vmem [#allocation3], 4
  %1031 = vst [vmem:[%s1030] sm:$0xf] %v1029
  %s1032 = smul.u32 2, 4
  %s1033 = smul.addr %s1032, 4
  %s1034 = scalar_lea.vmem [#allocation2], %s1033
  %v1035 = vld [vmem:[%s1034] sm:$0xff]
  %v1036 = vld [vmem:[%s1034 + $0x8] sm:$0xff]
  %v1037 = vunpack.c.l.bf16 %v1035
  %v1038 = vunpack.c.h.bf16 %v1035
  %v1039 = vunpack.c.l.bf16 %v1036
  %v1040 = vunpack.c.h.bf16 %v1036
  %v1041 = vld [vmem:[%s4] sm:$0xff]
  %v1042 = vld [vmem:[%s4 + $0x8] sm:$0xff]
  %v1043 = vld [vmem:[%s4 + $0x10] sm:$0xff]
  %v1044 = vld [vmem:[%s4 + $0x18] sm:$0xff]
  %v1045 = vld [vmem:[%s4 + $0x20] sm:$0xff]
  %v1046 = vld [vmem:[%s4 + $0x28] sm:$0xff]
  %v1047 = vld [vmem:[%s4 + $0x30] sm:$0xff]
  %v1048 = vld [vmem:[%s4 + $0x38] sm:$0xff]
  %v1049 = vld [vmem:[%s4 + $0x40] sm:$0xff]
  %v1050 = vld [vmem:[%s4 + $0x48] sm:$0xff]
  %v1051 = vld [vmem:[%s4 + $0x50] sm:$0xff]
  %v1052 = vld [vmem:[%s4 + $0x58] sm:$0xff]
  %v1053 = vld [vmem:[%s4 + $0x60] sm:$0xff]
  %v1054 = vld [vmem:[%s4 + $0x68] sm:$0xff]
  %v1055 = vld [vmem:[%s4 + $0x70] sm:$0xff]
  %v1056 = vld [vmem:[%s4 + $0x78] sm:$0xff]
  %v1057 = vld [vmem:[%s4 + $0x80] sm:$0xff]
  %v1058 = vld [vmem:[%s4 + $0x88] sm:$0xff]
  %v1059 = vld [vmem:[%s4 + $0x90] sm:$0xff]
  %v1060 = vld [vmem:[%s4 + $0x98] sm:$0xff]
  %v1061 = vld [vmem:[%s4 + $0xa0] sm:$0xff]
  %v1062 = vld [vmem:[%s4 + $0xa8] sm:$0xff]
  %v1063 = vld [vmem:[%s4 + $0xb0] sm:$0xff]
  %v1064 = vld [vmem:[%s4 + $0xb8] sm:$0xff]
  %v1065 = vld [vmem:[%s4 + $0xc0] sm:$0xff]
  %v1066 = vld [vmem:[%s4 + $0xc8] sm:$0xff]
  %v1067 = vld [vmem:[%s4 + $0xd0] sm:$0xff]
  %v1068 = vld [vmem:[%s4 + $0xd8] sm:$0xff]
  %v1069 = vld [vmem:[%s4 + $0xe0] sm:$0xff]
  %v1070 = vld [vmem:[%s4 + $0xe8] sm:$0xff]
  %v1071 = vld [vmem:[%s4 + $0xf0] sm:$0xff]
  %v1072 = vld [vmem:[%s4 + $0xf8] sm:$0xff]
  %v1105 = vunpack.c.l.b16 %v1041
  %v1106 = vunpack.c.h.b16 %v1041
  %v1107 = vunpack.c.l.b16 %v1042
  %v1108 = vunpack.c.h.b16 %v1042
  %v1109 = vunpack.c.l.b16 %v1043
  %v1110 = vunpack.c.h.b16 %v1043
  %v1111 = vunpack.c.l.b16 %v1044
  %v1112 = vunpack.c.h.b16 %v1044
  %v1113 = vunpack.c.l.b16 %v1045
  %v1114 = vunpack.c.h.b16 %v1045
  %v1115 = vunpack.c.l.b16 %v1046
  %v1116 = vunpack.c.h.b16 %v1046
  %v1117 = vunpack.c.l.b16 %v1047
  %v1118 = vunpack.c.h.b16 %v1047
  %v1119 = vunpack.c.l.b16 %v1048
  %v1120 = vunpack.c.h.b16 %v1048
  %v1121 = vunpack.c.l.b16 %v1049
  %v1122 = vunpack.c.h.b16 %v1049
  %v1123 = vunpack.c.l.b16 %v1050
  %v1124 = vunpack.c.h.b16 %v1050
  %v1125 = vunpack.c.l.b16 %v1051
  %v1126 = vunpack.c.h.b16 %v1051
  %v1127 = vunpack.c.l.b16 %v1052
  %v1128 = vunpack.c.h.b16 %v1052
  %v1129 = vunpack.c.l.b16 %v1053
  %v1130 = vunpack.c.h.b16 %v1053
  %v1131 = vunpack.c.l.b16 %v1054
  %v1132 = vunpack.c.h.b16 %v1054
  %v1133 = vunpack.c.l.b16 %v1055
  %v1134 = vunpack.c.h.b16 %v1055
  %v1135 = vunpack.c.l.b16 %v1056
  %v1136 = vunpack.c.h.b16 %v1056
  %v1137 = vunpack.c.l.b16 %v1057
  %v1138 = vunpack.c.h.b16 %v1057
  %v1139 = vunpack.c.l.b16 %v1058
  %v1140 = vunpack.c.h.b16 %v1058
  %v1141 = vunpack.c.l.b16 %v1059
  %v1142 = vunpack.c.h.b16 %v1059
  %v1143 = vunpack.c.l.b16 %v1060
  %v1144 = vunpack.c.h.b16 %v1060
  %v1145 = vunpack.c.l.b16 %v1061
  %v1146 = vunpack.c.h.b16 %v1061
  %v1147 = vunpack.c.l.b16 %v1062
  %v1148 = vunpack.c.h.b16 %v1062
  %v1149 = vunpack.c.l.b16 %v1063
  %v1150 = vunpack.c.h.b16 %v1063
  %v1151 = vunpack.c.l.b16 %v1064
  %v1152 = vunpack.c.h.b16 %v1064
  %v1153 = vunpack.c.l.b16 %v1065
  %v1154 = vunpack.c.h.b16 %v1065
  %v1155 = vunpack.c.l.b16 %v1066
  %v1156 = vunpack.c.h.b16 %v1066
  %v1157 = vunpack.c.l.b16 %v1067
  %v1158 = vunpack.c.h.b16 %v1067
  %v1159 = vunpack.c.l.b16 %v1068
  %v1160 = vunpack.c.h.b16 %v1068
  %v1161 = vunpack.c.l.b16 %v1069
  %v1162 = vunpack.c.h.b16 %v1069
  %v1163 = vunpack.c.l.b16 %v1070
  %v1164 = vunpack.c.h.b16 %v1070
  %v1165 = vunpack.c.l.b16 %v1071
  %v1166 = vunpack.c.h.b16 %v1071
  %v1167 = vunpack.c.l.b16 %v1072
  %v1168 = vunpack.c.h.b16 %v1072
  %v1169 = vpack.c.b16 %v1109, %v1105
  %v1170 = vpack.c.b16 %v1110, %v1106
  %v1171 = vpack.c.b16 %v1111, %v1107
  %v1172 = vpack.c.b16 %v1112, %v1108
  %v1173 = vpack.c.b16 %v1117, %v1113
  %v1174 = vpack.c.b16 %v1118, %v1114
  %v1175 = vpack.c.b16 %v1119, %v1115
  %v1176 = vpack.c.b16 %v1120, %v1116
  %v1177 = vpack.c.b16 %v1125, %v1121
  %v1178 = vpack.c.b16 %v1126, %v1122
  %v1179 = vpack.c.b16 %v1127, %v1123
  %v1180 = vpack.c.b16 %v1128, %v1124
  %v1181 = vpack.c.b16 %v1133, %v1129
  %v1182 = vpack.c.b16 %v1134, %v1130
  %v1183 = vpack.c.b16 %v1135, %v1131
  %v1184 = vpack.c.b16 %v1136, %v1132
  %v1185 = vpack.c.b16 %v1141, %v1137
  %v1186 = vpack.c.b16 %v1142, %v1138
  %v1187 = vpack.c.b16 %v1143, %v1139
  %v1188 = vpack.c.b16 %v1144, %v1140
  %v1189 = vpack.c.b16 %v1149, %v1145
  %v1190 = vpack.c.b16 %v1150, %v1146
  %v1191 = vpack.c.b16 %v1151, %v1147
  %v1192 = vpack.c.b16 %v1152, %v1148
  %v1193 = vpack.c.b16 %v1157, %v1153
  %v1194 = vpack.c.b16 %v1158, %v1154
  %v1195 = vpack.c.b16 %v1159, %v1155
  %v1196 = vpack.c.b16 %v1160, %v1156
  %v1197 = vpack.c.b16 %v1165, %v1161
  %v1198 = vpack.c.b16 %v1166, %v1162
  %v1199 = vpack.c.b16 %v1167, %v1163
  %v1200 = vpack.c.b16 %v1168, %v1164
  %1233 = vmatprep.subr.bf16.mxu0 %v1198
  %1234 = vmatpush1.bf16.msra.mxu0 %v1197
  %1235 = vmatprep.subr.bf16.mxu0 %v1194
  %1236 = vmatpush1.bf16.msra.mxu0 %v1193
  %1237 = vmatprep.subr.bf16.mxu0 %v1190
  %1238 = vmatpush1.bf16.msra.mxu0 %v1189
  %1239 = vmatprep.subr.bf16.mxu0 %v1186
  %1240 = vmatpush1.bf16.msra.mxu0 %v1185
  %1241 = vmatprep.subr.bf16.mxu0 %v1182
  %1242 = vmatpush1.bf16.msra.mxu0 %v1181
  %1243 = vmatprep.subr.bf16.mxu0 %v1178
  %1244 = vmatpush1.bf16.msra.mxu0 %v1177
  %1245 = vmatprep.subr.bf16.mxu0 %v1174
  %1246 = vmatpush1.bf16.msra.mxu0 %v1173
  %1247 = vmatprep.subr.bf16.mxu0 %v1170
  %1248 = vmatpush1.bf16.msra.mxu0 %v1169
  %1249 = vmatprep.subr.bf16.mxu0 0
  %1250 = vmatpush2.bf16.msra.mxu0 0
  %1251 = vmatprep.subr.bf16.mxu0 0
  %1252 = vmatpush2.bf16.msra.mxu0 0
  %1253 = vmatprep.subr.bf16.mxu0 0
  %1254 = vmatpush2.bf16.msra.mxu0 0
  %1255 = vmatprep.subr.bf16.mxu0 0
  %1256 = vmatpush2.bf16.msra.mxu0 0
  %1257 = vmatprep.subr.bf16.mxu0 0
  %1258 = vmatpush2.bf16.msra.mxu0 0
  %1259 = vmatprep.subr.bf16.mxu0 0
  %1260 = vmatpush2.bf16.msra.mxu0 0
  %1261 = vmatprep.subr.bf16.mxu0 0
  %1262 = vmatpush2.bf16.msra.mxu0 0
  %1263 = vmatprep.subr.bf16.mxu0 0
  %1264 = vmatpush2.bf16.msra.mxu0 0
  %1265 = vmatprep.mubr.bf16.mxu0 0
  %1266 = vmatmul.mubr.bf16.gmra.mxu0 %v1029
  %v1267 = vpop.f32.mrf.mxu0
  %v1268 = vadd.f32 0.0, %v1267
  %v1269 = vpop.f32.mrf.mxu0
  %v1270 = vadd.f32 0.0, %v1269
  %v1271 = vpop.f32.mrf.mxu0
  %v1272 = vpop.f32.mrf.mxu0
  %1273 = vdwg.mxu0
  %1274 = vmatprep.subr.bf16.mxu0 %v1200
  %1275 = vmatpush1.bf16.msra.mxu0 %v1199
  %1276 = vmatprep.subr.bf16.mxu0 %v1196
  %1277 = vmatpush1.bf16.msra.mxu0 %v1195
  %1278 = vmatprep.subr.bf16.mxu0 %v1192
  %1279 = vmatpush1.bf16.msra.mxu0 %v1191
  %1280 = vmatprep.subr.bf16.mxu0 %v1188
  %1281 = vmatpush1.bf16.msra.mxu0 %v1187
  %1282 = vmatprep.subr.bf16.mxu0 %v1184
  %1283 = vmatpush1.bf16.msra.mxu0 %v1183
  %1284 = vmatprep.subr.bf16.mxu0 %v1180
  %1285 = vmatpush1.bf16.msra.mxu0 %v1179
  %1286 = vmatprep.subr.bf16.mxu0 %v1176
  %1287 = vmatpush1.bf16.msra.mxu0 %v1175
  %1288 = vmatprep.subr.bf16.mxu0 %v1172
  %1289 = vmatpush1.bf16.msra.mxu0 %v1171
  %1290 = vmatprep.subr.bf16.mxu0 0
  %1291 = vmatpush2.bf16.msra.mxu0 0
  %1292 = vmatprep.subr.bf16.mxu0 0
  %1293 = vmatpush2.bf16.msra.mxu0 0
  %1294 = vmatprep.subr.bf16.mxu0 0
  %1295 = vmatpush2.bf16.msra.mxu0 0
  %1296 = vmatprep.subr.bf16.mxu0 0
  %1297 = vmatpush2.bf16.msra.mxu0 0
  %1298 = vmatprep.subr.bf16.mxu0 0
  %1299 = vmatpush2.bf16.msra.mxu0 0
  %1300 = vmatprep.subr.bf16.mxu0 0
  %1301 = vmatpush2.bf16.msra.mxu0 0
  %1302 = vmatprep.subr.bf16.mxu0 0
  %1303 = vmatpush2.bf16.msra.mxu0 0
  %1304 = vmatprep.subr.bf16.mxu0 0
  %1305 = vmatpush2.bf16.msra.mxu0 0
  %1306 = vmatprep.mubr.bf16.mxu0 0
  %1307 = vmatmul.mubr.bf16.gmra.mxu0 %v1029
  %v1308 = vpop.f32.mrf.mxu0
  %v1309 = vadd.f32 0.0, %v1308
  %v1310 = vpop.f32.mrf.mxu0
  %v1311 = vadd.f32 0.0, %v1310
  %v1312 = vpop.f32.mrf.mxu0
  %v1313 = vpop.f32.mrf.mxu0
  %1314 = vdwg.mxu0
  %v1315 = vadd.f32 %v1037, %v1268
  %v1316 = vadd.f32 %v1038, %v1270
  %v1317 = vadd.f32 %v1039, %v1309
  %v1318 = vadd.f32 %v1040, %v1311
  %v1319 = vxor.u32 %v1315, 2147483648
  %v1320 = vxor.u32 %v1316, 2147483648
  %v1321 = vxor.u32 %v1317, 2147483648
  %v1322 = vmul.f32 %v1319, 1.442695
  %v1323 = vpow.pop %v1322
  %v1324 = vmul.f32 %v1320, 1.442695
  %v1325 = vpow.pop %v1324
  %v1326 = vmul.f32 %v1321, 1.442695
  %v1327 = vpow.pop %v1326
  %v1328 = vadd.f32 %v1323, 1.0
  %v1329 = vadd.f32 %v1325, 1.0
  %v1330 = vadd.f32 %v1327, 1.0
  %v1331 = vrcp.pop %v1328
  %v1332 = vmul.f32 1.0, %v1331
  %v1333 = vrcp.pop %v1329
  %v1334 = vmul.f32 1.0, %v1333
  %v1335 = vrcp.pop %v1330
  %v1336 = vmul.f32 1.0, %v1335
  %v1337 = vtanh.pop %v1318
  %v1338 = vmul.f32 %v1334, %v1026
  %v1339 = vmul.f32 %v1332, %v1337
  %v1340 = vadd.f32 %v1338, %v1339
  %v1341 = vtanh.pop %v1340
  %v1342 = vmul.f32 %v1336, %v1341
  %v1343 = vpack.c.bf16 %v1342, %v1342
  %s1344 = scalar_lea.vmem [#allocation3], 8
  %1345 = vst [vmem:[%s1344] sm:$0xf] %v1343
  %s1346 = smul.u32 3, 4
  %s1347 = smul.addr %s1346, 4
  %s1348 = scalar_lea.vmem [#allocation2], %s1347
  %v1349 = vld [vmem:[%s1348] sm:$0xff]
  %v1350 = vld [vmem:[%s1348 + $0x8] sm:$0xff]
  %v1351 = vunpack.c.l.bf16 %v1349
  %v1352 = vunpack.c.h.bf16 %v1349
  %v1353 = vunpack.c.l.bf16 %v1350
  %v1354 = vunpack.c.h.bf16 %v1350
  %v1355 = vld [vmem:[%s4] sm:$0xff]
  %v1356 = vld [vmem:[%s4 + $0x8] sm:$0xff]
  %v1357 = vld [vmem:[%s4 + $0x10] sm:$0xff]
  %v1358 = vld [vmem:[%s4 + $0x18] sm:$0xff]
  %v1359 = vld [vmem:[%s4 + $0x20] sm:$0xff]
  %v1360 = vld [vmem:[%s4 + $0x28] sm:$0xff]
  %v1361 = vld [vmem:[%s4 + $0x30] sm:$0xff]
  %v1362 = vld [vmem:[%s4 + $0x38] sm:$0xff]
  %v1363 = vld [vmem:[%s4 + $0x40] sm:$0xff]
  %v1364 = vld [vmem:[%s4 + $0x48] sm:$0xff]
  %v1365 = vld [vmem:[%s4 + $0x50] sm:$0xff]
  %v1366 = vld [vmem:[%s4 + $0x58] sm:$0xff]
  %v1367 = vld [vmem:[%s4 + $0x60] sm:$0xff]
  %v1368 = vld [vmem:[%s4 + $0x68] sm:$0xff]
  %v1369 = vld [vmem:[%s4 + $0x70] sm:$0xff]
  %v1370 = vld [vmem:[%s4 + $0x78] sm:$0xff]
  %v1371 = vld [vmem:[%s4 + $0x80] sm:$0xff]
  %v1372 = vld [vmem:[%s4 + $0x88] sm:$0xff]
  %v1373 = vld [vmem:[%s4 + $0x90] sm:$0xff]
  %v1374 = vld [vmem:[%s4 + $0x98] sm:$0xff]
  %v1375 = vld [vmem:[%s4 + $0xa0] sm:$0xff]
  %v1376 = vld [vmem:[%s4 + $0xa8] sm:$0xff]
  %v1377 = vld [vmem:[%s4 + $0xb0] sm:$0xff]
  %v1378 = vld [vmem:[%s4 + $0xb8] sm:$0xff]
  %v1379 = vld [vmem:[%s4 + $0xc0] sm:$0xff]
  %v1380 = vld [vmem:[%s4 + $0xc8] sm:$0xff]
  %v1381 = vld [vmem:[%s4 + $0xd0] sm:$0xff]
  %v1382 = vld [vmem:[%s4 + $0xd8] sm:$0xff]
  %v1383 = vld [vmem:[%s4 + $0xe0] sm:$0xff]
  %v1384 = vld [vmem:[%s4 + $0xe8] sm:$0xff]
  %v1385 = vld [vmem:[%s4 + $0xf0] sm:$0xff]
  %v1386 = vld [vmem:[%s4 + $0xf8] sm:$0xff]
  %v1419 = vunpack.c.l.b16 %v1355
  %v1420 = vunpack.c.h.b16 %v1355
  %v1421 = vunpack.c.l.b16 %v1356
  %v1422 = vunpack.c.h.b16 %v1356
  %v1423 = vunpack.c.l.b16 %v1357
  %v1424 = vunpack.c.h.b16 %v1357
  %v1425 = vunpack.c.l.b16 %v1358
  %v1426 = vunpack.c.h.b16 %v1358
  %v1427 = vunpack.c.l.b16 %v1359
  %v1428 = vunpack.c.h.b16 %v1359
  %v1429 = vunpack.c.l.b16 %v1360
  %v1430 = vunpack.c.h.b16 %v1360
  %v1431 = vunpack.c.l.b16 %v1361
  %v1432 = vunpack.c.h.b16 %v1361
  %v1433 = vunpack.c.l.b16 %v1362
  %v1434 = vunpack.c.h.b16 %v1362
  %v1435 = vunpack.c.l.b16 %v1363
  %v1436 = vunpack.c.h.b16 %v1363
  %v1437 = vunpack.c.l.b16 %v1364
  %v1438 = vunpack.c.h.b16 %v1364
  %v1439 = vunpack.c.l.b16 %v1365
  %v1440 = vunpack.c.h.b16 %v1365
  %v1441 = vunpack.c.l.b16 %v1366
  %v1442 = vunpack.c.h.b16 %v1366
  %v1443 = vunpack.c.l.b16 %v1367
  %v1444 = vunpack.c.h.b16 %v1367
  %v1445 = vunpack.c.l.b16 %v1368
  %v1446 = vunpack.c.h.b16 %v1368
  %v1447 = vunpack.c.l.b16 %v1369
  %v1448 = vunpack.c.h.b16 %v1369
  %v1449 = vunpack.c.l.b16 %v1370
  %v1450 = vunpack.c.h.b16 %v1370
  %v1451 = vunpack.c.l.b16 %v1371
  %v1452 = vunpack.c.h.b16 %v1371
  %v1453 = vunpack.c.l.b16 %v1372
  %v1454 = vunpack.c.h.b16 %v1372
  %v1455 = vunpack.c.l.b16 %v1373
  %v1456 = vunpack.c.h.b16 %v1373
  %v1457 = vunpack.c.l.b16 %v1374
  %v1458 = vunpack.c.h.b16 %v1374
  %v1459 = vunpack.c.l.b16 %v1375
  %v1460 = vunpack.c.h.b16 %v1375
  %v1461 = vunpack.c.l.b16 %v1376
  %v1462 = vunpack.c.h.b16 %v1376
  %v1463 = vunpack.c.l.b16 %v1377
  %v1464 = vunpack.c.h.b16 %v1377
  %v1465 = vunpack.c.l.b16 %v1378
  %v1466 = vunpack.c.h.b16 %v1378
  %v1467 = vunpack.c.l.b16 %v1379
  %v1468 = vunpack.c.h.b16 %v1379
  %v1469 = vunpack.c.l.b16 %v1380
  %v1470 = vunpack.c.h.b16 %v1380
  %v1471 = vunpack.c.l.b16 %v1381
  %v1472 = vunpack.c.h.b16 %v1381
  %v1473 = vunpack.c.l.b16 %v1382
  %v1474 = vunpack.c.h.b16 %v1382
  %v1475 = vunpack.c.l.b16 %v1383
  %v1476 = vunpack.c.h.b16 %v1383
  %v1477 = vunpack.c.l.b16 %v1384
  %v1478 = vunpack.c.h.b16 %v1384
  %v1479 = vunpack.c.l.b16 %v1385
  %v1480 = vunpack.c.h.b16 %v1385
  %v1481 = vunpack.c.l.b16 %v1386
  %v1482 = vunpack.c.h.b16 %v1386
  %v1483 = vpack.c.b16 %v1423, %v1419
  %v1484 = vpack.c.b16 %v1424, %v1420
  %v1485 = vpack.c.b16 %v1425, %v1421
  %v1486 = vpack.c.b16 %v1426, %v1422
  %v1487 = vpack.c.b16 %v1431, %v1427
  %v1488 = vpack.c.b16 %v1432, %v1428
  %v1489 = vpack.c.b16 %v1433, %v1429
  %v1490 = vpack.c.b16 %v1434, %v1430
  %v1491 = vpack.c.b16 %v1439, %v1435
  %v1492 = vpack.c.b16 %v1440, %v1436
  %v1493 = vpack.c.b16 %v1441, %v1437
  %v1494 = vpack.c.b16 %v1442, %v1438
  %v1495 = vpack.c.b16 %v1447, %v1443
  %v1496 = vpack.c.b16 %v1448, %v1444
  %v1497 = vpack.c.b16 %v1449, %v1445
  %v1498 = vpack.c.b16 %v1450, %v1446
  %v1499 = vpack.c.b16 %v1455, %v1451
  %v1500 = vpack.c.b16 %v1456, %v1452
  %v1501 = vpack.c.b16 %v1457, %v1453
  %v1502 = vpack.c.b16 %v1458, %v1454
  %v1503 = vpack.c.b16 %v1463, %v1459
  %v1504 = vpack.c.b16 %v1464, %v1460
  %v1505 = vpack.c.b16 %v1465, %v1461
  %v1506 = vpack.c.b16 %v1466, %v1462
  %v1507 = vpack.c.b16 %v1471, %v1467
  %v1508 = vpack.c.b16 %v1472, %v1468
  %v1509 = vpack.c.b16 %v1473, %v1469
  %v1510 = vpack.c.b16 %v1474, %v1470
  %v1511 = vpack.c.b16 %v1479, %v1475
  %v1512 = vpack.c.b16 %v1480, %v1476
  %v1513 = vpack.c.b16 %v1481, %v1477
  %v1514 = vpack.c.b16 %v1482, %v1478
  %1547 = vmatprep.subr.bf16.mxu0 %v1512
  %1548 = vmatpush1.bf16.msra.mxu0 %v1511
  %1549 = vmatprep.subr.bf16.mxu0 %v1508
  %1550 = vmatpush1.bf16.msra.mxu0 %v1507
  %1551 = vmatprep.subr.bf16.mxu0 %v1504
  %1552 = vmatpush1.bf16.msra.mxu0 %v1503
  %1553 = vmatprep.subr.bf16.mxu0 %v1500
  %1554 = vmatpush1.bf16.msra.mxu0 %v1499
  %1555 = vmatprep.subr.bf16.mxu0 %v1496
  %1556 = vmatpush1.bf16.msra.mxu0 %v1495
  %1557 = vmatprep.subr.bf16.mxu0 %v1492
  %1558 = vmatpush1.bf16.msra.mxu0 %v1491
  %1559 = vmatprep.subr.bf16.mxu0 %v1488
  %1560 = vmatpush1.bf16.msra.mxu0 %v1487
  %1561 = vmatprep.subr.bf16.mxu0 %v1484
  %1562 = vmatpush1.bf16.msra.mxu0 %v1483
  %1563 = vmatprep.subr.bf16.mxu0 0
  %1564 = vmatpush2.bf16.msra.mxu0 0
  %1565 = vmatprep.subr.bf16.mxu0 0
  %1566 = vmatpush2.bf16.msra.mxu0 0
  %1567 = vmatprep.subr.bf16.mxu0 0
  %1568 = vmatpush2.bf16.msra.mxu0 0
  %1569 = vmatprep.subr.bf16.mxu0 0
  %1570 = vmatpush2.bf16.msra.mxu0 0
  %1571 = vmatprep.subr.bf16.mxu0 0
  %1572 = vmatpush2.bf16.msra.mxu0 0
  %1573 = vmatprep.subr.bf16.mxu0 0
  %1574 = vmatpush2.bf16.msra.mxu0 0
  %1575 = vmatprep.subr.bf16.mxu0 0
  %1576 = vmatpush2.bf16.msra.mxu0 0
  %1577 = vmatprep.subr.bf16.mxu0 0
  %1578 = vmatpush2.bf16.msra.mxu0 0
  %1579 = vmatprep.mubr.bf16.mxu0 0
  %1580 = vmatmul.mubr.bf16.gmra.mxu0 %v1343
  %v1581 = vpop.f32.mrf.mxu0
  %v1582 = vadd.f32 0.0, %v1581
  %v1583 = vpop.f32.mrf.mxu0
  %v1584 = vadd.f32 0.0, %v1583
  %v1585 = vpop.f32.mrf.mxu0
  %v1586 = vpop.f32.mrf.mxu0
  %1587 = vdwg.mxu0
  %1588 = vmatprep.subr.bf16.mxu0 %v1514
  %1589 = vmatpush1.bf16.msra.mxu0 %v1513
  %1590 = vmatprep.subr.bf16.mxu0 %v1510
  %1591 = vmatpush1.bf16.msra.mxu0 %v1509
  %1592 = vmatprep.subr.bf16.mxu0 %v1506
  %1593 = vmatpush1.bf16.msra.mxu0 %v1505
  %1594 = vmatprep.subr.bf16.mxu0 %v1502
  %1595 = vmatpush1.bf16.msra.mxu0 %v1501
  %1596 = vmatprep.subr.bf16.mxu0 %v1498
  %1597 = vmatpush1.bf16.msra.mxu0 %v1497
  %1598 = vmatprep.subr.bf16.mxu0 %v1494
  %1599 = vmatpush1.bf16.msra.mxu0 %v1493
  %1600 = vmatprep.subr.bf16.mxu0 %v1490
  %1601 = vmatpush1.bf16.msra.mxu0 %v1489
  %1602 = vmatprep.subr.bf16.mxu0 %v1486
  %1603 = vmatpush1.bf16.msra.mxu0 %v1485
  %1604 = vmatprep.subr.bf16.mxu0 0
  %1605 = vmatpush2.bf16.msra.mxu0 0
  %1606 = vmatprep.subr.bf16.mxu0 0
  %1607 = vmatpush2.bf16.msra.mxu0 0
  %1608 = vmatprep.subr.bf16.mxu0 0
  %1609 = vmatpush2.bf16.msra.mxu0 0
  %1610 = vmatprep.subr.bf16.mxu0 0
  %1611 = vmatpush2.bf16.msra.mxu0 0
  %1612 = vmatprep.subr.bf16.mxu0 0
  %1613 = vmatpush2.bf16.msra.mxu0 0
  %1614 = vmatprep.subr.bf16.mxu0 0
  %1615 = vmatpush2.bf16.msra.mxu0 0
  %1616 = vmatprep.subr.bf16.mxu0 0
  %1617 = vmatpush2.bf16.msra.mxu0 0
  %1618 = vmatprep.subr.bf16.mxu0 0
  %1619 = vmatpush2.bf16.msra.mxu0 0
  %1620 = vmatprep.mubr.bf16.mxu0 0
  %1621 = vmatmul.mubr.bf16.gmra.mxu0 %v1343
  %v1622 = vpop.f32.mrf.mxu0
  %v1623 = vadd.f32 0.0, %v1622
  %v1624 = vpop.f32.mrf.mxu0
  %v1625 = vadd.f32 0.0, %v1624
  %v1626 = vpop.f32.mrf.mxu0
  %v1627 = vpop.f32.mrf.mxu0
  %1628 = vdwg.mxu0
  %v1629 = vadd.f32 %v1351, %v1582
  %v1630 = vadd.f32 %v1352, %v1584
  %v1631 = vadd.f32 %v1353, %v1623
  %v1632 = vadd.f32 %v1354, %v1625
  %v1633 = vxor.u32 %v1629, 2147483648
  %v1634 = vxor.u32 %v1630, 2147483648
  %v1635 = vxor.u32 %v1631, 2147483648
  %v1636 = vmul.f32 %v1633, 1.442695
  %v1637 = vpow.pop %v1636
  %v1638 = vmul.f32 %v1634, 1.442695
  %v1639 = vpow.pop %v1638
  %v1640 = vmul.f32 %v1635, 1.442695
  %v1641 = vpow.pop %v1640
  %v1642 = vadd.f32 %v1637, 1.0
  %v1643 = vadd.f32 %v1639, 1.0
  %v1644 = vadd.f32 %v1641, 1.0
  %v1645 = vrcp.pop %v1642
  %v1646 = vmul.f32 1.0, %v1645
  %v1647 = vrcp.pop %v1643
  %v1648 = vmul.f32 1.0, %v1647
  %v1649 = vrcp.pop %v1644
  %v1650 = vmul.f32 1.0, %v1649
  %v1651 = vtanh.pop %v1632
  %v1652 = vmul.f32 %v1648, %v1340
  %v1653 = vmul.f32 %v1646, %v1651
  %v1654 = vadd.f32 %v1652, %v1653
  %v1655 = vtanh.pop %v1654
  %v1656 = vmul.f32 %v1650, %v1655
  %v1657 = vpack.c.bf16 %v1656, %v1656
  %s1658 = scalar_lea.vmem [#allocation3], 12
  %1659 = vst [vmem:[%s1658] sm:$0xf] %v1657
  %s1660 = smul.u32 4, 4
  %s1661 = smul.addr %s1660, 4
  %s1662 = scalar_lea.vmem [#allocation2], %s1661
  %v1663 = vld [vmem:[%s1662] sm:$0xff]
  %v1664 = vld [vmem:[%s1662 + $0x8] sm:$0xff]
  %v1665 = vunpack.c.l.bf16 %v1663
  %v1666 = vunpack.c.h.bf16 %v1663
  %v1667 = vunpack.c.l.bf16 %v1664
  %v1668 = vunpack.c.h.bf16 %v1664
  %v1669 = vld [vmem:[%s4] sm:$0xff]
  %v1670 = vld [vmem:[%s4 + $0x8] sm:$0xff]
  %v1671 = vld [vmem:[%s4 + $0x10] sm:$0xff]
  %v1672 = vld [vmem:[%s4 + $0x18] sm:$0xff]
  %v1673 = vld [vmem:[%s4 + $0x20] sm:$0xff]
  %v1674 = vld [vmem:[%s4 + $0x28] sm:$0xff]
  %v1675 = vld [vmem:[%s4 + $0x30] sm:$0xff]
  %v1676 = vld [vmem:[%s4 + $0x38] sm:$0xff]
  %v1677 = vld [vmem:[%s4 + $0x40] sm:$0xff]
  %v1678 = vld [vmem:[%s4 + $0x48] sm:$0xff]
  %v1679 = vld [vmem:[%s4 + $0x50] sm:$0xff]
  %v1680 = vld [vmem:[%s4 + $0x58] sm:$0xff]
  %v1681 = vld [vmem:[%s4 + $0x60] sm:$0xff]
  %v1682 = vld [vmem:[%s4 + $0x68] sm:$0xff]
  %v1683 = vld [vmem:[%s4 + $0x70] sm:$0xff]
  %v1684 = vld [vmem:[%s4 + $0x78] sm:$0xff]
  %v1685 = vld [vmem:[%s4 + $0x80] sm:$0xff]
  %v1686 = vld [vmem:[%s4 + $0x88] sm:$0xff]
  %v1687 = vld [vmem:[%s4 + $0x90] sm:$0xff]
  %v1688 = vld [vmem:[%s4 + $0x98] sm:$0xff]
  %v1689 = vld [vmem:[%s4 + $0xa0] sm:$0xff]
  %v1690 = vld [vmem:[%s4 + $0xa8] sm:$0xff]
  %v1691 = vld [vmem:[%s4 + $0xb0] sm:$0xff]
  %v1692 = vld [vmem:[%s4 + $0xb8] sm:$0xff]
  %v1693 = vld [vmem:[%s4 + $0xc0] sm:$0xff]
  %v1694 = vld [vmem:[%s4 + $0xc8] sm:$0xff]
  %v1695 = vld [vmem:[%s4 + $0xd0] sm:$0xff]
  %v1696 = vld [vmem:[%s4 + $0xd8] sm:$0xff]
  %v1697 = vld [vmem:[%s4 + $0xe0] sm:$0xff]
  %v1698 = vld [vmem:[%s4 + $0xe8] sm:$0xff]
  %v1699 = vld [vmem:[%s4 + $0xf0] sm:$0xff]
  %v1700 = vld [vmem:[%s4 + $0xf8] sm:$0xff]
  %v1733 = vunpack.c.l.b16 %v1669
  %v1734 = vunpack.c.h.b16 %v1669
  %v1735 = vunpack.c.l.b16 %v1670
  %v1736 = vunpack.c.h.b16 %v1670
  %v1737 = vunpack.c.l.b16 %v1671
  %v1738 = vunpack.c.h.b16 %v1671
  %v1739 = vunpack.c.l.b16 %v1672
  %v1740 = vunpack.c.h.b16 %v1672
  %v1741 = vunpack.c.l.b16 %v1673
  %v1742 = vunpack.c.h.b16 %v1673
  %v1743 = vunpack.c.l.b16 %v1674
  %v1744 = vunpack.c.h.b16 %v1674
  %v1745 = vunpack.c.l.b16 %v1675
  %v1746 = vunpack.c.h.b16 %v1675
  %v1747 = vunpack.c.l.b16 %v1676
  %v1748 = vunpack.c.h.b16 %v1676
  %v1749 = vunpack.c.l.b16 %v1677
  %v1750 = vunpack.c.h.b16 %v1677
  %v1751 = vunpack.c.l.b16 %v1678
  %v1752 = vunpack.c.h.b16 %v1678
  %v1753 = vunpack.c.l.b16 %v1679
  %v1754 = vunpack.c.h.b16 %v1679
  %v1755 = vunpack.c.l.b16 %v1680
  %v1756 = vunpack.c.h.b16 %v1680
  %v1757 = vunpack.c.l.b16 %v1681
  %v1758 = vunpack.c.h.b16 %v1681
  %v1759 = vunpack.c.l.b16 %v1682
  %v1760 = vunpack.c.h.b16 %v1682
  %v1761 = vunpack.c.l.b16 %v1683
  %v1762 = vunpack.c.h.b16 %v1683
  %v1763 = vunpack.c.l.b16 %v1684
  %v1764 = vunpack.c.h.b16 %v1684
  %v1765 = vunpack.c.l.b16 %v1685
  %v1766 = vunpack.c.h.b16 %v1685
  %v1767 = vunpack.c.l.b16 %v1686
  %v1768 = vunpack.c.h.b16 %v1686
  %v1769 = vunpack.c.l.b16 %v1687
  %v1770 = vunpack.c.h.b16 %v1687
  %v1771 = vunpack.c.l.b16 %v1688
  %v1772 = vunpack.c.h.b16 %v1688
  %v1773 = vunpack.c.l.b16 %v1689
  %v1774 = vunpack.c.h.b16 %v1689
  %v1775 = vunpack.c.l.b16 %v1690
  %v1776 = vunpack.c.h.b16 %v1690
  %v1777 = vunpack.c.l.b16 %v1691
  %v1778 = vunpack.c.h.b16 %v1691
  %v1779 = vunpack.c.l.b16 %v1692
  %v1780 = vunpack.c.h.b16 %v1692
  %v1781 = vunpack.c.l.b16 %v1693
  %v1782 = vunpack.c.h.b16 %v1693
  %v1783 = vunpack.c.l.b16 %v1694
  %v1784 = vunpack.c.h.b16 %v1694
  %v1785 = vunpack.c.l.b16 %v1695
  %v1786 = vunpack.c.h.b16 %v1695
  %v1787 = vunpack.c.l.b16 %v1696
  %v1788 = vunpack.c.h.b16 %v1696
  %v1789 = vunpack.c.l.b16 %v1697
  %v1790 = vunpack.c.h.b16 %v1697
  %v1791 = vunpack.c.l.b16 %v1698
  %v1792 = vunpack.c.h.b16 %v1698
  %v1793 = vunpack.c.l.b16 %v1699
  %v1794 = vunpack.c.h.b16 %v1699
  %v1795 = vunpack.c.l.b16 %v1700
  %v1796 = vunpack.c.h.b16 %v1700
  %v1797 = vpack.c.b16 %v1737, %v1733
  %v1798 = vpack.c.b16 %v1738, %v1734
  %v1799 = vpack.c.b16 %v1739, %v1735
  %v1800 = vpack.c.b16 %v1740, %v1736
  %v1801 = vpack.c.b16 %v1745, %v1741
  %v1802 = vpack.c.b16 %v1746, %v1742
  %v1803 = vpack.c.b16 %v1747, %v1743
  %v1804 = vpack.c.b16 %v1748, %v1744
  %v1805 = vpack.c.b16 %v1753, %v1749
  %v1806 = vpack.c.b16 %v1754, %v1750
  %v1807 = vpack.c.b16 %v1755, %v1751
  %v1808 = vpack.c.b16 %v1756, %v1752
  %v1809 = vpack.c.b16 %v1761, %v1757
  %v1810 = vpack.c.b16 %v1762, %v1758
  %v1811 = vpack.c.b16 %v1763, %v1759
  %v1812 = vpack.c.b16 %v1764, %v1760
  %v1813 = vpack.c.b16 %v1769, %v1765
  %v1814 = vpack.c.b16 %v1770, %v1766
  %v1815 = vpack.c.b16 %v1771, %v1767
  %v1816 = vpack.c.b16 %v1772, %v1768
  %v1817 = vpack.c.b16 %v1777, %v1773
  %v1818 = vpack.c.b16 %v1778, %v1774
  %v1819 = vpack.c.b16 %v1779, %v1775
  %v1820 = vpack.c.b16 %v1780, %v1776
  %v1821 = vpack.c.b16 %v1785, %v1781
  %v1822 = vpack.c.b16 %v1786, %v1782
  %v1823 = vpack.c.b16 %v1787, %v1783
  %v1824 = vpack.c.b16 %v1788, %v1784
  %v1825 = vpack.c.b16 %v1793, %v1789
  %v1826 = vpack.c.b16 %v1794, %v1790
  %v1827 = vpack.c.b16 %v1795, %v1791
  %v1828 = vpack.c.b16 %v1796, %v1792
  %1861 = vmatprep.subr.bf16.mxu0 %v1826
  %1862 = vmatpush1.bf16.msra.mxu0 %v1825
  %1863 = vmatprep.subr.bf16.mxu0 %v1822
  %1864 = vmatpush1.bf16.msra.mxu0 %v1821
  %1865 = vmatprep.subr.bf16.mxu0 %v1818
  %1866 = vmatpush1.bf16.msra.mxu0 %v1817
  %1867 = vmatprep.subr.bf16.mxu0 %v1814
  %1868 = vmatpush1.bf16.msra.mxu0 %v1813
  %1869 = vmatprep.subr.bf16.mxu0 %v1810
  %1870 = vmatpush1.bf16.msra.mxu0 %v1809
  %1871 = vmatprep.subr.bf16.mxu0 %v1806
  %1872 = vmatpush1.bf16.msra.mxu0 %v1805
  %1873 = vmatprep.subr.bf16.mxu0 %v1802
  %1874 = vmatpush1.bf16.msra.mxu0 %v1801
  %1875 = vmatprep.subr.bf16.mxu0 %v1798
  %1876 = vmatpush1.bf16.msra.mxu0 %v1797
  %1877 = vmatprep.subr.bf16.mxu0 0
  %1878 = vmatpush2.bf16.msra.mxu0 0
  %1879 = vmatprep.subr.bf16.mxu0 0
  %1880 = vmatpush2.bf16.msra.mxu0 0
  %1881 = vmatprep.subr.bf16.mxu0 0
  %1882 = vmatpush2.bf16.msra.mxu0 0
  %1883 = vmatprep.subr.bf16.mxu0 0
  %1884 = vmatpush2.bf16.msra.mxu0 0
  %1885 = vmatprep.subr.bf16.mxu0 0
  %1886 = vmatpush2.bf16.msra.mxu0 0
  %1887 = vmatprep.subr.bf16.mxu0 0
  %1888 = vmatpush2.bf16.msra.mxu0 0
  %1889 = vmatprep.subr.bf16.mxu0 0
  %1890 = vmatpush2.bf16.msra.mxu0 0
  %1891 = vmatprep.subr.bf16.mxu0 0
  %1892 = vmatpush2.bf16.msra.mxu0 0
  %1893 = vmatprep.mubr.bf16.mxu0 0
  %1894 = vmatmul.mubr.bf16.gmra.mxu0 %v1657
  %v1895 = vpop.f32.mrf.mxu0
  %v1896 = vadd.f32 0.0, %v1895
  %v1897 = vpop.f32.mrf.mxu0
  %v1898 = vadd.f32 0.0, %v1897
  %v1899 = vpop.f32.mrf.mxu0
  %v1900 = vpop.f32.mrf.mxu0
  %1901 = vdwg.mxu0
  %1902 = vmatprep.subr.bf16.mxu0 %v1828
  %1903 = vmatpush1.bf16.msra.mxu0 %v1827
  %1904 = vmatprep.subr.bf16.mxu0 %v1824
  %1905 = vmatpush1.bf16.msra.mxu0 %v1823
  %1906 = vmatprep.subr.bf16.mxu0 %v1820
  %1907 = vmatpush1.bf16.msra.mxu0 %v1819
  %1908 = vmatprep.subr.bf16.mxu0 %v1816
  %1909 = vmatpush1.bf16.msra.mxu0 %v1815
  %1910 = vmatprep.subr.bf16.mxu0 %v1812
  %1911 = vmatpush1.bf16.msra.mxu0 %v1811
  %1912 = vmatprep.subr.bf16.mxu0 %v1808
  %1913 = vmatpush1.bf16.msra.mxu0 %v1807
  %1914 = vmatprep.subr.bf16.mxu0 %v1804
  %1915 = vmatpush1.bf16.msra.mxu0 %v1803
  %1916 = vmatprep.subr.bf16.mxu0 %v1800
  %1917 = vmatpush1.bf16.msra.mxu0 %v1799
  %1918 = vmatprep.subr.bf16.mxu0 0
  %1919 = vmatpush2.bf16.msra.mxu0 0
  %1920 = vmatprep.subr.bf16.mxu0 0
  %1921 = vmatpush2.bf16.msra.mxu0 0
  %1922 = vmatprep.subr.bf16.mxu0 0
  %1923 = vmatpush2.bf16.msra.mxu0 0
  %1924 = vmatprep.subr.bf16.mxu0 0
  %1925 = vmatpush2.bf16.msra.mxu0 0
  %1926 = vmatprep.subr.bf16.mxu0 0
  %1927 = vmatpush2.bf16.msra.mxu0 0
  %1928 = vmatprep.subr.bf16.mxu0 0
  %1929 = vmatpush2.bf16.msra.mxu0 0
  %1930 = vmatprep.subr.bf16.mxu0 0
  %1931 = vmatpush2.bf16.msra.mxu0 0
  %1932 = vmatprep.subr.bf16.mxu0 0
  %1933 = vmatpush2.bf16.msra.mxu0 0
  %1934 = vmatprep.mubr.bf16.mxu0 0
  %1935 = vmatmul.mubr.bf16.gmra.mxu0 %v1657
  %v1936 = vpop.f32.mrf.mxu0
  %v1937 = vadd.f32 0.0, %v1936
  %v1938 = vpop.f32.mrf.mxu0
  %v1939 = vadd.f32 0.0, %v1938
  %v1940 = vpop.f32.mrf.mxu0
  %v1941 = vpop.f32.mrf.mxu0
  %1942 = vdwg.mxu0
  %v1943 = vadd.f32 %v1665, %v1896
  %v1944 = vadd.f32 %v1666, %v1898
  %v1945 = vadd.f32 %v1667, %v1937
  %v1946 = vadd.f32 %v1668, %v1939
  %v1947 = vxor.u32 %v1943, 2147483648
  %v1948 = vxor.u32 %v1944, 2147483648
  %v1949 = vxor.u32 %v1945, 2147483648
  %v1950 = vmul.f32 %v1947, 1.442695
  %v1951 = vpow.pop %v1950
  %v1952 = vmul.f32 %v1948, 1.442695
  %v1953 = vpow.pop %v1952
  %v1954 = vmul.f32 %v1949, 1.442695
  %v1955 = vpow.pop %v1954
  %v1956 = vadd.f32 %v1951, 1.0
  %v1957 = vadd.f32 %v1953, 1.0
  %v1958 = vadd.f32 %v1955, 1.0
  %v1959 = vrcp.pop %v1956
  %v1960 = vmul.f32 1.0, %v1959
  %v1961 = vrcp.pop %v1957
  %v1962 = vmul.f32 1.0, %v1961
  %v1963 = vrcp.pop %v1958
  %v1964 = vmul.f32 1.0, %v1963
  %v1965 = vtanh.pop %v1946
  %v1966 = vmul.f32 %v1962, %v1654
  %v1967 = vmul.f32 %v1960, %v1965
  %v1968 = vadd.f32 %v1966, %v1967
  %v1969 = vtanh.pop %v1968
  %v1970 = vmul.f32 %v1964, %v1969
  %v1971 = vpack.c.bf16 %v1970, %v1970
  %s1972 = scalar_lea.vmem [#allocation3], 16
  %1973 = vst [vmem:[%s1972] sm:$0xf] %v1971
  %s1974 = smul.u32 5, 4
  %s1975 = smul.addr %s1974, 4
  %s1976 = scalar_lea.vmem [#allocation2], %s1975
  %v1977 = vld [vmem:[%s1976] sm:$0xff]
  %v1978 = vld [vmem:[%s1976 + $0x8] sm:$0xff]
  %v1979 = vunpack.c.l.bf16 %v1977
  %v1980 = vunpack.c.h.bf16 %v1977
  %v1981 = vunpack.c.l.bf16 %v1978
  %v1982 = vunpack.c.h.bf16 %v1978
  %v1983 = vld [vmem:[%s4] sm:$0xff]
  %v1984 = vld [vmem:[%s4 + $0x8] sm:$0xff]
  %v1985 = vld [vmem:[%s4 + $0x10] sm:$0xff]
  %v1986 = vld [vmem:[%s4 + $0x18] sm:$0xff]
  %v1987 = vld [vmem:[%s4 + $0x20] sm:$0xff]
  %v1988 = vld [vmem:[%s4 + $0x28] sm:$0xff]
  %v1989 = vld [vmem:[%s4 + $0x30] sm:$0xff]
  %v1990 = vld [vmem:[%s4 + $0x38] sm:$0xff]
  %v1991 = vld [vmem:[%s4 + $0x40] sm:$0xff]
  %v1992 = vld [vmem:[%s4 + $0x48] sm:$0xff]
  %v1993 = vld [vmem:[%s4 + $0x50] sm:$0xff]
  %v1994 = vld [vmem:[%s4 + $0x58] sm:$0xff]
  %v1995 = vld [vmem:[%s4 + $0x60] sm:$0xff]
  %v1996 = vld [vmem:[%s4 + $0x68] sm:$0xff]
  %v1997 = vld [vmem:[%s4 + $0x70] sm:$0xff]
  %v1998 = vld [vmem:[%s4 + $0x78] sm:$0xff]
  %v1999 = vld [vmem:[%s4 + $0x80] sm:$0xff]
  %v2000 = vld [vmem:[%s4 + $0x88] sm:$0xff]
  %v2001 = vld [vmem:[%s4 + $0x90] sm:$0xff]
  %v2002 = vld [vmem:[%s4 + $0x98] sm:$0xff]
  %v2003 = vld [vmem:[%s4 + $0xa0] sm:$0xff]
  %v2004 = vld [vmem:[%s4 + $0xa8] sm:$0xff]
  %v2005 = vld [vmem:[%s4 + $0xb0] sm:$0xff]
  %v2006 = vld [vmem:[%s4 + $0xb8] sm:$0xff]
  %v2007 = vld [vmem:[%s4 + $0xc0] sm:$0xff]
  %v2008 = vld [vmem:[%s4 + $0xc8] sm:$0xff]
  %v2009 = vld [vmem:[%s4 + $0xd0] sm:$0xff]
  %v2010 = vld [vmem:[%s4 + $0xd8] sm:$0xff]
  %v2011 = vld [vmem:[%s4 + $0xe0] sm:$0xff]
  %v2012 = vld [vmem:[%s4 + $0xe8] sm:$0xff]
  %v2013 = vld [vmem:[%s4 + $0xf0] sm:$0xff]
  %v2014 = vld [vmem:[%s4 + $0xf8] sm:$0xff]
  %v2047 = vunpack.c.l.b16 %v1983
  %v2048 = vunpack.c.h.b16 %v1983
  %v2049 = vunpack.c.l.b16 %v1984
  %v2050 = vunpack.c.h.b16 %v1984
  %v2051 = vunpack.c.l.b16 %v1985
  %v2052 = vunpack.c.h.b16 %v1985
  %v2053 = vunpack.c.l.b16 %v1986
  %v2054 = vunpack.c.h.b16 %v1986
  %v2055 = vunpack.c.l.b16 %v1987
  %v2056 = vunpack.c.h.b16 %v1987
  %v2057 = vunpack.c.l.b16 %v1988
  %v2058 = vunpack.c.h.b16 %v1988
  %v2059 = vunpack.c.l.b16 %v1989
  %v2060 = vunpack.c.h.b16 %v1989
  %v2061 = vunpack.c.l.b16 %v1990
  %v2062 = vunpack.c.h.b16 %v1990
  %v2063 = vunpack.c.l.b16 %v1991
  %v2064 = vunpack.c.h.b16 %v1991
  %v2065 = vunpack.c.l.b16 %v1992
  %v2066 = vunpack.c.h.b16 %v1992
  %v2067 = vunpack.c.l.b16 %v1993
  %v2068 = vunpack.c.h.b16 %v1993
  %v2069 = vunpack.c.l.b16 %v1994
  %v2070 = vunpack.c.h.b16 %v1994
  %v2071 = vunpack.c.l.b16 %v1995
  %v2072 = vunpack.c.h.b16 %v1995
  %v2073 = vunpack.c.l.b16 %v1996
  %v2074 = vunpack.c.h.b16 %v1996
  %v2075 = vunpack.c.l.b16 %v1997
  %v2076 = vunpack.c.h.b16 %v1997
  %v2077 = vunpack.c.l.b16 %v1998
  %v2078 = vunpack.c.h.b16 %v1998
  %v2079 = vunpack.c.l.b16 %v1999
  %v2080 = vunpack.c.h.b16 %v1999
  %v2081 = vunpack.c.l.b16 %v2000
  %v2082 = vunpack.c.h.b16 %v2000
  %v2083 = vunpack.c.l.b16 %v2001
  %v2084 = vunpack.c.h.b16 %v2001
  %v2085 = vunpack.c.l.b16 %v2002
  %v2086 = vunpack.c.h.b16 %v2002
  %v2087 = vunpack.c.l.b16 %v2003
  %v2088 = vunpack.c.h.b16 %v2003
  %v2089 = vunpack.c.l.b16 %v2004
  %v2090 = vunpack.c.h.b16 %v2004
  %v2091 = vunpack.c.l.b16 %v2005
  %v2092 = vunpack.c.h.b16 %v2005
  %v2093 = vunpack.c.l.b16 %v2006
  %v2094 = vunpack.c.h.b16 %v2006
  %v2095 = vunpack.c.l.b16 %v2007
  %v2096 = vunpack.c.h.b16 %v2007
  %v2097 = vunpack.c.l.b16 %v2008
  %v2098 = vunpack.c.h.b16 %v2008
  %v2099 = vunpack.c.l.b16 %v2009
  %v2100 = vunpack.c.h.b16 %v2009
  %v2101 = vunpack.c.l.b16 %v2010
  %v2102 = vunpack.c.h.b16 %v2010
  %v2103 = vunpack.c.l.b16 %v2011
  %v2104 = vunpack.c.h.b16 %v2011
  %v2105 = vunpack.c.l.b16 %v2012
  %v2106 = vunpack.c.h.b16 %v2012
  %v2107 = vunpack.c.l.b16 %v2013
  %v2108 = vunpack.c.h.b16 %v2013
  %v2109 = vunpack.c.l.b16 %v2014
  %v2110 = vunpack.c.h.b16 %v2014
  %v2111 = vpack.c.b16 %v2051, %v2047
  %v2112 = vpack.c.b16 %v2052, %v2048
  %v2113 = vpack.c.b16 %v2053, %v2049
  %v2114 = vpack.c.b16 %v2054, %v2050
  %v2115 = vpack.c.b16 %v2059, %v2055
  %v2116 = vpack.c.b16 %v2060, %v2056
  %v2117 = vpack.c.b16 %v2061, %v2057
  %v2118 = vpack.c.b16 %v2062, %v2058
  %v2119 = vpack.c.b16 %v2067, %v2063
  %v2120 = vpack.c.b16 %v2068, %v2064
  %v2121 = vpack.c.b16 %v2069, %v2065
  %v2122 = vpack.c.b16 %v2070, %v2066
  %v2123 = vpack.c.b16 %v2075, %v2071
  %v2124 = vpack.c.b16 %v2076, %v2072
  %v2125 = vpack.c.b16 %v2077, %v2073
  %v2126 = vpack.c.b16 %v2078, %v2074
  %v2127 = vpack.c.b16 %v2083, %v2079
  %v2128 = vpack.c.b16 %v2084, %v2080
  %v2129 = vpack.c.b16 %v2085, %v2081
  %v2130 = vpack.c.b16 %v2086, %v2082
  %v2131 = vpack.c.b16 %v2091, %v2087
  %v2132 = vpack.c.b16 %v2092, %v2088
  %v2133 = vpack.c.b16 %v2093, %v2089
  %v2134 = vpack.c.b16 %v2094, %v2090
  %v2135 = vpack.c.b16 %v2099, %v2095
  %v2136 = vpack.c.b16 %v2100, %v2096
  %v2137 = vpack.c.b16 %v2101, %v2097
  %v2138 = vpack.c.b16 %v2102, %v2098
  %v2139 = vpack.c.b16 %v2107, %v2103
  %v2140 = vpack.c.b16 %v2108, %v2104
  %v2141 = vpack.c.b16 %v2109, %v2105
  %v2142 = vpack.c.b16 %v2110, %v2106
  %2175 = vmatprep.subr.bf16.mxu0 %v2140
  %2176 = vmatpush1.bf16.msra.mxu0 %v2139
  %2177 = vmatprep.subr.bf16.mxu0 %v2136
  %2178 = vmatpush1.bf16.msra.mxu0 %v2135
  %2179 = vmatprep.subr.bf16.mxu0 %v2132
  %2180 = vmatpush1.bf16.msra.mxu0 %v2131
  %2181 = vmatprep.subr.bf16.mxu0 %v2128
  %2182 = vmatpush1.bf16.msra.mxu0 %v2127
  %2183 = vmatprep.subr.bf16.mxu0 %v2124
  %2184 = vmatpush1.bf16.msra.mxu0 %v2123
  %2185 = vmatprep.subr.bf16.mxu0 %v2120
  %2186 = vmatpush1.bf16.msra.mxu0 %v2119
  %2187 = vmatprep.subr.bf16.mxu0 %v2116
  %2188 = vmatpush1.bf16.msra.mxu0 %v2115
  %2189 = vmatprep.subr.bf16.mxu0 %v2112
  %2190 = vmatpush1.bf16.msra.mxu0 %v2111
  %2191 = vmatprep.subr.bf16.mxu0 0
  %2192 = vmatpush2.bf16.msra.mxu0 0
  %2193 = vmatprep.subr.bf16.mxu0 0
  %2194 = vmatpush2.bf16.msra.mxu0 0
  %2195 = vmatprep.subr.bf16.mxu0 0
  %2196 = vmatpush2.bf16.msra.mxu0 0
  %2197 = vmatprep.subr.bf16.mxu0 0
  %2198 = vmatpush2.bf16.msra.mxu0 0
  %2199 = vmatprep.subr.bf16.mxu0 0
  %2200 = vmatpush2.bf16.msra.mxu0 0
  %2201 = vmatprep.subr.bf16.mxu0 0
  %2202 = vmatpush2.bf16.msra.mxu0 0
  %2203 = vmatprep.subr.bf16.mxu0 0
  %2204 = vmatpush2.bf16.msra.mxu0 0
  %2205 = vmatprep.subr.bf16.mxu0 0
  %2206 = vmatpush2.bf16.msra.mxu0 0
  %2207 = vmatprep.mubr.bf16.mxu0 0
  %2208 = vmatmul.mubr.bf16.gmra.mxu0 %v1971
  %v2209 = vpop.f32.mrf.mxu0
  %v2210 = vadd.f32 0.0, %v2209
  %v2211 = vpop.f32.mrf.mxu0
  %v2212 = vadd.f32 0.0, %v2211
  %v2213 = vpop.f32.mrf.mxu0
  %v2214 = vpop.f32.mrf.mxu0
  %2215 = vdwg.mxu0
  %2216 = vmatprep.subr.bf16.mxu0 %v2142
  %2217 = vmatpush1.bf16.msra.mxu0 %v2141
  %2218 = vmatprep.subr.bf16.mxu0 %v2138
  %2219 = vmatpush1.bf16.msra.mxu0 %v2137
  %2220 = vmatprep.subr.bf16.mxu0 %v2134
  %2221 = vmatpush1.bf16.msra.mxu0 %v2133
  %2222 = vmatprep.subr.bf16.mxu0 %v2130
  %2223 = vmatpush1.bf16.msra.mxu0 %v2129
  %2224 = vmatprep.subr.bf16.mxu0 %v2126
  %2225 = vmatpush1.bf16.msra.mxu0 %v2125
  %2226 = vmatprep.subr.bf16.mxu0 %v2122
  %2227 = vmatpush1.bf16.msra.mxu0 %v2121
  %2228 = vmatprep.subr.bf16.mxu0 %v2118
  %2229 = vmatpush1.bf16.msra.mxu0 %v2117
  %2230 = vmatprep.subr.bf16.mxu0 %v2114
  %2231 = vmatpush1.bf16.msra.mxu0 %v2113
  %2232 = vmatprep.subr.bf16.mxu0 0
  %2233 = vmatpush2.bf16.msra.mxu0 0
  %2234 = vmatprep.subr.bf16.mxu0 0
  %2235 = vmatpush2.bf16.msra.mxu0 0
  %2236 = vmatprep.subr.bf16.mxu0 0
  %2237 = vmatpush2.bf16.msra.mxu0 0
  %2238 = vmatprep.subr.bf16.mxu0 0
  %2239 = vmatpush2.bf16.msra.mxu0 0
  %2240 = vmatprep.subr.bf16.mxu0 0
  %2241 = vmatpush2.bf16.msra.mxu0 0
  %2242 = vmatprep.subr.bf16.mxu0 0
  %2243 = vmatpush2.bf16.msra.mxu0 0
  %2244 = vmatprep.subr.bf16.mxu0 0
  %2245 = vmatpush2.bf16.msra.mxu0 0
  %2246 = vmatprep.subr.bf16.mxu0 0
  %2247 = vmatpush2.bf16.msra.mxu0 0
  %2248 = vmatprep.mubr.bf16.mxu0 0
  %2249 = vmatmul.mubr.bf16.gmra.mxu0 %v1971
  %v2250 = vpop.f32.mrf.mxu0
  %v2251 = vadd.f32 0.0, %v2250
  %v2252 = vpop.f32.mrf.mxu0
  %v2253 = vadd.f32 0.0, %v2252
  %v2254 = vpop.f32.mrf.mxu0
  %v2255 = vpop.f32.mrf.mxu0
  %2256 = vdwg.mxu0
  %v2257 = vadd.f32 %v1979, %v2210
  %v2258 = vadd.f32 %v1980, %v2212
  %v2259 = vadd.f32 %v1981, %v2251
  %v2260 = vadd.f32 %v1982, %v2253
  %v2261 = vxor.u32 %v2257, 2147483648
  %v2262 = vxor.u32 %v2258, 2147483648
  %v2263 = vxor.u32 %v2259, 2147483648
  %v2264 = vmul.f32 %v2261, 1.442695
  %v2265 = vpow.pop %v2264
  %v2266 = vmul.f32 %v2262, 1.442695
  %v2267 = vpow.pop %v2266
  %v2268 = vmul.f32 %v2263, 1.442695
  %v2269 = vpow.pop %v2268
  %v2270 = vadd.f32 %v2265, 1.0
  %v2271 = vadd.f32 %v2267, 1.0
  %v2272 = vadd.f32 %v2269, 1.0
  %v2273 = vrcp.pop %v2270
  %v2274 = vmul.f32 1.0, %v2273
  %v2275 = vrcp.pop %v2271
  %v2276 = vmul.f32 1.0, %v2275
  %v2277 = vrcp.pop %v2272
  %v2278 = vmul.f32 1.0, %v2277
  %v2279 = vtanh.pop %v2260
  %v2280 = vmul.f32 %v2276, %v1968
  %v2281 = vmul.f32 %v2274, %v2279
  %v2282 = vadd.f32 %v2280, %v2281
  %v2283 = vtanh.pop %v2282
  %v2284 = vmul.f32 %v2278, %v2283
  %v2285 = vpack.c.bf16 %v2284, %v2284
  %s2286 = scalar_lea.vmem [#allocation3], 20
  %2287 = vst [vmem:[%s2286] sm:$0xf] %v2285
  %s2288 = smul.u32 6, 4
  %s2289 = smul.addr %s2288, 4
  %s2290 = scalar_lea.vmem [#allocation2], %s2289
  %v2291 = vld [vmem:[%s2290] sm:$0xff]
  %v2292 = vld [vmem:[%s2290 + $0x8] sm:$0xff]
  %v2293 = vunpack.c.l.bf16 %v2291
  %v2294 = vunpack.c.h.bf16 %v2291
  %v2295 = vunpack.c.l.bf16 %v2292
  %v2296 = vunpack.c.h.bf16 %v2292
  %v2297 = vld [vmem:[%s4] sm:$0xff]
  %v2298 = vld [vmem:[%s4 + $0x8] sm:$0xff]
  %v2299 = vld [vmem:[%s4 + $0x10] sm:$0xff]
  %v2300 = vld [vmem:[%s4 + $0x18] sm:$0xff]
  %v2301 = vld [vmem:[%s4 + $0x20] sm:$0xff]
  %v2302 = vld [vmem:[%s4 + $0x28] sm:$0xff]
  %v2303 = vld [vmem:[%s4 + $0x30] sm:$0xff]
  %v2304 = vld [vmem:[%s4 + $0x38] sm:$0xff]
  %v2305 = vld [vmem:[%s4 + $0x40] sm:$0xff]
  %v2306 = vld [vmem:[%s4 + $0x48] sm:$0xff]
  %v2307 = vld [vmem:[%s4 + $0x50] sm:$0xff]
  %v2308 = vld [vmem:[%s4 + $0x58] sm:$0xff]
  %v2309 = vld [vmem:[%s4 + $0x60] sm:$0xff]
  %v2310 = vld [vmem:[%s4 + $0x68] sm:$0xff]
  %v2311 = vld [vmem:[%s4 + $0x70] sm:$0xff]
  %v2312 = vld [vmem:[%s4 + $0x78] sm:$0xff]
  %v2313 = vld [vmem:[%s4 + $0x80] sm:$0xff]
  %v2314 = vld [vmem:[%s4 + $0x88] sm:$0xff]
  %v2315 = vld [vmem:[%s4 + $0x90] sm:$0xff]
  %v2316 = vld [vmem:[%s4 + $0x98] sm:$0xff]
  %v2317 = vld [vmem:[%s4 + $0xa0] sm:$0xff]
  %v2318 = vld [vmem:[%s4 + $0xa8] sm:$0xff]
  %v2319 = vld [vmem:[%s4 + $0xb0] sm:$0xff]
  %v2320 = vld [vmem:[%s4 + $0xb8] sm:$0xff]
  %v2321 = vld [vmem:[%s4 + $0xc0] sm:$0xff]
  %v2322 = vld [vmem:[%s4 + $0xc8] sm:$0xff]
  %v2323 = vld [vmem:[%s4 + $0xd0] sm:$0xff]
  %v2324 = vld [vmem:[%s4 + $0xd8] sm:$0xff]
  %v2325 = vld [vmem:[%s4 + $0xe0] sm:$0xff]
  %v2326 = vld [vmem:[%s4 + $0xe8] sm:$0xff]
  %v2327 = vld [vmem:[%s4 + $0xf0] sm:$0xff]
  %v2328 = vld [vmem:[%s4 + $0xf8] sm:$0xff]
  %v2361 = vunpack.c.l.b16 %v2297
  %v2362 = vunpack.c.h.b16 %v2297
  %v2363 = vunpack.c.l.b16 %v2298
  %v2364 = vunpack.c.h.b16 %v2298
  %v2365 = vunpack.c.l.b16 %v2299
  %v2366 = vunpack.c.h.b16 %v2299
  %v2367 = vunpack.c.l.b16 %v2300
  %v2368 = vunpack.c.h.b16 %v2300
  %v2369 = vunpack.c.l.b16 %v2301
  %v2370 = vunpack.c.h.b16 %v2301
  %v2371 = vunpack.c.l.b16 %v2302
  %v2372 = vunpack.c.h.b16 %v2302
  %v2373 = vunpack.c.l.b16 %v2303
  %v2374 = vunpack.c.h.b16 %v2303
  %v2375 = vunpack.c.l.b16 %v2304
  %v2376 = vunpack.c.h.b16 %v2304
  %v2377 = vunpack.c.l.b16 %v2305
  %v2378 = vunpack.c.h.b16 %v2305
  %v2379 = vunpack.c.l.b16 %v2306
  %v2380 = vunpack.c.h.b16 %v2306
  %v2381 = vunpack.c.l.b16 %v2307
  %v2382 = vunpack.c.h.b16 %v2307
  %v2383 = vunpack.c.l.b16 %v2308
  %v2384 = vunpack.c.h.b16 %v2308
  %v2385 = vunpack.c.l.b16 %v2309
  %v2386 = vunpack.c.h.b16 %v2309
  %v2387 = vunpack.c.l.b16 %v2310
  %v2388 = vunpack.c.h.b16 %v2310
  %v2389 = vunpack.c.l.b16 %v2311
  %v2390 = vunpack.c.h.b16 %v2311
  %v2391 = vunpack.c.l.b16 %v2312
  %v2392 = vunpack.c.h.b16 %v2312
  %v2393 = vunpack.c.l.b16 %v2313
  %v2394 = vunpack.c.h.b16 %v2313
  %v2395 = vunpack.c.l.b16 %v2314
  %v2396 = vunpack.c.h.b16 %v2314
  %v2397 = vunpack.c.l.b16 %v2315
  %v2398 = vunpack.c.h.b16 %v2315
  %v2399 = vunpack.c.l.b16 %v2316
  %v2400 = vunpack.c.h.b16 %v2316
  %v2401 = vunpack.c.l.b16 %v2317
  %v2402 = vunpack.c.h.b16 %v2317
  %v2403 = vunpack.c.l.b16 %v2318
  %v2404 = vunpack.c.h.b16 %v2318
  %v2405 = vunpack.c.l.b16 %v2319
  %v2406 = vunpack.c.h.b16 %v2319
  %v2407 = vunpack.c.l.b16 %v2320
  %v2408 = vunpack.c.h.b16 %v2320
  %v2409 = vunpack.c.l.b16 %v2321
  %v2410 = vunpack.c.h.b16 %v2321
  %v2411 = vunpack.c.l.b16 %v2322
  %v2412 = vunpack.c.h.b16 %v2322
  %v2413 = vunpack.c.l.b16 %v2323
  %v2414 = vunpack.c.h.b16 %v2323
  %v2415 = vunpack.c.l.b16 %v2324
  %v2416 = vunpack.c.h.b16 %v2324
  %v2417 = vunpack.c.l.b16 %v2325
  %v2418 = vunpack.c.h.b16 %v2325
  %v2419 = vunpack.c.l.b16 %v2326
  %v2420 = vunpack.c.h.b16 %v2326
  %v2421 = vunpack.c.l.b16 %v2327
  %v2422 = vunpack.c.h.b16 %v2327
  %v2423 = vunpack.c.l.b16 %v2328
  %v2424 = vunpack.c.h.b16 %v2328
  %v2425 = vpack.c.b16 %v2365, %v2361
  %v2426 = vpack.c.b16 %v2366, %v2362
  %v2427 = vpack.c.b16 %v2367, %v2363
  %v2428 = vpack.c.b16 %v2368, %v2364
  %v2429 = vpack.c.b16 %v2373, %v2369
  %v2430 = vpack.c.b16 %v2374, %v2370
  %v2431 = vpack.c.b16 %v2375, %v2371
  %v2432 = vpack.c.b16 %v2376, %v2372
  %v2433 = vpack.c.b16 %v2381, %v2377
  %v2434 = vpack.c.b16 %v2382, %v2378
  %v2435 = vpack.c.b16 %v2383, %v2379
  %v2436 = vpack.c.b16 %v2384, %v2380
  %v2437 = vpack.c.b16 %v2389, %v2385
  %v2438 = vpack.c.b16 %v2390, %v2386
  %v2439 = vpack.c.b16 %v2391, %v2387
  %v2440 = vpack.c.b16 %v2392, %v2388
  %v2441 = vpack.c.b16 %v2397, %v2393
  %v2442 = vpack.c.b16 %v2398, %v2394
  %v2443 = vpack.c.b16 %v2399, %v2395
  %v2444 = vpack.c.b16 %v2400, %v2396
  %v2445 = vpack.c.b16 %v2405, %v2401
  %v2446 = vpack.c.b16 %v2406, %v2402
  %v2447 = vpack.c.b16 %v2407, %v2403
  %v2448 = vpack.c.b16 %v2408, %v2404
  %v2449 = vpack.c.b16 %v2413, %v2409
  %v2450 = vpack.c.b16 %v2414, %v2410
  %v2451 = vpack.c.b16 %v2415, %v2411
  %v2452 = vpack.c.b16 %v2416, %v2412
  %v2453 = vpack.c.b16 %v2421, %v2417
  %v2454 = vpack.c.b16 %v2422, %v2418
  %v2455 = vpack.c.b16 %v2423, %v2419
  %v2456 = vpack.c.b16 %v2424, %v2420
  %2489 = vmatprep.subr.bf16.mxu0 %v2454
  %2490 = vmatpush1.bf16.msra.mxu0 %v2453
  %2491 = vmatprep.subr.bf16.mxu0 %v2450
  %2492 = vmatpush1.bf16.msra.mxu0 %v2449
  %2493 = vmatprep.subr.bf16.mxu0 %v2446
  %2494 = vmatpush1.bf16.msra.mxu0 %v2445
  %2495 = vmatprep.subr.bf16.mxu0 %v2442
  %2496 = vmatpush1.bf16.msra.mxu0 %v2441
  %2497 = vmatprep.subr.bf16.mxu0 %v2438
  %2498 = vmatpush1.bf16.msra.mxu0 %v2437
  %2499 = vmatprep.subr.bf16.mxu0 %v2434
  %2500 = vmatpush1.bf16.msra.mxu0 %v2433
  %2501 = vmatprep.subr.bf16.mxu0 %v2430
  %2502 = vmatpush1.bf16.msra.mxu0 %v2429
  %2503 = vmatprep.subr.bf16.mxu0 %v2426
  %2504 = vmatpush1.bf16.msra.mxu0 %v2425
  %2505 = vmatprep.subr.bf16.mxu0 0
  %2506 = vmatpush2.bf16.msra.mxu0 0
  %2507 = vmatprep.subr.bf16.mxu0 0
  %2508 = vmatpush2.bf16.msra.mxu0 0
  %2509 = vmatprep.subr.bf16.mxu0 0
  %2510 = vmatpush2.bf16.msra.mxu0 0
  %2511 = vmatprep.subr.bf16.mxu0 0
  %2512 = vmatpush2.bf16.msra.mxu0 0
  %2513 = vmatprep.subr.bf16.mxu0 0
  %2514 = vmatpush2.bf16.msra.mxu0 0
  %2515 = vmatprep.subr.bf16.mxu0 0
  %2516 = vmatpush2.bf16.msra.mxu0 0
  %2517 = vmatprep.subr.bf16.mxu0 0
  %2518 = vmatpush2.bf16.msra.mxu0 0
  %2519 = vmatprep.subr.bf16.mxu0 0
  %2520 = vmatpush2.bf16.msra.mxu0 0
  %2521 = vmatprep.mubr.bf16.mxu0 0
  %2522 = vmatmul.mubr.bf16.gmra.mxu0 %v2285
  %v2523 = vpop.f32.mrf.mxu0
  %v2524 = vadd.f32 0.0, %v2523
  %v2525 = vpop.f32.mrf.mxu0
  %v2526 = vadd.f32 0.0, %v2525
  %v2527 = vpop.f32.mrf.mxu0
  %v2528 = vpop.f32.mrf.mxu0
  %2529 = vdwg.mxu0
  %2530 = vmatprep.subr.bf16.mxu0 %v2456
  %2531 = vmatpush1.bf16.msra.mxu0 %v2455
  %2532 = vmatprep.subr.bf16.mxu0 %v2452
  %2533 = vmatpush1.bf16.msra.mxu0 %v2451
  %2534 = vmatprep.subr.bf16.mxu0 %v2448
  %2535 = vmatpush1.bf16.msra.mxu0 %v2447
  %2536 = vmatprep.subr.bf16.mxu0 %v2444
  %2537 = vmatpush1.bf16.msra.mxu0 %v2443
  %2538 = vmatprep.subr.bf16.mxu0 %v2440
  %2539 = vmatpush1.bf16.msra.mxu0 %v2439
  %2540 = vmatprep.subr.bf16.mxu0 %v2436
  %2541 = vmatpush1.bf16.msra.mxu0 %v2435
  %2542 = vmatprep.subr.bf16.mxu0 %v2432
  %2543 = vmatpush1.bf16.msra.mxu0 %v2431
  %2544 = vmatprep.subr.bf16.mxu0 %v2428
  %2545 = vmatpush1.bf16.msra.mxu0 %v2427
  %2546 = vmatprep.subr.bf16.mxu0 0
  %2547 = vmatpush2.bf16.msra.mxu0 0
  %2548 = vmatprep.subr.bf16.mxu0 0
  %2549 = vmatpush2.bf16.msra.mxu0 0
  %2550 = vmatprep.subr.bf16.mxu0 0
  %2551 = vmatpush2.bf16.msra.mxu0 0
  %2552 = vmatprep.subr.bf16.mxu0 0
  %2553 = vmatpush2.bf16.msra.mxu0 0
  %2554 = vmatprep.subr.bf16.mxu0 0
  %2555 = vmatpush2.bf16.msra.mxu0 0
  %2556 = vmatprep.subr.bf16.mxu0 0
  %2557 = vmatpush2.bf16.msra.mxu0 0
  %2558 = vmatprep.subr.bf16.mxu0 0
  %2559 = vmatpush2.bf16.msra.mxu0 0
  %2560 = vmatprep.subr.bf16.mxu0 0
  %2561 = vmatpush2.bf16.msra.mxu0 0
  %2562 = vmatprep.mubr.bf16.mxu0 0
  %2563 = vmatmul.mubr.bf16.gmra.mxu0 %v2285
  %v2564 = vpop.f32.mrf.mxu0
  %v2565 = vadd.f32 0.0, %v2564
  %v2566 = vpop.f32.mrf.mxu0
  %v2567 = vadd.f32 0.0, %v2566
  %v2568 = vpop.f32.mrf.mxu0
  %v2569 = vpop.f32.mrf.mxu0
  %2570 = vdwg.mxu0
  %v2571 = vadd.f32 %v2293, %v2524
  %v2572 = vadd.f32 %v2294, %v2526
  %v2573 = vadd.f32 %v2295, %v2565
  %v2574 = vadd.f32 %v2296, %v2567
  %v2575 = vxor.u32 %v2571, 2147483648
  %v2576 = vxor.u32 %v2572, 2147483648
  %v2577 = vxor.u32 %v2573, 2147483648
  %v2578 = vmul.f32 %v2575, 1.442695
  %v2579 = vpow.pop %v2578
  %v2580 = vmul.f32 %v2576, 1.442695
  %v2581 = vpow.pop %v2580
  %v2582 = vmul.f32 %v2577, 1.442695
  %v2583 = vpow.pop %v2582
  %v2584 = vadd.f32 %v2579, 1.0
  %v2585 = vadd.f32 %v2581, 1.0
  %v2586 = vadd.f32 %v2583, 1.0
  %v2587 = vrcp.pop %v2584
  %v2588 = vmul.f32 1.0, %v2587
  %v2589 = vrcp.pop %v2585
  %v2590 = vmul.f32 1.0, %v2589
  %v2591 = vrcp.pop %v2586
  %v2592 = vmul.f32 1.0, %v2591
  %v2593 = vtanh.pop %v2574
  %v2594 = vmul.f32 %v2590, %v2282
  %v2595 = vmul.f32 %v2588, %v2593
  %v2596 = vadd.f32 %v2594, %v2595
  %v2597 = vtanh.pop %v2596
  %v2598 = vmul.f32 %v2592, %v2597
  %v2599 = vpack.c.bf16 %v2598, %v2598
  %s2600 = scalar_lea.vmem [#allocation3], 24
  %2601 = vst [vmem:[%s2600] sm:$0xf] %v2599
  %s2602 = smul.u32 7, 4
  %s2603 = smul.addr %s2602, 4
  %s2604 = scalar_lea.vmem [#allocation2], %s2603
  %v2605 = vld [vmem:[%s2604] sm:$0xff]
  %v2606 = vld [vmem:[%s2604 + $0x8] sm:$0xff]
  %v2607 = vunpack.c.l.bf16 %v2605
  %v2608 = vunpack.c.h.bf16 %v2605
  %v2609 = vunpack.c.l.bf16 %v2606
  %v2610 = vunpack.c.h.bf16 %v2606
  %v2611 = vld [vmem:[%s4] sm:$0xff]
  %v2612 = vld [vmem:[%s4 + $0x8] sm:$0xff]
  %v2613 = vld [vmem:[%s4 + $0x10] sm:$0xff]
  %v2614 = vld [vmem:[%s4 + $0x18] sm:$0xff]
  %v2615 = vld [vmem:[%s4 + $0x20] sm:$0xff]
  %v2616 = vld [vmem:[%s4 + $0x28] sm:$0xff]
  %v2617 = vld [vmem:[%s4 + $0x30] sm:$0xff]
  %v2618 = vld [vmem:[%s4 + $0x38] sm:$0xff]
  %v2619 = vld [vmem:[%s4 + $0x40] sm:$0xff]
  %v2620 = vld [vmem:[%s4 + $0x48] sm:$0xff]
  %v2621 = vld [vmem:[%s4 + $0x50] sm:$0xff]
  %v2622 = vld [vmem:[%s4 + $0x58] sm:$0xff]
  %v2623 = vld [vmem:[%s4 + $0x60] sm:$0xff]
  %v2624 = vld [vmem:[%s4 + $0x68] sm:$0xff]
  %v2625 = vld [vmem:[%s4 + $0x70] sm:$0xff]
  %v2626 = vld [vmem:[%s4 + $0x78] sm:$0xff]
  %v2627 = vld [vmem:[%s4 + $0x80] sm:$0xff]
  %v2628 = vld [vmem:[%s4 + $0x88] sm:$0xff]
  %v2629 = vld [vmem:[%s4 + $0x90] sm:$0xff]
  %v2630 = vld [vmem:[%s4 + $0x98] sm:$0xff]
  %v2631 = vld [vmem:[%s4 + $0xa0] sm:$0xff]
  %v2632 = vld [vmem:[%s4 + $0xa8] sm:$0xff]
  %v2633 = vld [vmem:[%s4 + $0xb0] sm:$0xff]
  %v2634 = vld [vmem:[%s4 + $0xb8] sm:$0xff]
  %v2635 = vld [vmem:[%s4 + $0xc0] sm:$0xff]
  %v2636 = vld [vmem:[%s4 + $0xc8] sm:$0xff]
  %v2637 = vld [vmem:[%s4 + $0xd0] sm:$0xff]
  %v2638 = vld [vmem:[%s4 + $0xd8] sm:$0xff]
  %v2639 = vld [vmem:[%s4 + $0xe0] sm:$0xff]
  %v2640 = vld [vmem:[%s4 + $0xe8] sm:$0xff]
  %v2641 = vld [vmem:[%s4 + $0xf0] sm:$0xff]
  %v2642 = vld [vmem:[%s4 + $0xf8] sm:$0xff]
  %v2675 = vunpack.c.l.b16 %v2611
  %v2676 = vunpack.c.h.b16 %v2611
  %v2677 = vunpack.c.l.b16 %v2612
  %v2678 = vunpack.c.h.b16 %v2612
  %v2679 = vunpack.c.l.b16 %v2613
  %v2680 = vunpack.c.h.b16 %v2613
  %v2681 = vunpack.c.l.b16 %v2614
  %v2682 = vunpack.c.h.b16 %v2614
  %v2683 = vunpack.c.l.b16 %v2615
  %v2684 = vunpack.c.h.b16 %v2615
  %v2685 = vunpack.c.l.b16 %v2616
  %v2686 = vunpack.c.h.b16 %v2616
  %v2687 = vunpack.c.l.b16 %v2617
  %v2688 = vunpack.c.h.b16 %v2617
  %v2689 = vunpack.c.l.b16 %v2618
  %v2690 = vunpack.c.h.b16 %v2618
  %v2691 = vunpack.c.l.b16 %v2619
  %v2692 = vunpack.c.h.b16 %v2619
  %v2693 = vunpack.c.l.b16 %v2620
  %v2694 = vunpack.c.h.b16 %v2620
  %v2695 = vunpack.c.l.b16 %v2621
  %v2696 = vunpack.c.h.b16 %v2621
  %v2697 = vunpack.c.l.b16 %v2622
  %v2698 = vunpack.c.h.b16 %v2622
  %v2699 = vunpack.c.l.b16 %v2623
  %v2700 = vunpack.c.h.b16 %v2623
  %v2701 = vunpack.c.l.b16 %v2624
  %v2702 = vunpack.c.h.b16 %v2624
  %v2703 = vunpack.c.l.b16 %v2625
  %v2704 = vunpack.c.h.b16 %v2625
  %v2705 = vunpack.c.l.b16 %v2626
  %v2706 = vunpack.c.h.b16 %v2626
  %v2707 = vunpack.c.l.b16 %v2627
  %v2708 = vunpack.c.h.b16 %v2627
  %v2709 = vunpack.c.l.b16 %v2628
  %v2710 = vunpack.c.h.b16 %v2628
  %v2711 = vunpack.c.l.b16 %v2629
  %v2712 = vunpack.c.h.b16 %v2629
  %v2713 = vunpack.c.l.b16 %v2630
  %v2714 = vunpack.c.h.b16 %v2630
  %v2715 = vunpack.c.l.b16 %v2631
  %v2716 = vunpack.c.h.b16 %v2631
  %v2717 = vunpack.c.l.b16 %v2632
  %v2718 = vunpack.c.h.b16 %v2632
  %v2719 = vunpack.c.l.b16 %v2633
  %v2720 = vunpack.c.h.b16 %v2633
  %v2721 = vunpack.c.l.b16 %v2634
  %v2722 = vunpack.c.h.b16 %v2634
  %v2723 = vunpack.c.l.b16 %v2635
  %v2724 = vunpack.c.h.b16 %v2635
  %v2725 = vunpack.c.l.b16 %v2636
  %v2726 = vunpack.c.h.b16 %v2636
  %v2727 = vunpack.c.l.b16 %v2637
  %v2728 = vunpack.c.h.b16 %v2637
  %v2729 = vunpack.c.l.b16 %v2638
  %v2730 = vunpack.c.h.b16 %v2638
  %v2731 = vunpack.c.l.b16 %v2639
  %v2732 = vunpack.c.h.b16 %v2639
  %v2733 = vunpack.c.l.b16 %v2640
  %v2734 = vunpack.c.h.b16 %v2640
  %v2735 = vunpack.c.l.b16 %v2641
  %v2736 = vunpack.c.h.b16 %v2641
  %v2737 = vunpack.c.l.b16 %v2642
  %v2738 = vunpack.c.h.b16 %v2642
  %v2739 = vpack.c.b16 %v2679, %v2675
  %v2740 = vpack.c.b16 %v2680, %v2676
  %v2741 = vpack.c.b16 %v2681, %v2677
  %v2742 = vpack.c.b16 %v2682, %v2678
  %v2743 = vpack.c.b16 %v2687, %v2683
  %v2744 = vpack.c.b16 %v2688, %v2684
  %v2745 = vpack.c.b16 %v2689, %v2685
  %v2746 = vpack.c.b16 %v2690, %v2686
  %v2747 = vpack.c.b16 %v2695, %v2691
  %v2748 = vpack.c.b16 %v2696, %v2692
  %v2749 = vpack.c.b16 %v2697, %v2693
  %v2750 = vpack.c.b16 %v2698, %v2694
  %v2751 = vpack.c.b16 %v2703, %v2699
  %v2752 = vpack.c.b16 %v2704, %v2700
  %v2753 = vpack.c.b16 %v2705, %v2701
  %v2754 = vpack.c.b16 %v2706, %v2702
  %v2755 = vpack.c.b16 %v2711, %v2707
  %v2756 = vpack.c.b16 %v2712, %v2708
  %v2757 = vpack.c.b16 %v2713, %v2709
  %v2758 = vpack.c.b16 %v2714, %v2710
  %v2759 = vpack.c.b16 %v2719, %v2715
  %v2760 = vpack.c.b16 %v2720, %v2716
  %v2761 = vpack.c.b16 %v2721, %v2717
  %v2762 = vpack.c.b16 %v2722, %v2718
  %v2763 = vpack.c.b16 %v2727, %v2723
  %v2764 = vpack.c.b16 %v2728, %v2724
  %v2765 = vpack.c.b16 %v2729, %v2725
  %v2766 = vpack.c.b16 %v2730, %v2726
  %v2767 = vpack.c.b16 %v2735, %v2731
  %v2768 = vpack.c.b16 %v2736, %v2732
  %v2769 = vpack.c.b16 %v2737, %v2733
  %v2770 = vpack.c.b16 %v2738, %v2734
  %2803 = vmatprep.subr.bf16.mxu0 %v2768
  %2804 = vmatpush1.bf16.msra.mxu0 %v2767
  %2805 = vmatprep.subr.bf16.mxu0 %v2764
  %2806 = vmatpush1.bf16.msra.mxu0 %v2763
  %2807 = vmatprep.subr.bf16.mxu0 %v2760
  %2808 = vmatpush1.bf16.msra.mxu0 %v2759
  %2809 = vmatprep.subr.bf16.mxu0 %v2756
  %2810 = vmatpush1.bf16.msra.mxu0 %v2755
  %2811 = vmatprep.subr.bf16.mxu0 %v2752
  %2812 = vmatpush1.bf16.msra.mxu0 %v2751
  %2813 = vmatprep.subr.bf16.mxu0 %v2748
  %2814 = vmatpush1.bf16.msra.mxu0 %v2747
  %2815 = vmatprep.subr.bf16.mxu0 %v2744
  %2816 = vmatpush1.bf16.msra.mxu0 %v2743
  %2817 = vmatprep.subr.bf16.mxu0 %v2740
  %2818 = vmatpush1.bf16.msra.mxu0 %v2739
  %2819 = vmatprep.subr.bf16.mxu0 0
  %2820 = vmatpush2.bf16.msra.mxu0 0
  %2821 = vmatprep.subr.bf16.mxu0 0
  %2822 = vmatpush2.bf16.msra.mxu0 0
  %2823 = vmatprep.subr.bf16.mxu0 0
  %2824 = vmatpush2.bf16.msra.mxu0 0
  %2825 = vmatprep.subr.bf16.mxu0 0
  %2826 = vmatpush2.bf16.msra.mxu0 0
  %2827 = vmatprep.subr.bf16.mxu0 0
  %2828 = vmatpush2.bf16.msra.mxu0 0
  %2829 = vmatprep.subr.bf16.mxu0 0
  %2830 = vmatpush2.bf16.msra.mxu0 0
  %2831 = vmatprep.subr.bf16.mxu0 0
  %2832 = vmatpush2.bf16.msra.mxu0 0
  %2833 = vmatprep.subr.bf16.mxu0 0
  %2834 = vmatpush2.bf16.msra.mxu0 0
  %2835 = vmatprep.mubr.bf16.mxu0 0
  %2836 = vmatmul.mubr.bf16.gmra.mxu0 %v2599
  %v2837 = vpop.f32.mrf.mxu0
  %v2838 = vadd.f32 0.0, %v2837
  %v2839 = vpop.f32.mrf.mxu0
  %v2840 = vadd.f32 0.0, %v2839
  %v2841 = vpop.f32.mrf.mxu0
  %v2842 = vpop.f32.mrf.mxu0
  %2843 = vdwg.mxu0
  %2844 = vmatprep.subr.bf16.mxu0 %v2770
  %2845 = vmatpush1.bf16.msra.mxu0 %v2769
  %2846 = vmatprep.subr.bf16.mxu0 %v2766
  %2847 = vmatpush1.bf16.msra.mxu0 %v2765
  %2848 = vmatprep.subr.bf16.mxu0 %v2762
  %2849 = vmatpush1.bf16.msra.mxu0 %v2761
  %2850 = vmatprep.subr.bf16.mxu0 %v2758
  %2851 = vmatpush1.bf16.msra.mxu0 %v2757
  %2852 = vmatprep.subr.bf16.mxu0 %v2754
  %2853 = vmatpush1.bf16.msra.mxu0 %v2753
  %2854 = vmatprep.subr.bf16.mxu0 %v2750
  %2855 = vmatpush1.bf16.msra.mxu0 %v2749
  %2856 = vmatprep.subr.bf16.mxu0 %v2746
  %2857 = vmatpush1.bf16.msra.mxu0 %v2745
  %2858 = vmatprep.subr.bf16.mxu0 %v2742
  %2859 = vmatpush1.bf16.msra.mxu0 %v2741
  %2860 = vmatprep.subr.bf16.mxu0 0
  %2861 = vmatpush2.bf16.msra.mxu0 0
  %2862 = vmatprep.subr.bf16.mxu0 0
  %2863 = vmatpush2.bf16.msra.mxu0 0
  %2864 = vmatprep.subr.bf16.mxu0 0
  %2865 = vmatpush2.bf16.msra.mxu0 0
  %2866 = vmatprep.subr.bf16.mxu0 0
  %2867 = vmatpush2.bf16.msra.mxu0 0
  %2868 = vmatprep.subr.bf16.mxu0 0
  %2869 = vmatpush2.bf16.msra.mxu0 0
  %2870 = vmatprep.subr.bf16.mxu0 0
  %2871 = vmatpush2.bf16.msra.mxu0 0
  %2872 = vmatprep.subr.bf16.mxu0 0
  %2873 = vmatpush2.bf16.msra.mxu0 0
  %2874 = vmatprep.subr.bf16.mxu0 0
  %2875 = vmatpush2.bf16.msra.mxu0 0
  %2876 = vmatprep.mubr.bf16.mxu0 0
  %2877 = vmatmul.mubr.bf16.gmra.mxu0 %v2599
  %v2878 = vpop.f32.mrf.mxu0
  %v2879 = vadd.f32 0.0, %v2878
  %v2880 = vpop.f32.mrf.mxu0
  %v2881 = vadd.f32 0.0, %v2880
  %v2882 = vpop.f32.mrf.mxu0
  %v2883 = vpop.f32.mrf.mxu0
  %2884 = vdwg.mxu0
  %v2885 = vadd.f32 %v2607, %v2838
  %v2886 = vadd.f32 %v2608, %v2840
  %v2887 = vadd.f32 %v2609, %v2879
  %v2888 = vadd.f32 %v2610, %v2881
  %v2889 = vxor.u32 %v2885, 2147483648
  %v2890 = vxor.u32 %v2886, 2147483648
  %v2891 = vxor.u32 %v2887, 2147483648
  %v2892 = vmul.f32 %v2889, 1.442695
  %v2893 = vpow.pop %v2892
  %v2894 = vmul.f32 %v2890, 1.442695
  %v2895 = vpow.pop %v2894
  %v2896 = vmul.f32 %v2891, 1.442695
  %v2897 = vpow.pop %v2896
  %v2898 = vadd.f32 %v2893, 1.0
  %v2899 = vadd.f32 %v2895, 1.0
  %v2900 = vadd.f32 %v2897, 1.0
  %v2901 = vrcp.pop %v2898
  %v2902 = vmul.f32 1.0, %v2901
  %v2903 = vrcp.pop %v2899
  %v2904 = vmul.f32 1.0, %v2903
  %v2905 = vrcp.pop %v2900
  %v2906 = vmul.f32 1.0, %v2905
  %v2907 = vtanh.pop %v2888
  %v2908 = vmul.f32 %v2904, %v2596
  %v2909 = vmul.f32 %v2902, %v2907
  %v2910 = vadd.f32 %v2908, %v2909
  %v2911 = vtanh.pop %v2910
  %v2912 = vmul.f32 %v2906, %v2911
  %v2913 = vpack.c.bf16 %v2912, %v2912
  %s2914 = scalar_lea.vmem [#allocation3], 28
  %2915 = vst [vmem:[%s2914] sm:$0xf] %v2913
  %v2916 = vld [vmem:[#allocation3] sm:$0xf]
  %v2917 = vld [vmem:[#allocation3 + $0x4] sm:$0xf]
  %v2918 = vld [vmem:[#allocation3 + $0x8] sm:$0xf]
  %v2919 = vld [vmem:[#allocation3 + $0xc] sm:$0xf]
  %v2920 = vld [vmem:[#allocation3 + $0x10] sm:$0xf]
  %v2921 = vld [vmem:[#allocation3 + $0x14] sm:$0xf]
  %v2922 = vld [vmem:[#allocation3 + $0x18] sm:$0xf]
  %v2923 = vld [vmem:[#allocation3 + $0x1c] sm:$0xf]
  %v2924 = vld [vmem:[%s6] sm:$0xf]
  %v2925 = vld [vmem:[%s6 + $0x4] sm:$0xf]
  %v2926 = vld [vmem:[%s6 + $0x8] sm:$0xf]
  %v2927 = vld [vmem:[%s6 + $0xc] sm:$0xf]
  %v2928 = vld [vmem:[%s6 + $0x10] sm:$0xf]
  %v2929 = vld [vmem:[%s6 + $0x14] sm:$0xf]
  %v2930 = vld [vmem:[%s6 + $0x18] sm:$0xf]
  %v2931 = vld [vmem:[%s6 + $0x1c] sm:$0xf]
  %v2932 = vld [vmem:[%s6 + $0x20] sm:$0xf]
  %v2933 = vld [vmem:[%s6 + $0x24] sm:$0xf]
  %v2934 = vld [vmem:[%s6 + $0x28] sm:$0xf]
  %v2935 = vld [vmem:[%s6 + $0x2c] sm:$0xf]
  %v2936 = vld [vmem:[%s6 + $0x30] sm:$0xf]
  %v2937 = vld [vmem:[%s6 + $0x34] sm:$0xf]
  %v2938 = vld [vmem:[%s6 + $0x38] sm:$0xf]
  %v2939 = vld [vmem:[%s6 + $0x3c] sm:$0xf]
  %v2940 = vld [vmem:[%s7] sm:$0x1]
  %v2942 = vlaneseq
  %v2943 = vshrl.u32 %v2942, 7
  %v2944 = vsub.s32 0, %v2943
  %v2945 = vrot.slane %v2940, %v2944
  %v2955 = vunpack.c.l.b16 %v2916
  %v2956 = vunpack.c.l.b16 %v2917
  %v2957 = vunpack.c.l.b16 %v2918
  %v2958 = vunpack.c.l.b16 %v2919
  %v2959 = vunpack.c.l.b16 %v2920
  %v2960 = vunpack.c.l.b16 %v2921
  %v2961 = vunpack.c.l.b16 %v2922
  %v2962 = vunpack.c.l.b16 %v2923
  %v2963 = vpack.c.b16 %v2956, %v2955
  %v2964 = vpack.c.b16 %v2958, %v2957
  %v2965 = vpack.c.b16 %v2960, %v2959
  %v2966 = vpack.c.b16 %v2962, %v2961
  %v2987 = vunpack.c.l.b16 %v2924
  %v2988 = vunpack.c.l.b16 %v2925
  %v2989 = vunpack.c.l.b16 %v2926
  %v2990 = vunpack.c.l.b16 %v2927
  %v2991 = vunpack.c.l.b16 %v2928
  %v2992 = vunpack.c.l.b16 %v2929
  %v2993 = vunpack.c.l.b16 %v2930
  %v2994 = vunpack.c.l.b16 %v2931
  %v2995 = vunpack.c.l.b16 %v2932
  %v2996 = vunpack.c.l.b16 %v2933
  %v2997 = vunpack.c.l.b16 %v2934
  %v2998 = vunpack.c.l.b16 %v2935
  %v2999 = vunpack.c.l.b16 %v2936
  %v3000 = vunpack.c.l.b16 %v2937
  %v3001 = vunpack.c.l.b16 %v2938
  %v3002 = vunpack.c.l.b16 %v2939
  %v3003 = vpack.c.b16 %v2988, %v2987
  %v3004 = vpack.c.b16 %v2990, %v2989
  %v3005 = vpack.c.b16 %v2992, %v2991
  %v3006 = vpack.c.b16 %v2994, %v2993
  %v3007 = vpack.c.b16 %v2996, %v2995
  %v3008 = vpack.c.b16 %v2998, %v2997
  %v3009 = vpack.c.b16 %v3000, %v2999
  %v3010 = vpack.c.b16 %v3002, %v3001
  %3019 = vmatprep.subr.bf16.mxu0 0
  %3020 = vmatpush1.bf16.msra.mxu0 %v3010
  %3021 = vmatprep.subr.bf16.mxu0 0
  %3022 = vmatpush1.bf16.msra.mxu0 %v3009
  %3023 = vmatprep.subr.bf16.mxu0 0
  %3024 = vmatpush1.bf16.msra.mxu0 %v3008
  %3025 = vmatprep.subr.bf16.mxu0 0
  %3026 = vmatpush1.bf16.msra.mxu0 %v3007
  %3027 = vmatprep.subr.bf16.mxu0 0
  %3028 = vmatpush1.bf16.msra.mxu0 %v3006
  %3029 = vmatprep.subr.bf16.mxu0 0
  %3030 = vmatpush1.bf16.msra.mxu0 %v3005
  %3031 = vmatprep.subr.bf16.mxu0 0
  %3032 = vmatpush1.bf16.msra.mxu0 %v3004
  %3033 = vmatprep.subr.bf16.mxu0 0
  %3034 = vmatpush1.bf16.msra.mxu0 %v3003
  %3035 = vmatprep.subr.bf16.mxu0 0
  %3036 = vmatpush2.bf16.msra.mxu0 0
  %3037 = vmatprep.subr.bf16.mxu0 0
  %3038 = vmatpush2.bf16.msra.mxu0 0
  %3039 = vmatprep.subr.bf16.mxu0 0
  %3040 = vmatpush2.bf16.msra.mxu0 0
  %3041 = vmatprep.subr.bf16.mxu0 0
  %3042 = vmatpush2.bf16.msra.mxu0 0
  %3043 = vmatprep.subr.bf16.mxu0 0
  %3044 = vmatpush2.bf16.msra.mxu0 0
  %3045 = vmatprep.subr.bf16.mxu0 0
  %3046 = vmatpush2.bf16.msra.mxu0 0
  %3047 = vmatprep.subr.bf16.mxu0 0
  %3048 = vmatpush2.bf16.msra.mxu0 0
  %3049 = vmatprep.subr.bf16.mxu0 0
  %3050 = vmatpush2.bf16.msra.mxu0 0
  %3051 = vmatprep.mubr.bf16.mxu0 0
  %3052 = vmatmul.mubr.bf16.gmra.mxu0 %v2963
  %v3053 = vpop.f32.mrf.mxu0
  %v3054 = vadd.f32 %v2945, %v3053
  %v3055 = vpop.f32.mrf.mxu0
  %v3056 = vpop.f32.mrf.mxu0
  %v3057 = vadd.f32 %v2945, %v3056
  %v3058 = vpop.f32.mrf.mxu0
  %3059 = vmatprep.mubr.bf16.mxu0 0
  %3060 = vmatmul.mubr.bf16.gmra.mxu0 %v2964
  %v3061 = vpop.f32.mrf.mxu0
  %v3062 = vadd.f32 %v2945, %v3061
  %v3063 = vpop.f32.mrf.mxu0
  %v3064 = vpop.f32.mrf.mxu0
  %v3065 = vadd.f32 %v2945, %v3064
  %v3066 = vpop.f32.mrf.mxu0
  %3067 = vmatprep.mubr.bf16.mxu0 0
  %3068 = vmatmul.mubr.bf16.gmra.mxu0 %v2965
  %v3069 = vpop.f32.mrf.mxu0
  %v3070 = vadd.f32 %v2945, %v3069
  %v3071 = vpop.f32.mrf.mxu0
  %v3072 = vpop.f32.mrf.mxu0
  %v3073 = vadd.f32 %v2945, %v3072
  %v3074 = vpop.f32.mrf.mxu0
  %3075 = vmatprep.mubr.bf16.mxu0 0
  %3076 = vmatmul.mubr.bf16.gmra.mxu0 %v2966
  %v3077 = vpop.f32.mrf.mxu0
  %v3078 = vadd.f32 %v2945, %v3077
  %v3079 = vpop.f32.mrf.mxu0
  %v3080 = vpop.f32.mrf.mxu0
  %v3081 = vadd.f32 %v2945, %v3080
  %v3082 = vpop.f32.mrf.mxu0
  %3083 = vdwg.mxu0
  %3084 = vst [vmem:[%s8] sm:$0xff] %v3054
  %3085 = vst [vmem:[%s8 + $0x8] sm:$0xff] %v3057
  %3086 = vst [vmem:[%s8 + $0x10] sm:$0xff] %v3062
  %3087 = vst [vmem:[%s8 + $0x18] sm:$0xff] %v3065
  %3088 = vst [vmem:[%s8 + $0x20] sm:$0xff] %v3070
  %3089 = vst [vmem:[%s8 + $0x28] sm:$0xff] %v3073
  %3090 = vst [vmem:[%s8 + $0x30] sm:$0xff] %v3078
  %3091 = vst [vmem:[%s8 + $0x38] sm:$0xff] %v3081
  %3092 = vst [vmem:[%s9] sm:$0xff] %v2912
  %3093 = vst [vmem:[%s10] sm:$0xff] %v2910
  // Predicated region
  $region34: #{char_decoder_forward.1} parent=0 // pred_check
    _
  $region35: #{char_decoder_forward.1} parent=0 // pred_check_branch
    %3095 = sbr.rel (0) target = $region37
  $region36: #{char_decoder_forward.1} parent=0 // pred_region
    _
  $region37: #{char_decoder_forward.1} parent=0 // pred_fallthru
    _
  // Predicated region
  $region38: #{char_decoder_forward.1} parent=0 // pred_check
    _
  $region39: #{char_decoder_forward.1} parent=0 // pred_check_branch
    %3097 = sbr.rel (0) target = $region41
  $region40: #{char_decoder_forward.1} parent=0 // pred_region
    _
  $region41: #{char_decoder_forward.1} parent=0 // pred_fallthru
    _
  // Predicated region
  $region42: #{char_decoder_forward.1} parent=0 // pred_check
    _
  $region43: #{char_decoder_forward.1} parent=0 // pred_check_branch
    %3099 = sbr.rel (0) target = $region45
  $region44: #{char_decoder_forward.1} parent=0 // pred_region
    _
  $region45: #{char_decoder_forward.1} parent=0 // pred_fallthru
    _
  // Predicated region
  $region46: #{char_decoder_forward.1} parent=0 // pred_check
    _
  $region47: #{char_decoder_forward.1} parent=0 // pred_check_branch
    %3101 = sbr.rel (0) target = $region49
  $region48: #{char_decoder_forward.1} parent=0 // pred_region
    _
  $region49: #{char_decoder_forward.1} parent=0 // pred_fallthru
    _
  // Predicated region
  $region50: #{char_decoder_forward.1} parent=0 // pred_check
    _
  $region51: #{char_decoder_forward.1} parent=0 // pred_check_branch
    %3103 = sbr.rel (0) target = $region53
  $region52: #{char_decoder_forward.1} parent=0 // pred_region
    _
  $region53: #{char_decoder_forward.1} parent=0 // pred_fallthru
    _
  // Predicated region
  $region54: #{char_decoder_forward.1} parent=0 // pred_check
    _
  $region55: #{char_decoder_forward.1} parent=0 // pred_check_branch
    %3105 = sbr.rel (0) target = $region57
  $region56: #{char_decoder_forward.1} parent=0 // pred_region
    _
  $region57: #{char_decoder_forward.1} parent=0 // pred_fallthru
    _

</llo_original>
